<compile_context>
chip_gen: v7x
topology: tpu7x:2x2x1
jax: 0.10.0
libtpu: 0.0.40
codegen_flags: <defaults>
</compile_context>

<pallas_src>
import functools
import math

import jax
import jax.numpy as jnp
import numpy as np
from jax import lax
from jax.experimental import pallas as pl
from jax.experimental.pallas import tpu as pltpu


LANE_PAD = 128  # classifier logits are padded to this lane width inside the kernel


# ----------------------------------------------------------------------------
# Fused Pallas kernel: all encoder layers + mean-pool + fc
# ----------------------------------------------------------------------------
def fused_transformer_kernel(
    x_ref,                                  # (N, D) f32,  N = batch_block * S
    wqkv_ref, bqkv_ref,                     # (L, D, 3D) bf16 / (L, 1, 3D) f32
    wo_ref, bo_ref,                         # (L, D, D)  bf16 / (L, 1, D)  f32
    w1_ref, b1_ref,                         # (L, D, F)  bf16 / (L, 1, F)  f32
    w2_ref, b2_ref,                         # (L, F, D)  bf16 / (L, 1, D)  f32
    g1_ref, be1_ref, g2_ref, be2_ref,       # (L, 1, D)  f32
    wfc_ref, bfc_ref,                       # (D, CP) bf16 / (1, CP) f32
    o_ref,                                  # (1, batch_block, CP) f32
    *, seq_len, num_heads):
    f32, bf16 = jnp.float32, jnp.bfloat16
    N, D = x_ref.shape
    L = wqkv_ref.shape[0]
    H = num_heads
    dh = D // H
    S = seq_len
    bb = N // S
    scale = 1.0 / math.sqrt(dh)

    def layer_norm(y, g, b):                # f32 statistics
        mu = jnp.mean(y, axis=-1, keepdims=True)
        var = jnp.mean((y - mu) ** 2, axis=-1, keepdims=True)
        return (y - mu) * lax.rsqrt(var + 1e-5) * g + b

    x = x_ref[...].astype(f32)              # (N, D)

    # Static unroll over layers; all layer weights are VMEM-resident (no HBM round trip).
    # NOTE(perf): at realistic D/F/L, move this axis into the grid ('arbitrary') so only
    # ~2 layers of weights are resident at a time (essential for v7x's 64 MiB VMEM).
    for l in range(L):
        # --- self-attention -------------------------------------------------
        # Fused, lane-dense QKV projection: one (N, D) @ (D, 3D) MXU matmul.
        qkv = jnp.dot(x.astype(bf16), wqkv_ref[l],
                      preferred_element_type=f32) + bqkv_ref[l]          # (N, 3D) f32
        qkv3 = qkv.reshape(bb, S, 3 * D)                                 # real batch axis

        head_outs = []
        for h in range(H):  # heads unrolled; per-head work is batched over bb examples
            qh = qkv3[:, :, h * dh:(h + 1) * dh].astype(bf16)            # (bb, S, dh)
            kh = qkv3[:, :, D + h * dh:D + (h + 1) * dh].astype(bf16)
            vh = qkv3[:, :, 2 * D + h * dh:2 * D + (h + 1) * dh].astype(bf16)

            # Per-example scores: (bb, S, S) — no block-diagonal mask needed.
            s = jnp.einsum('bqd,bkd->bqk', qh, kh,
                           preferred_element_type=f32) * scale
            s = s - jnp.max(s, axis=-1, keepdims=True)
            p = jnp.exp(s)
            p = p * pl.reciprocal(jnp.sum(p, axis=-1, keepdims=True), approx=True)

            head_outs.append(jnp.einsum('bqk,bkd->bqd', p.astype(bf16), vh,
                                        preferred_element_type=f32))     # (bb, S, dh)

        # Concat heads -> (N, D), then ONE lane-dense output projection (contraction D).
        attn = jnp.concatenate(head_outs, axis=-1).reshape(N, D)
        attn_out = jnp.dot(attn.astype(bf16), wo_ref[l],
                           preferred_element_type=f32) + bo_ref[l]       # (N, D)

        x1 = layer_norm(x + attn_out, g1_ref[l], be1_ref[l])

        # --- feed-forward (ReLU), bf16 MXU operands, f32 accumulation ---------
        h1 = jnp.dot(x1.astype(bf16), w1_ref[l],
                     preferred_element_type=f32) + b1_ref[l]             # (N, F)
        h1 = jnp.maximum(h1, 0.0)
        ff = jnp.dot(h1.astype(bf16), w2_ref[l],
                     preferred_element_type=f32) + b2_ref[l]             # (N, D)

        x = layer_norm(x1 + ff, g2_ref[l], be2_ref[l])

    # Exact f32 mean pool over the sequence, then lane-dense (CP=128) classifier matmul.
    pooled = jnp.mean(x.reshape(bb, S, D), axis=1)                       # (bb, D) f32
    logits = jnp.dot(pooled.astype(bf16), wfc_ref[...],
                     preferred_element_type=f32) + bfc_ref[...]          # (bb, CP)
    o_ref[0] = logits.astype(o_ref.dtype)                                # lane-dense store


# ----------------------------------------------------------------------------
# Wrappers
# ----------------------------------------------------------------------------
def pack_params(layer_params, wfc, bfc):
    """Stack per-layer params along a leading L axis; cast MXU operands to bf16."""
    bf16 = jnp.bfloat16
    D = layer_params[0]["wqkv"].shape[0]
    stack = lambda key: jnp.stack([p[key] for p in layer_params])

    C = wfc.shape[1]
    CP = ((C + LANE_PAD - 1) // LANE_PAD) * LANE_PAD
    wfc_pad = jnp.zeros((D, CP), jnp.float32).at[:, :C].set(wfc)
    bfc_pad = jnp.zeros((1, CP), jnp.float32).at[:, :C].set(bfc)

    return {
        "wqkv": stack("wqkv").astype(bf16), "bqkv": stack("bqkv"),
        "wo": stack("wo").astype(bf16), "bo": stack("bo"),
        "w1": stack("w1").astype(bf16), "b1": stack("b1"),
        "w2": stack("w2").astype(bf16), "b2": stack("b2"),
        "g1": stack("g1"), "be1": stack("be1"),
        "g2": stack("g2"), "be2": stack("be2"),
        "wfc": wfc_pad.astype(bf16), "bfc": bfc_pad,
    }


def _device_defaults(batch):
    """Per-generation defaults: shard the batch across both TCs on v7x; raise VMEM limit."""
    kind = jax.devices()[0].device_kind.lower()
    is_v7 = ("v7" in kind) or ("tpu7" in kind)
    batch_block = batch // 2 if (is_v7 and batch % 2 == 0) else batch
    vmem_limit = (56 if is_v7 else 100) * 1024 * 1024
    return batch_block, vmem_limit


def transformer_classifier(x, packed, *, num_heads, num_classes, batch_block=None):
    B, S, D = x.shape
    default_bb, vmem_limit = _device_defaults(B)
    if batch_block is None:
        batch_block = default_bb
    assert B % batch_block == 0
    nblk = B // batch_block
    N = batch_block * S
    CP = packed["wfc"].shape[1]

    order = ("wqkv", "bqkv", "wo", "bo", "w1", "b1", "w2", "b2",
             "g1", "be1", "g2", "be2", "wfc", "bfc")
    weights = [packed[k] for k in order]

    def rep_spec(a):
        nd = a.ndim
        # NOTE(perf): at realistic sizes, add pipeline_mode=pl.Buffered(1) here (these
        # weights are never re-fetched across grid steps) to halve their VMEM footprint.
        return pl.BlockSpec(a.shape, lambda i, _nd=nd: (0,) * _nd)

    kernel = functools.partial(fused_transformer_kernel, seq_len=S, num_heads=num_heads)
    out = pl.pallas_call(
        kernel,
        out_shape=jax.ShapeDtypeStruct((nblk, batch_block, CP), x.dtype),
        grid=(nblk,),
        in_specs=[pl.BlockSpec((N, D), lambda i: (i, 0))] + [rep_spec(a) for a in weights],
        out_specs=pl.BlockSpec((1, batch_block, CP), lambda i: (i, 0, 0)),
        compiler_params=pltpu.CompilerParams(
            dimension_semantics=("parallel",),
            vmem_limit_bytes=vmem_limit),
    )(x.reshape(B * S, D), *weights)
    return out.reshape(B, CP)[:, :num_classes]


# ----------------------------------------------------------------------------
# Pure-JAX reference (mirrors the kernel's bf16 matmul operands, f32 accumulation)
# ----------------------------------------------------------------------------
def _mm(a, b):
    return jnp.dot(a.astype(jnp.bfloat16), b.astype(jnp.bfloat16),
                   preferred_element_type=jnp.float32)


def _bmm(eq, a, b):
    return jnp.einsum(eq, a.astype(jnp.bfloat16), b.astype(jnp.bfloat16),
                      preferred_element_type=jnp.float32)


def _ref_layer_norm(y, g, b):
    mu = jnp.mean(y, axis=-1, keepdims=True)
    var = jnp.mean((y - mu) ** 2, axis=-1, keepdims=True)
    return (y - mu) * jax.lax.rsqrt(var + 1e-5) * g + b


def ref_encoder_layer(x, p, num_heads):
    B, S, D = x.shape
    dh = D // num_heads
    qkv = _bmm('bsd,de->bse', x, p["wqkv"]) + p["bqkv"][0]
    q, k, v = jnp.split(qkv, 3, axis=-1)
    q = q.reshape(B, S, num_heads, dh).transpose(0, 2, 1, 3)
    k = k.reshape(B, S, num_heads, dh).transpose(0, 2, 1, 3)
    v = v.reshape(B, S, num_heads, dh).transpose(0, 2, 1, 3)
    s = _bmm('bhqd,bhkd->bhqk', q, k) * (1.0 / math.sqrt(dh))
    a = _bmm('bhqk,bhkd->bhqd', jax.nn.softmax(s, axis=-1), v)
    a = a.transpose(0, 2, 1, 3).reshape(B, S, D)
    a = _bmm('bsd,de->bse', a, p["wo"]) + p["bo"][0]
    x1 = _ref_layer_norm(x + a, p["g1"][0], p["be1"][0])
    h1 = jax.nn.relu(_bmm('bsd,df->bsf', x1, p["w1"]) + p["b1"][0])
    ff = _bmm('bsf,fd->bsd', h1, p["w2"]) + p["b2"][0]
    return _ref_layer_norm(x1 + ff, p["g2"][0], p["be2"][0])


def ref_model(x, layer_params, wfc, bfc, num_heads):
    for p in layer_params:
        x = ref_encoder_layer(x, p, num_heads)
    pooled = jnp.mean(x, axis=1)
    return _mm(pooled, wfc) + bfc[0]


# ----------------------------------------------------------------------------
# Parameter init (deterministic, synthetic)
# ----------------------------------------------------------------------------
def init_params(key, input_dim, num_heads, num_layers, hidden_dim, num_classes):
    D, H = input_dim, hidden_dim
    layer_params = []
    for _ in range(num_layers):
        keys = jax.random.split(key, 9)
        key = keys[0]
        p = {
            "wqkv": 0.1 * jax.random.normal(keys[1], (D, 3 * D), jnp.float32),
            "bqkv": 0.1 * jax.random.normal(keys[2], (1, 3 * D), jnp.float32),
            "wo":   0.1 * jax.random.normal(keys[3], (D, D), jnp.float32),
            "bo":   0.1 * jax.random.normal(keys[4], (1, D), jnp.float32),
            "w1":   0.1 * jax.random.normal(keys[5], (D, H), jnp.float32),
            "b1":   0.1 * jax.random.normal(keys[6], (1, H), jnp.float32),
            "w2":   0.1 * jax.random.normal(keys[7], (H, D), jnp.float32),
            "b2":   0.1 * jax.random.normal(keys[8], (1, D), jnp.float32),
            "g1":   jnp.ones((1, D), jnp.float32),
            "be1":  jnp.zeros((1, D), jnp.float32),
            "g2":   jnp.ones((1, D), jnp.float32),
            "be2":  jnp.zeros((1, D), jnp.float32),
        }
        layer_params.append(p)
    kf1, kf2, kx = jax.random.split(key, 3)
    wfc = 0.1 * jax.random.normal(kf1, (D, num_classes), jnp.float32)
    bfc = 0.1 * jax.random.normal(kf2, (1, num_classes), jnp.float32)
    return layer_params, wfc, bfc, kx


# ----------------------------------------------------------------------------
if __name__ == "__main__":
    B, S = 2, 8
    input_dim, num_heads, num_layers, hidden_dim, num_classes = 32, 4, 2, 64, 5

    key = jax.random.PRNGKey(0)
    layer_params, wfc, bfc, kx = init_params(
        key, input_dim, num_heads, num_layers, hidden_dim, num_classes)
    x = jax.random.normal(kx, (B, S, input_dim), jnp.float32)

    packed = pack_params(layer_params, wfc, bfc)
    out = transformer_classifier(x, packed, num_heads=num_heads, num_classes=num_classes)
    out = jax.block_until_ready(out)

    ref = jax.block_until_ready(ref_model(x, layer_params, wfc, bfc, num_heads))
    np.testing.assert_allclose(np.asarray(out), np.asarray(ref), rtol=2e-2, atol=2e-2)

    print("KERNEL_OK")
</pallas_src>

<mosaic_0001>
module attributes {stable_mosaic.version = 11 : i64} {
  func.func @fused_transformer_kernel(%arg0: i32, %arg1: memref<16x32xf32, #tpu.memory_space<vmem>>, %arg2: memref<2x32x96xbf16, #tpu.memory_space<vmem>>, %arg3: memref<2x1x96xf32, #tpu.memory_space<vmem>>, %arg4: memref<2x32x32xbf16, #tpu.memory_space<vmem>>, %arg5: memref<2x1x32xf32, #tpu.memory_space<vmem>>, %arg6: memref<2x32x64xbf16, #tpu.memory_space<vmem>>, %arg7: memref<2x1x64xf32, #tpu.memory_space<vmem>>, %arg8: memref<2x64x32xbf16, #tpu.memory_space<vmem>>, %arg9: memref<2x1x32xf32, #tpu.memory_space<vmem>>, %arg10: memref<2x1x32xf32, #tpu.memory_space<vmem>>, %arg11: memref<2x1x32xf32, #tpu.memory_space<vmem>>, %arg12: memref<2x1x32xf32, #tpu.memory_space<vmem>>, %arg13: memref<2x1x32xf32, #tpu.memory_space<vmem>>, %arg14: memref<32x128xbf16, #tpu.memory_space<vmem>>, %arg15: memref<1x128xf32, #tpu.memory_space<vmem>>, %arg16: memref<1x2x128xf32, #tpu.memory_space<vmem>>) attributes {dimension_semantics = [#tpu.dimension_semantics<parallel>], iteration_bounds = array<i64: 1>, scalar_prefetch = 0 : i64, scratch_operands = 0 : i64, tpu.core_type = #tpu.core_type<tc>, window_params = [{transform_indices = @transform_0, window_bounds = array<i64: 16, 32>}, {pipeline_mode = #tpu.pipeline_mode<synchronous>, transform_indices = @transform_1, window_bounds = array<i64: 2, 32, 96>}, {pipeline_mode = #tpu.pipeline_mode<synchronous>, transform_indices = @transform_2, window_bounds = array<i64: 2, 1, 96>}, {pipeline_mode = #tpu.pipeline_mode<synchronous>, transform_indices = @transform_3, window_bounds = array<i64: 2, 32, 32>}, {pipeline_mode = #tpu.pipeline_mode<synchronous>, transform_indices = @transform_4, window_bounds = array<i64: 2, 1, 32>}, {pipeline_mode = #tpu.pipeline_mode<synchronous>, transform_indices = @transform_5, window_bounds = array<i64: 2, 32, 64>}, {pipeline_mode = #tpu.pipeline_mode<synchronous>, transform_indices = @transform_6, window_bounds = array<i64: 2, 1, 64>}, {pipeline_mode = #tpu.pipeline_mode<synchronous>, transform_indices = @transform_7, window_bounds = array<i64: 2, 64, 32>}, {pipeline_mode = #tpu.pipeline_mode<synchronous>, transform_indices = @transform_8, window_bounds = array<i64: 2, 1, 32>}, {pipeline_mode = #tpu.pipeline_mode<synchronous>, transform_indices = @transform_9, window_bounds = array<i64: 2, 1, 32>}, {pipeline_mode = #tpu.pipeline_mode<synchronous>, transform_indices = @transform_10, window_bounds = array<i64: 2, 1, 32>}, {pipeline_mode = #tpu.pipeline_mode<synchronous>, transform_indices = @transform_11, window_bounds = array<i64: 2, 1, 32>}, {pipeline_mode = #tpu.pipeline_mode<synchronous>, transform_indices = @transform_12, window_bounds = array<i64: 2, 1, 32>}, {pipeline_mode = #tpu.pipeline_mode<synchronous>, transform_indices = @transform_13, window_bounds = array<i64: 32, 128>}, {pipeline_mode = #tpu.pipeline_mode<synchronous>, transform_indices = @transform_14, window_bounds = array<i64: 1, 128>}, {transform_indices = @transform_15, window_bounds = array<i64: 1, 2, 128>}]} {
    %c0 = arith.constant 0 : index
    %c0_0 = arith.constant 0 : index
    %0 = vector.load %arg1[%c0, %c0_0] : memref<16x32xf32, #tpu.memory_space<vmem>>, vector<16x32xf32>
    %1 = arith.truncf %0 : vector<16x32xf32> to vector<16x32xbf16>
    %c0_1 = arith.constant 0 : index
    %c0_2 = arith.constant 0 : index
    %c0_3 = arith.constant 0 : index
    %2 = vector.load %arg2[%c0_1, %c0_2, %c0_3] : memref<2x32x96xbf16, #tpu.memory_space<vmem>>, vector<1x32x96xbf16>
    %3 = vector.shape_cast %2 : vector<1x32x96xbf16> to vector<32x96xbf16>
    %cst = arith.constant dense<0.000000e+00> : vector<16x96xf32>
    %4 = tpu.matmul %1, %3, %cst {dimension_numbers = #tpu.dot_dimension_numbers<[1], [0], [0], [1], [0, 0, 1, 1], [], []>} : vector<16x32xbf16>, vector<32x96xbf16>, vector<16x96xf32> -> vector<16x96xf32>
    %c0_4 = arith.constant 0 : index
    %c0_5 = arith.constant 0 : index
    %c0_6 = arith.constant 0 : index
    %5 = vector.load %arg3[%c0_4, %c0_5, %c0_6] : memref<2x1x96xf32, #tpu.memory_space<vmem>>, vector<1x1x96xf32>
    %6 = vector.shape_cast %5 : vector<1x1x96xf32> to vector<1x96xf32>
    %7 = vector.broadcast %6 : vector<1x96xf32> to vector<16x96xf32>
    %8 = arith.addf %4, %7 : vector<16x96xf32>
    %9 = vector.shape_cast %8 : vector<16x96xf32> to vector<2x8x96xf32>
    %10 = vector.extract_strided_slice %9 {offsets = [0, 0, 0], sizes = [2, 8, 8], strides = [1, 1, 1]} : vector<2x8x96xf32> to vector<2x8x8xf32>
    %11 = arith.truncf %10 : vector<2x8x8xf32> to vector<2x8x8xbf16>
    %12 = vector.extract_strided_slice %9 {offsets = [0, 0, 32], sizes = [2, 8, 8], strides = [1, 1, 1]} : vector<2x8x96xf32> to vector<2x8x8xf32>
    %13 = arith.truncf %12 : vector<2x8x8xf32> to vector<2x8x8xbf16>
    %14 = vector.extract_strided_slice %9 {offsets = [0, 0, 64], sizes = [2, 8, 8], strides = [1, 1, 1]} : vector<2x8x96xf32> to vector<2x8x8xf32>
    %15 = arith.truncf %14 : vector<2x8x8xf32> to vector<2x8x8xbf16>
    "tpu.trace_start"() <{level = 10 : i32, message = "bqd,bkd->bqk"}> : () -> ()
    %cst_7 = arith.constant dense<0.000000e+00> : vector<2x8x8xf32>
    %16 = tpu.matmul %11, %13, %cst_7 {dimension_numbers = #tpu.dot_dimension_numbers<[2], [2], [1], [1], [0, 0, 0, 1, 1, 1], [0], [0]>} : vector<2x8x8xbf16>, vector<2x8x8xbf16>, vector<2x8x8xf32> -> vector<2x8x8xf32>
    "tpu.trace_stop"() : () -> ()
    %cst_8 = arith.constant 0.353553385 : f32
    %17 = vector.broadcast %cst_8 : f32 to vector<2x8x8xf32>
    %18 = arith.mulf %16, %17 : vector<2x8x8xf32>
    %cst_9 = arith.constant dense<0xFF800000> : vector<2x8xf32>
    %19 = vector.multi_reduction <maximumf>, %18, %cst_9 [2] : vector<2x8x8xf32> to vector<2x8xf32>
    %20 = vector.shape_cast %19 : vector<2x8xf32> to vector<2x8x1xf32>
    %21 = vector.broadcast %20 : vector<2x8x1xf32> to vector<2x8x8xf32>
    %22 = arith.subf %18, %21 : vector<2x8x8xf32>
    %23 = math.exp %22 : vector<2x8x8xf32>
    %cst_10 = arith.constant dense<0.000000e+00> : vector<2x8xf32>
    %24 = vector.multi_reduction <add>, %23, %cst_10 [2] : vector<2x8x8xf32> to vector<2x8xf32>
    %25 = vector.shape_cast %24 : vector<2x8xf32> to vector<2x8x1xf32>
    %26 = tpu.reciprocal %25 {approx = true} : vector<2x8x1xf32> -> vector<2x8x1xf32>
    %27 = vector.broadcast %26 : vector<2x8x1xf32> to vector<2x8x8xf32>
    %28 = arith.mulf %23, %27 : vector<2x8x8xf32>
    %29 = arith.truncf %28 : vector<2x8x8xf32> to vector<2x8x8xbf16>
    "tpu.trace_start"() <{level = 10 : i32, message = "bqk,bkd->bqd"}> : () -> ()
    %cst_11 = arith.constant dense<0.000000e+00> : vector<2x8x8xf32>
    %30 = tpu.matmul %29, %15, %cst_11 {dimension_numbers = #tpu.dot_dimension_numbers<[2], [1], [1], [2], [0, 0, 0, 1, 1, 2], [0], [0]>} : vector<2x8x8xbf16>, vector<2x8x8xbf16>, vector<2x8x8xf32> -> vector<2x8x8xf32>
    "tpu.trace_stop"() : () -> ()
    %31 = vector.extract_strided_slice %9 {offsets = [0, 0, 8], sizes = [2, 8, 8], strides = [1, 1, 1]} : vector<2x8x96xf32> to vector<2x8x8xf32>
    %32 = arith.truncf %31 : vector<2x8x8xf32> to vector<2x8x8xbf16>
    %33 = vector.extract_strided_slice %9 {offsets = [0, 0, 40], sizes = [2, 8, 8], strides = [1, 1, 1]} : vector<2x8x96xf32> to vector<2x8x8xf32>
    %34 = arith.truncf %33 : vector<2x8x8xf32> to vector<2x8x8xbf16>
    %35 = vector.extract_strided_slice %9 {offsets = [0, 0, 72], sizes = [2, 8, 8], strides = [1, 1, 1]} : vector<2x8x96xf32> to vector<2x8x8xf32>
    %36 = arith.truncf %35 : vector<2x8x8xf32> to vector<2x8x8xbf16>
    "tpu.trace_start"() <{level = 10 : i32, message = "bqd,bkd->bqk"}> : () -> ()
    %cst_12 = arith.constant dense<0.000000e+00> : vector<2x8x8xf32>
    %37 = tpu.matmul %32, %34, %cst_12 {dimension_numbers = #tpu.dot_dimension_numbers<[2], [2], [1], [1], [0, 0, 0, 1, 1, 1], [0], [0]>} : vector<2x8x8xbf16>, vector<2x8x8xbf16>, vector<2x8x8xf32> -> vector<2x8x8xf32>
    "tpu.trace_stop"() : () -> ()
    %cst_13 = arith.constant 0.353553385 : f32
    %38 = vector.broadcast %cst_13 : f32 to vector<2x8x8xf32>
    %39 = arith.mulf %37, %38 : vector<2x8x8xf32>
    %cst_14 = arith.constant dense<0xFF800000> : vector<2x8xf32>
    %40 = vector.multi_reduction <maximumf>, %39, %cst_14 [2] : vector<2x8x8xf32> to vector<2x8xf32>
    %41 = vector.shape_cast %40 : vector<2x8xf32> to vector<2x8x1xf32>
    %42 = vector.broadcast %41 : vector<2x8x1xf32> to vector<2x8x8xf32>
    %43 = arith.subf %39, %42 : vector<2x8x8xf32>
    %44 = math.exp %43 : vector<2x8x8xf32>
    %cst_15 = arith.constant dense<0.000000e+00> : vector<2x8xf32>
    %45 = vector.multi_reduction <add>, %44, %cst_15 [2] : vector<2x8x8xf32> to vector<2x8xf32>
    %46 = vector.shape_cast %45 : vector<2x8xf32> to vector<2x8x1xf32>
    %47 = tpu.reciprocal %46 {approx = true} : vector<2x8x1xf32> -> vector<2x8x1xf32>
    %48 = vector.broadcast %47 : vector<2x8x1xf32> to vector<2x8x8xf32>
    %49 = arith.mulf %44, %48 : vector<2x8x8xf32>
    %50 = arith.truncf %49 : vector<2x8x8xf32> to vector<2x8x8xbf16>
    "tpu.trace_start"() <{level = 10 : i32, message = "bqk,bkd->bqd"}> : () -> ()
    %cst_16 = arith.constant dense<0.000000e+00> : vector<2x8x8xf32>
    %51 = tpu.matmul %50, %36, %cst_16 {dimension_numbers = #tpu.dot_dimension_numbers<[2], [1], [1], [2], [0, 0, 0, 1, 1, 2], [0], [0]>} : vector<2x8x8xbf16>, vector<2x8x8xbf16>, vector<2x8x8xf32> -> vector<2x8x8xf32>
    "tpu.trace_stop"() : () -> ()
    %52 = vector.extract_strided_slice %9 {offsets = [0, 0, 16], sizes = [2, 8, 8], strides = [1, 1, 1]} : vector<2x8x96xf32> to vector<2x8x8xf32>
    %53 = arith.truncf %52 : vector<2x8x8xf32> to vector<2x8x8xbf16>
    %54 = vector.extract_strided_slice %9 {offsets = [0, 0, 48], sizes = [2, 8, 8], strides = [1, 1, 1]} : vector<2x8x96xf32> to vector<2x8x8xf32>
    %55 = arith.truncf %54 : vector<2x8x8xf32> to vector<2x8x8xbf16>
    %56 = vector.extract_strided_slice %9 {offsets = [0, 0, 80], sizes = [2, 8, 8], strides = [1, 1, 1]} : vector<2x8x96xf32> to vector<2x8x8xf32>
    %57 = arith.truncf %56 : vector<2x8x8xf32> to vector<2x8x8xbf16>
    "tpu.trace_start"() <{level = 10 : i32, message = "bqd,bkd->bqk"}> : () -> ()
    %cst_17 = arith.constant dense<0.000000e+00> : vector<2x8x8xf32>
    %58 = tpu.matmul %53, %55, %cst_17 {dimension_numbers = #tpu.dot_dimension_numbers<[2], [2], [1], [1], [0, 0, 0, 1, 1, 1], [0], [0]>} : vector<2x8x8xbf16>, vector<2x8x8xbf16>, vector<2x8x8xf32> -> vector<2x8x8xf32>
    "tpu.trace_stop"() : () -> ()
    %cst_18 = arith.constant 0.353553385 : f32
    %59 = vector.broadcast %cst_18 : f32 to vector<2x8x8xf32>
    %60 = arith.mulf %58, %59 : vector<2x8x8xf32>
    %cst_19 = arith.constant dense<0xFF800000> : vector<2x8xf32>
    %61 = vector.multi_reduction <maximumf>, %60, %cst_19 [2] : vector<2x8x8xf32> to vector<2x8xf32>
    %62 = vector.shape_cast %61 : vector<2x8xf32> to vector<2x8x1xf32>
    %63 = vector.broadcast %62 : vector<2x8x1xf32> to vector<2x8x8xf32>
    %64 = arith.subf %60, %63 : vector<2x8x8xf32>
    %65 = math.exp %64 : vector<2x8x8xf32>
    %cst_20 = arith.constant dense<0.000000e+00> : vector<2x8xf32>
    %66 = vector.multi_reduction <add>, %65, %cst_20 [2] : vector<2x8x8xf32> to vector<2x8xf32>
    %67 = vector.shape_cast %66 : vector<2x8xf32> to vector<2x8x1xf32>
    %68 = tpu.reciprocal %67 {approx = true} : vector<2x8x1xf32> -> vector<2x8x1xf32>
    %69 = vector.broadcast %68 : vector<2x8x1xf32> to vector<2x8x8xf32>
    %70 = arith.mulf %65, %69 : vector<2x8x8xf32>
    %71 = arith.truncf %70 : vector<2x8x8xf32> to vector<2x8x8xbf16>
    "tpu.trace_start"() <{level = 10 : i32, message = "bqk,bkd->bqd"}> : () -> ()
    %cst_21 = arith.constant dense<0.000000e+00> : vector<2x8x8xf32>
    %72 = tpu.matmul %71, %57, %cst_21 {dimension_numbers = #tpu.dot_dimension_numbers<[2], [1], [1], [2], [0, 0, 0, 1, 1, 2], [0], [0]>} : vector<2x8x8xbf16>, vector<2x8x8xbf16>, vector<2x8x8xf32> -> vector<2x8x8xf32>
    "tpu.trace_stop"() : () -> ()
    %73 = vector.extract_strided_slice %9 {offsets = [0, 0, 24], sizes = [2, 8, 8], strides = [1, 1, 1]} : vector<2x8x96xf32> to vector<2x8x8xf32>
    %74 = arith.truncf %73 : vector<2x8x8xf32> to vector<2x8x8xbf16>
    %75 = vector.extract_strided_slice %9 {offsets = [0, 0, 56], sizes = [2, 8, 8], strides = [1, 1, 1]} : vector<2x8x96xf32> to vector<2x8x8xf32>
    %76 = arith.truncf %75 : vector<2x8x8xf32> to vector<2x8x8xbf16>
    %77 = vector.extract_strided_slice %9 {offsets = [0, 0, 88], sizes = [2, 8, 8], strides = [1, 1, 1]} : vector<2x8x96xf32> to vector<2x8x8xf32>
    %78 = arith.truncf %77 : vector<2x8x8xf32> to vector<2x8x8xbf16>
    "tpu.trace_start"() <{level = 10 : i32, message = "bqd,bkd->bqk"}> : () -> ()
    %cst_22 = arith.constant dense<0.000000e+00> : vector<2x8x8xf32>
    %79 = tpu.matmul %74, %76, %cst_22 {dimension_numbers = #tpu.dot_dimension_numbers<[2], [2], [1], [1], [0, 0, 0, 1, 1, 1], [0], [0]>} : vector<2x8x8xbf16>, vector<2x8x8xbf16>, vector<2x8x8xf32> -> vector<2x8x8xf32>
    "tpu.trace_stop"() : () -> ()
    %cst_23 = arith.constant 0.353553385 : f32
    %80 = vector.broadcast %cst_23 : f32 to vector<2x8x8xf32>
    %81 = arith.mulf %79, %80 : vector<2x8x8xf32>
    %cst_24 = arith.constant dense<0xFF800000> : vector<2x8xf32>
    %82 = vector.multi_reduction <maximumf>, %81, %cst_24 [2] : vector<2x8x8xf32> to vector<2x8xf32>
    %83 = vector.shape_cast %82 : vector<2x8xf32> to vector<2x8x1xf32>
    %84 = vector.broadcast %83 : vector<2x8x1xf32> to vector<2x8x8xf32>
    %85 = arith.subf %81, %84 : vector<2x8x8xf32>
    %86 = math.exp %85 : vector<2x8x8xf32>
    %cst_25 = arith.constant dense<0.000000e+00> : vector<2x8xf32>
    %87 = vector.multi_reduction <add>, %86, %cst_25 [2] : vector<2x8x8xf32> to vector<2x8xf32>
    %88 = vector.shape_cast %87 : vector<2x8xf32> to vector<2x8x1xf32>
    %89 = tpu.reciprocal %88 {approx = true} : vector<2x8x1xf32> -> vector<2x8x1xf32>
    %90 = vector.broadcast %89 : vector<2x8x1xf32> to vector<2x8x8xf32>
    %91 = arith.mulf %86, %90 : vector<2x8x8xf32>
    %92 = arith.truncf %91 : vector<2x8x8xf32> to vector<2x8x8xbf16>
    "tpu.trace_start"() <{level = 10 : i32, message = "bqk,bkd->bqd"}> : () -> ()
    %cst_26 = arith.constant dense<0.000000e+00> : vector<2x8x8xf32>
    %93 = tpu.matmul %92, %78, %cst_26 {dimension_numbers = #tpu.dot_dimension_numbers<[2], [1], [1], [2], [0, 0, 0, 1, 1, 2], [0], [0]>} : vector<2x8x8xbf16>, vector<2x8x8xbf16>, vector<2x8x8xf32> -> vector<2x8x8xf32>
    "tpu.trace_stop"() : () -> ()
    %94 = tpu.concatenate %30, %51, %72, %93 in 2 : vector<2x8x8xf32>, vector<2x8x8xf32>, vector<2x8x8xf32>, vector<2x8x8xf32> -> vector<2x8x32xf32>
    %95 = vector.shape_cast %94 : vector<2x8x32xf32> to vector<16x32xf32>
    %96 = arith.truncf %95 : vector<16x32xf32> to vector<16x32xbf16>
    %c0_27 = arith.constant 0 : index
    %c0_28 = arith.constant 0 : index
    %c0_29 = arith.constant 0 : index
    %97 = vector.load %arg4[%c0_27, %c0_28, %c0_29] : memref<2x32x32xbf16, #tpu.memory_space<vmem>>, vector<1x32x32xbf16>
    %98 = vector.shape_cast %97 : vector<1x32x32xbf16> to vector<32x32xbf16>
    %cst_30 = arith.constant dense<0.000000e+00> : vector<16x32xf32>
    %99 = tpu.matmul %96, %98, %cst_30 {dimension_numbers = #tpu.dot_dimension_numbers<[1], [0], [0], [1], [0, 0, 1, 1], [], []>} : vector<16x32xbf16>, vector<32x32xbf16>, vector<16x32xf32> -> vector<16x32xf32>
    %c0_31 = arith.constant 0 : index
    %c0_32 = arith.constant 0 : index
    %c0_33 = arith.constant 0 : index
    %100 = vector.load %arg5[%c0_31, %c0_32, %c0_33] : memref<2x1x32xf32, #tpu.memory_space<vmem>>, vector<1x1x32xf32>
    %101 = vector.shape_cast %100 : vector<1x1x32xf32> to vector<1x32xf32>
    %102 = vector.broadcast %101 : vector<1x32xf32> to vector<16x32xf32>
    %103 = arith.addf %99, %102 : vector<16x32xf32>
    %104 = arith.addf %0, %103 : vector<16x32xf32>
    %c0_34 = arith.constant 0 : index
    %c0_35 = arith.constant 0 : index
    %c0_36 = arith.constant 0 : index
    %105 = vector.load %arg10[%c0_34, %c0_35, %c0_36] : memref<2x1x32xf32, #tpu.memory_space<vmem>>, vector<1x1x32xf32>
    %106 = vector.shape_cast %105 : vector<1x1x32xf32> to vector<1x32xf32>
    %c0_37 = arith.constant 0 : index
    %c0_38 = arith.constant 0 : index
    %c0_39 = arith.constant 0 : index
    %107 = vector.load %arg11[%c0_37, %c0_38, %c0_39] : memref<2x1x32xf32, #tpu.memory_space<vmem>>, vector<1x1x32xf32>
    %108 = vector.shape_cast %107 : vector<1x1x32xf32> to vector<1x32xf32>
    %cst_40 = arith.constant dense<0.000000e+00> : vector<16xf32>
    %109 = vector.multi_reduction <add>, %104, %cst_40 [1] : vector<16x32xf32> to vector<16xf32>
    %110 = vector.shape_cast %109 : vector<16xf32> to vector<16x1xf32>
    %cst_41 = arith.constant 3.200000e+01 : f32
    %111 = vector.broadcast %cst_41 : f32 to vector<16x1xf32>
    %112 = arith.divf %110, %111 : vector<16x1xf32>
    %113 = vector.broadcast %112 : vector<16x1xf32> to vector<16x32xf32>
    %114 = arith.subf %104, %113 : vector<16x32xf32>
    %115 = arith.mulf %114, %114 : vector<16x32xf32>
    %cst_42 = arith.constant dense<0.000000e+00> : vector<16xf32>
    %116 = vector.multi_reduction <add>, %115, %cst_42 [1] : vector<16x32xf32> to vector<16xf32>
    %117 = vector.shape_cast %116 : vector<16xf32> to vector<16x1xf32>
    %cst_43 = arith.constant 3.200000e+01 : f32
    %118 = vector.broadcast %cst_43 : f32 to vector<16x1xf32>
    %119 = arith.divf %117, %118 : vector<16x1xf32>
    %120 = vector.broadcast %112 : vector<16x1xf32> to vector<16x32xf32>
    %121 = arith.subf %104, %120 : vector<16x32xf32>
    %cst_44 = arith.constant 9.99999974E-6 : f32
    %122 = vector.broadcast %cst_44 : f32 to vector<16x1xf32>
    %123 = arith.addf %119, %122 : vector<16x1xf32>
    %124 = math.rsqrt %123 : vector<16x1xf32>
    %125 = vector.broadcast %124 : vector<16x1xf32> to vector<16x32xf32>
    %126 = arith.mulf %121, %125 : vector<16x32xf32>
    %127 = vector.broadcast %106 : vector<1x32xf32> to vector<16x32xf32>
    %128 = arith.mulf %126, %127 : vector<16x32xf32>
    %129 = vector.broadcast %108 : vector<1x32xf32> to vector<16x32xf32>
    %130 = arith.addf %128, %129 : vector<16x32xf32>
    %131 = arith.truncf %130 : vector<16x32xf32> to vector<16x32xbf16>
    %c0_45 = arith.constant 0 : index
    %c0_46 = arith.constant 0 : index
    %c0_47 = arith.constant 0 : index
    %132 = vector.load %arg6[%c0_45, %c0_46, %c0_47] : memref<2x32x64xbf16, #tpu.memory_space<vmem>>, vector<1x32x64xbf16>
    %133 = vector.shape_cast %132 : vector<1x32x64xbf16> to vector<32x64xbf16>
    %cst_48 = arith.constant dense<0.000000e+00> : vector<16x64xf32>
    %134 = tpu.matmul %131, %133, %cst_48 {dimension_numbers = #tpu.dot_dimension_numbers<[1], [0], [0], [1], [0, 0, 1, 1], [], []>} : vector<16x32xbf16>, vector<32x64xbf16>, vector<16x64xf32> -> vector<16x64xf32>
    %c0_49 = arith.constant 0 : index
    %c0_50 = arith.constant 0 : index
    %c0_51 = arith.constant 0 : index
    %135 = vector.load %arg7[%c0_49, %c0_50, %c0_51] : memref<2x1x64xf32, #tpu.memory_space<vmem>>, vector<1x1x64xf32>
    %136 = vector.shape_cast %135 : vector<1x1x64xf32> to vector<1x64xf32>
    %137 = vector.broadcast %136 : vector<1x64xf32> to vector<16x64xf32>
    %138 = arith.addf %134, %137 : vector<16x64xf32>
    %cst_52 = arith.constant 0.000000e+00 : f32
    %139 = vector.broadcast %cst_52 : f32 to vector<16x64xf32>
    %140 = arith.maximumf %138, %139 : vector<16x64xf32>
    %141 = arith.truncf %140 : vector<16x64xf32> to vector<16x64xbf16>
    %c0_53 = arith.constant 0 : index
    %c0_54 = arith.constant 0 : index
    %c0_55 = arith.constant 0 : index
    %142 = vector.load %arg8[%c0_53, %c0_54, %c0_55] : memref<2x64x32xbf16, #tpu.memory_space<vmem>>, vector<1x64x32xbf16>
    %143 = vector.shape_cast %142 : vector<1x64x32xbf16> to vector<64x32xbf16>
    %cst_56 = arith.constant dense<0.000000e+00> : vector<16x32xf32>
    %144 = tpu.matmul %141, %143, %cst_56 {dimension_numbers = #tpu.dot_dimension_numbers<[1], [0], [0], [1], [0, 0, 1, 1], [], []>} : vector<16x64xbf16>, vector<64x32xbf16>, vector<16x32xf32> -> vector<16x32xf32>
    %c0_57 = arith.constant 0 : index
    %c0_58 = arith.constant 0 : index
    %c0_59 = arith.constant 0 : index
    %145 = vector.load %arg9[%c0_57, %c0_58, %c0_59] : memref<2x1x32xf32, #tpu.memory_space<vmem>>, vector<1x1x32xf32>
    %146 = vector.shape_cast %145 : vector<1x1x32xf32> to vector<1x32xf32>
    %147 = vector.broadcast %146 : vector<1x32xf32> to vector<16x32xf32>
    %148 = arith.addf %144, %147 : vector<16x32xf32>
    %149 = arith.addf %130, %148 : vector<16x32xf32>
    %c0_60 = arith.constant 0 : index
    %c0_61 = arith.constant 0 : index
    %c0_62 = arith.constant 0 : index
    %150 = vector.load %arg12[%c0_60, %c0_61, %c0_62] : memref<2x1x32xf32, #tpu.memory_space<vmem>>, vector<1x1x32xf32>
    %151 = vector.shape_cast %150 : vector<1x1x32xf32> to vector<1x32xf32>
    %c0_63 = arith.constant 0 : index
    %c0_64 = arith.constant 0 : index
    %c0_65 = arith.constant 0 : index
    %152 = vector.load %arg13[%c0_63, %c0_64, %c0_65] : memref<2x1x32xf32, #tpu.memory_space<vmem>>, vector<1x1x32xf32>
    %153 = vector.shape_cast %152 : vector<1x1x32xf32> to vector<1x32xf32>
    %cst_66 = arith.constant dense<0.000000e+00> : vector<16xf32>
    %154 = vector.multi_reduction <add>, %149, %cst_66 [1] : vector<16x32xf32> to vector<16xf32>
    %155 = vector.shape_cast %154 : vector<16xf32> to vector<16x1xf32>
    %cst_67 = arith.constant 3.200000e+01 : f32
    %156 = vector.broadcast %cst_67 : f32 to vector<16x1xf32>
    %157 = arith.divf %155, %156 : vector<16x1xf32>
    %158 = vector.broadcast %157 : vector<16x1xf32> to vector<16x32xf32>
    %159 = arith.subf %149, %158 : vector<16x32xf32>
    %160 = arith.mulf %159, %159 : vector<16x32xf32>
    %cst_68 = arith.constant dense<0.000000e+00> : vector<16xf32>
    %161 = vector.multi_reduction <add>, %160, %cst_68 [1] : vector<16x32xf32> to vector<16xf32>
    %162 = vector.shape_cast %161 : vector<16xf32> to vector<16x1xf32>
    %cst_69 = arith.constant 3.200000e+01 : f32
    %163 = vector.broadcast %cst_69 : f32 to vector<16x1xf32>
    %164 = arith.divf %162, %163 : vector<16x1xf32>
    %165 = vector.broadcast %157 : vector<16x1xf32> to vector<16x32xf32>
    %166 = arith.subf %149, %165 : vector<16x32xf32>
    %cst_70 = arith.constant 9.99999974E-6 : f32
    %167 = vector.broadcast %cst_70 : f32 to vector<16x1xf32>
    %168 = arith.addf %164, %167 : vector<16x1xf32>
    %169 = math.rsqrt %168 : vector<16x1xf32>
    %170 = vector.broadcast %169 : vector<16x1xf32> to vector<16x32xf32>
    %171 = arith.mulf %166, %170 : vector<16x32xf32>
    %172 = vector.broadcast %151 : vector<1x32xf32> to vector<16x32xf32>
    %173 = arith.mulf %171, %172 : vector<16x32xf32>
    %174 = vector.broadcast %153 : vector<1x32xf32> to vector<16x32xf32>
    %175 = arith.addf %173, %174 : vector<16x32xf32>
    %176 = arith.truncf %175 : vector<16x32xf32> to vector<16x32xbf16>
    %c1 = arith.constant 1 : index
    %c0_71 = arith.constant 0 : index
    %c0_72 = arith.constant 0 : index
    %177 = vector.load %arg2[%c1, %c0_71, %c0_72] : memref<2x32x96xbf16, #tpu.memory_space<vmem>>, vector<1x32x96xbf16>
    %178 = vector.shape_cast %177 : vector<1x32x96xbf16> to vector<32x96xbf16>
    %cst_73 = arith.constant dense<0.000000e+00> : vector<16x96xf32>
    %179 = tpu.matmul %176, %178, %cst_73 {dimension_numbers = #tpu.dot_dimension_numbers<[1], [0], [0], [1], [0, 0, 1, 1], [], []>} : vector<16x32xbf16>, vector<32x96xbf16>, vector<16x96xf32> -> vector<16x96xf32>
    %c1_74 = arith.constant 1 : index
    %c0_75 = arith.constant 0 : index
    %c0_76 = arith.constant 0 : index
    %180 = vector.load %arg3[%c1_74, %c0_75, %c0_76] : memref<2x1x96xf32, #tpu.memory_space<vmem>>, vector<1x1x96xf32>
    %181 = vector.shape_cast %180 : vector<1x1x96xf32> to vector<1x96xf32>
    %182 = vector.broadcast %181 : vector<1x96xf32> to vector<16x96xf32>
    %183 = arith.addf %179, %182 : vector<16x96xf32>
    %184 = vector.shape_cast %183 : vector<16x96xf32> to vector<2x8x96xf32>
    %185 = vector.extract_strided_slice %184 {offsets = [0, 0, 0], sizes = [2, 8, 8], strides = [1, 1, 1]} : vector<2x8x96xf32> to vector<2x8x8xf32>
    %186 = arith.truncf %185 : vector<2x8x8xf32> to vector<2x8x8xbf16>
    %187 = vector.extract_strided_slice %184 {offsets = [0, 0, 32], sizes = [2, 8, 8], strides = [1, 1, 1]} : vector<2x8x96xf32> to vector<2x8x8xf32>
    %188 = arith.truncf %187 : vector<2x8x8xf32> to vector<2x8x8xbf16>
    %189 = vector.extract_strided_slice %184 {offsets = [0, 0, 64], sizes = [2, 8, 8], strides = [1, 1, 1]} : vector<2x8x96xf32> to vector<2x8x8xf32>
    %190 = arith.truncf %189 : vector<2x8x8xf32> to vector<2x8x8xbf16>
    "tpu.trace_start"() <{level = 10 : i32, message = "bqd,bkd->bqk"}> : () -> ()
    %cst_77 = arith.constant dense<0.000000e+00> : vector<2x8x8xf32>
    %191 = tpu.matmul %186, %188, %cst_77 {dimension_numbers = #tpu.dot_dimension_numbers<[2], [2], [1], [1], [0, 0, 0, 1, 1, 1], [0], [0]>} : vector<2x8x8xbf16>, vector<2x8x8xbf16>, vector<2x8x8xf32> -> vector<2x8x8xf32>
    "tpu.trace_stop"() : () -> ()
    %cst_78 = arith.constant 0.353553385 : f32
    %192 = vector.broadcast %cst_78 : f32 to vector<2x8x8xf32>
    %193 = arith.mulf %191, %192 : vector<2x8x8xf32>
    %cst_79 = arith.constant dense<0xFF800000> : vector<2x8xf32>
    %194 = vector.multi_reduction <maximumf>, %193, %cst_79 [2] : vector<2x8x8xf32> to vector<2x8xf32>
    %195 = vector.shape_cast %194 : vector<2x8xf32> to vector<2x8x1xf32>
    %196 = vector.broadcast %195 : vector<2x8x1xf32> to vector<2x8x8xf32>
    %197 = arith.subf %193, %196 : vector<2x8x8xf32>
    %198 = math.exp %197 : vector<2x8x8xf32>
    %cst_80 = arith.constant dense<0.000000e+00> : vector<2x8xf32>
    %199 = vector.multi_reduction <add>, %198, %cst_80 [2] : vector<2x8x8xf32> to vector<2x8xf32>
    %200 = vector.shape_cast %199 : vector<2x8xf32> to vector<2x8x1xf32>
    %201 = tpu.reciprocal %200 {approx = true} : vector<2x8x1xf32> -> vector<2x8x1xf32>
    %202 = vector.broadcast %201 : vector<2x8x1xf32> to vector<2x8x8xf32>
    %203 = arith.mulf %198, %202 : vector<2x8x8xf32>
    %204 = arith.truncf %203 : vector<2x8x8xf32> to vector<2x8x8xbf16>
    "tpu.trace_start"() <{level = 10 : i32, message = "bqk,bkd->bqd"}> : () -> ()
    %cst_81 = arith.constant dense<0.000000e+00> : vector<2x8x8xf32>
    %205 = tpu.matmul %204, %190, %cst_81 {dimension_numbers = #tpu.dot_dimension_numbers<[2], [1], [1], [2], [0, 0, 0, 1, 1, 2], [0], [0]>} : vector<2x8x8xbf16>, vector<2x8x8xbf16>, vector<2x8x8xf32> -> vector<2x8x8xf32>
    "tpu.trace_stop"() : () -> ()
    %206 = vector.extract_strided_slice %184 {offsets = [0, 0, 8], sizes = [2, 8, 8], strides = [1, 1, 1]} : vector<2x8x96xf32> to vector<2x8x8xf32>
    %207 = arith.truncf %206 : vector<2x8x8xf32> to vector<2x8x8xbf16>
    %208 = vector.extract_strided_slice %184 {offsets = [0, 0, 40], sizes = [2, 8, 8], strides = [1, 1, 1]} : vector<2x8x96xf32> to vector<2x8x8xf32>
    %209 = arith.truncf %208 : vector<2x8x8xf32> to vector<2x8x8xbf16>
    %210 = vector.extract_strided_slice %184 {offsets = [0, 0, 72], sizes = [2, 8, 8], strides = [1, 1, 1]} : vector<2x8x96xf32> to vector<2x8x8xf32>
    %211 = arith.truncf %210 : vector<2x8x8xf32> to vector<2x8x8xbf16>
    "tpu.trace_start"() <{level = 10 : i32, message = "bqd,bkd->bqk"}> : () -> ()
    %cst_82 = arith.constant dense<0.000000e+00> : vector<2x8x8xf32>
    %212 = tpu.matmul %207, %209, %cst_82 {dimension_numbers = #tpu.dot_dimension_numbers<[2], [2], [1], [1], [0, 0, 0, 1, 1, 1], [0], [0]>} : vector<2x8x8xbf16>, vector<2x8x8xbf16>, vector<2x8x8xf32> -> vector<2x8x8xf32>
    "tpu.trace_stop"() : () -> ()
    %cst_83 = arith.constant 0.353553385 : f32
    %213 = vector.broadcast %cst_83 : f32 to vector<2x8x8xf32>
    %214 = arith.mulf %212, %213 : vector<2x8x8xf32>
    %cst_84 = arith.constant dense<0xFF800000> : vector<2x8xf32>
    %215 = vector.multi_reduction <maximumf>, %214, %cst_84 [2] : vector<2x8x8xf32> to vector<2x8xf32>
    %216 = vector.shape_cast %215 : vector<2x8xf32> to vector<2x8x1xf32>
    %217 = vector.broadcast %216 : vector<2x8x1xf32> to vector<2x8x8xf32>
    %218 = arith.subf %214, %217 : vector<2x8x8xf32>
    %219 = math.exp %218 : vector<2x8x8xf32>
    %cst_85 = arith.constant dense<0.000000e+00> : vector<2x8xf32>
    %220 = vector.multi_reduction <add>, %219, %cst_85 [2] : vector<2x8x8xf32> to vector<2x8xf32>
    %221 = vector.shape_cast %220 : vector<2x8xf32> to vector<2x8x1xf32>
    %222 = tpu.reciprocal %221 {approx = true} : vector<2x8x1xf32> -> vector<2x8x1xf32>
    %223 = vector.broadcast %222 : vector<2x8x1xf32> to vector<2x8x8xf32>
    %224 = arith.mulf %219, %223 : vector<2x8x8xf32>
    %225 = arith.truncf %224 : vector<2x8x8xf32> to vector<2x8x8xbf16>
    "tpu.trace_start"() <{level = 10 : i32, message = "bqk,bkd->bqd"}> : () -> ()
    %cst_86 = arith.constant dense<0.000000e+00> : vector<2x8x8xf32>
    %226 = tpu.matmul %225, %211, %cst_86 {dimension_numbers = #tpu.dot_dimension_numbers<[2], [1], [1], [2], [0, 0, 0, 1, 1, 2], [0], [0]>} : vector<2x8x8xbf16>, vector<2x8x8xbf16>, vector<2x8x8xf32> -> vector<2x8x8xf32>
    "tpu.trace_stop"() : () -> ()
    %227 = vector.extract_strided_slice %184 {offsets = [0, 0, 16], sizes = [2, 8, 8], strides = [1, 1, 1]} : vector<2x8x96xf32> to vector<2x8x8xf32>
    %228 = arith.truncf %227 : vector<2x8x8xf32> to vector<2x8x8xbf16>
    %229 = vector.extract_strided_slice %184 {offsets = [0, 0, 48], sizes = [2, 8, 8], strides = [1, 1, 1]} : vector<2x8x96xf32> to vector<2x8x8xf32>
    %230 = arith.truncf %229 : vector<2x8x8xf32> to vector<2x8x8xbf16>
    %231 = vector.extract_strided_slice %184 {offsets = [0, 0, 80], sizes = [2, 8, 8], strides = [1, 1, 1]} : vector<2x8x96xf32> to vector<2x8x8xf32>
    %232 = arith.truncf %231 : vector<2x8x8xf32> to vector<2x8x8xbf16>
    "tpu.trace_start"() <{level = 10 : i32, message = "bqd,bkd->bqk"}> : () -> ()
    %cst_87 = arith.constant dense<0.000000e+00> : vector<2x8x8xf32>
    %233 = tpu.matmul %228, %230, %cst_87 {dimension_numbers = #tpu.dot_dimension_numbers<[2], [2], [1], [1], [0, 0, 0, 1, 1, 1], [0], [0]>} : vector<2x8x8xbf16>, vector<2x8x8xbf16>, vector<2x8x8xf32> -> vector<2x8x8xf32>
    "tpu.trace_stop"() : () -> ()
    %cst_88 = arith.constant 0.353553385 : f32
    %234 = vector.broadcast %cst_88 : f32 to vector<2x8x8xf32>
    %235 = arith.mulf %233, %234 : vector<2x8x8xf32>
    %cst_89 = arith.constant dense<0xFF800000> : vector<2x8xf32>
    %236 = vector.multi_reduction <maximumf>, %235, %cst_89 [2] : vector<2x8x8xf32> to vector<2x8xf32>
    %237 = vector.shape_cast %236 : vector<2x8xf32> to vector<2x8x1xf32>
    %238 = vector.broadcast %237 : vector<2x8x1xf32> to vector<2x8x8xf32>
    %239 = arith.subf %235, %238 : vector<2x8x8xf32>
    %240 = math.exp %239 : vector<2x8x8xf32>
    %cst_90 = arith.constant dense<0.000000e+00> : vector<2x8xf32>
    %241 = vector.multi_reduction <add>, %240, %cst_90 [2] : vector<2x8x8xf32> to vector<2x8xf32>
    %242 = vector.shape_cast %241 : vector<2x8xf32> to vector<2x8x1xf32>
    %243 = tpu.reciprocal %242 {approx = true} : vector<2x8x1xf32> -> vector<2x8x1xf32>
    %244 = vector.broadcast %243 : vector<2x8x1xf32> to vector<2x8x8xf32>
    %245 = arith.mulf %240, %244 : vector<2x8x8xf32>
    %246 = arith.truncf %245 : vector<2x8x8xf32> to vector<2x8x8xbf16>
    "tpu.trace_start"() <{level = 10 : i32, message = "bqk,bkd->bqd"}> : () -> ()
    %cst_91 = arith.constant dense<0.000000e+00> : vector<2x8x8xf32>
    %247 = tpu.matmul %246, %232, %cst_91 {dimension_numbers = #tpu.dot_dimension_numbers<[2], [1], [1], [2], [0, 0, 0, 1, 1, 2], [0], [0]>} : vector<2x8x8xbf16>, vector<2x8x8xbf16>, vector<2x8x8xf32> -> vector<2x8x8xf32>
    "tpu.trace_stop"() : () -> ()
    %248 = vector.extract_strided_slice %184 {offsets = [0, 0, 24], sizes = [2, 8, 8], strides = [1, 1, 1]} : vector<2x8x96xf32> to vector<2x8x8xf32>
    %249 = arith.truncf %248 : vector<2x8x8xf32> to vector<2x8x8xbf16>
    %250 = vector.extract_strided_slice %184 {offsets = [0, 0, 56], sizes = [2, 8, 8], strides = [1, 1, 1]} : vector<2x8x96xf32> to vector<2x8x8xf32>
    %251 = arith.truncf %250 : vector<2x8x8xf32> to vector<2x8x8xbf16>
    %252 = vector.extract_strided_slice %184 {offsets = [0, 0, 88], sizes = [2, 8, 8], strides = [1, 1, 1]} : vector<2x8x96xf32> to vector<2x8x8xf32>
    %253 = arith.truncf %252 : vector<2x8x8xf32> to vector<2x8x8xbf16>
    "tpu.trace_start"() <{level = 10 : i32, message = "bqd,bkd->bqk"}> : () -> ()
    %cst_92 = arith.constant dense<0.000000e+00> : vector<2x8x8xf32>
    %254 = tpu.matmul %249, %251, %cst_92 {dimension_numbers = #tpu.dot_dimension_numbers<[2], [2], [1], [1], [0, 0, 0, 1, 1, 1], [0], [0]>} : vector<2x8x8xbf16>, vector<2x8x8xbf16>, vector<2x8x8xf32> -> vector<2x8x8xf32>
    "tpu.trace_stop"() : () -> ()
    %cst_93 = arith.constant 0.353553385 : f32
    %255 = vector.broadcast %cst_93 : f32 to vector<2x8x8xf32>
    %256 = arith.mulf %254, %255 : vector<2x8x8xf32>
    %cst_94 = arith.constant dense<0xFF800000> : vector<2x8xf32>
    %257 = vector.multi_reduction <maximumf>, %256, %cst_94 [2] : vector<2x8x8xf32> to vector<2x8xf32>
    %258 = vector.shape_cast %257 : vector<2x8xf32> to vector<2x8x1xf32>
    %259 = vector.broadcast %258 : vector<2x8x1xf32> to vector<2x8x8xf32>
    %260 = arith.subf %256, %259 : vector<2x8x8xf32>
    %261 = math.exp %260 : vector<2x8x8xf32>
    %cst_95 = arith.constant dense<0.000000e+00> : vector<2x8xf32>
    %262 = vector.multi_reduction <add>, %261, %cst_95 [2] : vector<2x8x8xf32> to vector<2x8xf32>
    %263 = vector.shape_cast %262 : vector<2x8xf32> to vector<2x8x1xf32>
    %264 = tpu.reciprocal %263 {approx = true} : vector<2x8x1xf32> -> vector<2x8x1xf32>
    %265 = vector.broadcast %264 : vector<2x8x1xf32> to vector<2x8x8xf32>
    %266 = arith.mulf %261, %265 : vector<2x8x8xf32>
    %267 = arith.truncf %266 : vector<2x8x8xf32> to vector<2x8x8xbf16>
    "tpu.trace_start"() <{level = 10 : i32, message = "bqk,bkd->bqd"}> : () -> ()
    %cst_96 = arith.constant dense<0.000000e+00> : vector<2x8x8xf32>
    %268 = tpu.matmul %267, %253, %cst_96 {dimension_numbers = #tpu.dot_dimension_numbers<[2], [1], [1], [2], [0, 0, 0, 1, 1, 2], [0], [0]>} : vector<2x8x8xbf16>, vector<2x8x8xbf16>, vector<2x8x8xf32> -> vector<2x8x8xf32>
    "tpu.trace_stop"() : () -> ()
    %269 = tpu.concatenate %205, %226, %247, %268 in 2 : vector<2x8x8xf32>, vector<2x8x8xf32>, vector<2x8x8xf32>, vector<2x8x8xf32> -> vector<2x8x32xf32>
    %270 = vector.shape_cast %269 : vector<2x8x32xf32> to vector<16x32xf32>
    %271 = arith.truncf %270 : vector<16x32xf32> to vector<16x32xbf16>
    %c1_97 = arith.constant 1 : index
    %c0_98 = arith.constant 0 : index
    %c0_99 = arith.constant 0 : index
    %272 = vector.load %arg4[%c1_97, %c0_98, %c0_99] : memref<2x32x32xbf16, #tpu.memory_space<vmem>>, vector<1x32x32xbf16>
    %273 = vector.shape_cast %272 : vector<1x32x32xbf16> to vector<32x32xbf16>
    %cst_100 = arith.constant dense<0.000000e+00> : vector<16x32xf32>
    %274 = tpu.matmul %271, %273, %cst_100 {dimension_numbers = #tpu.dot_dimension_numbers<[1], [0], [0], [1], [0, 0, 1, 1], [], []>} : vector<16x32xbf16>, vector<32x32xbf16>, vector<16x32xf32> -> vector<16x32xf32>
    %c1_101 = arith.constant 1 : index
    %c0_102 = arith.constant 0 : index
    %c0_103 = arith.constant 0 : index
    %275 = vector.load %arg5[%c1_101, %c0_102, %c0_103] : memref<2x1x32xf32, #tpu.memory_space<vmem>>, vector<1x1x32xf32>
    %276 = vector.shape_cast %275 : vector<1x1x32xf32> to vector<1x32xf32>
    %277 = vector.broadcast %276 : vector<1x32xf32> to vector<16x32xf32>
    %278 = arith.addf %274, %277 : vector<16x32xf32>
    %279 = arith.addf %175, %278 : vector<16x32xf32>
    %c1_104 = arith.constant 1 : index
    %c0_105 = arith.constant 0 : index
    %c0_106 = arith.constant 0 : index
    %280 = vector.load %arg10[%c1_104, %c0_105, %c0_106] : memref<2x1x32xf32, #tpu.memory_space<vmem>>, vector<1x1x32xf32>
    %281 = vector.shape_cast %280 : vector<1x1x32xf32> to vector<1x32xf32>
    %c1_107 = arith.constant 1 : index
    %c0_108 = arith.constant 0 : index
    %c0_109 = arith.constant 0 : index
    %282 = vector.load %arg11[%c1_107, %c0_108, %c0_109] : memref<2x1x32xf32, #tpu.memory_space<vmem>>, vector<1x1x32xf32>
    %283 = vector.shape_cast %282 : vector<1x1x32xf32> to vector<1x32xf32>
    %cst_110 = arith.constant dense<0.000000e+00> : vector<16xf32>
    %284 = vector.multi_reduction <add>, %279, %cst_110 [1] : vector<16x32xf32> to vector<16xf32>
    %285 = vector.shape_cast %284 : vector<16xf32> to vector<16x1xf32>
    %cst_111 = arith.constant 3.200000e+01 : f32
    %286 = vector.broadcast %cst_111 : f32 to vector<16x1xf32>
    %287 = arith.divf %285, %286 : vector<16x1xf32>
    %288 = vector.broadcast %287 : vector<16x1xf32> to vector<16x32xf32>
    %289 = arith.subf %279, %288 : vector<16x32xf32>
    %290 = arith.mulf %289, %289 : vector<16x32xf32>
    %cst_112 = arith.constant dense<0.000000e+00> : vector<16xf32>
    %291 = vector.multi_reduction <add>, %290, %cst_112 [1] : vector<16x32xf32> to vector<16xf32>
    %292 = vector.shape_cast %291 : vector<16xf32> to vector<16x1xf32>
    %cst_113 = arith.constant 3.200000e+01 : f32
    %293 = vector.broadcast %cst_113 : f32 to vector<16x1xf32>
    %294 = arith.divf %292, %293 : vector<16x1xf32>
    %295 = vector.broadcast %287 : vector<16x1xf32> to vector<16x32xf32>
    %296 = arith.subf %279, %295 : vector<16x32xf32>
    %cst_114 = arith.constant 9.99999974E-6 : f32
    %297 = vector.broadcast %cst_114 : f32 to vector<16x1xf32>
    %298 = arith.addf %294, %297 : vector<16x1xf32>
    %299 = math.rsqrt %298 : vector<16x1xf32>
    %300 = vector.broadcast %299 : vector<16x1xf32> to vector<16x32xf32>
    %301 = arith.mulf %296, %300 : vector<16x32xf32>
    %302 = vector.broadcast %281 : vector<1x32xf32> to vector<16x32xf32>
    %303 = arith.mulf %301, %302 : vector<16x32xf32>
    %304 = vector.broadcast %283 : vector<1x32xf32> to vector<16x32xf32>
    %305 = arith.addf %303, %304 : vector<16x32xf32>
    %306 = arith.truncf %305 : vector<16x32xf32> to vector<16x32xbf16>
    %c1_115 = arith.constant 1 : index
    %c0_116 = arith.constant 0 : index
    %c0_117 = arith.constant 0 : index
    %307 = vector.load %arg6[%c1_115, %c0_116, %c0_117] : memref<2x32x64xbf16, #tpu.memory_space<vmem>>, vector<1x32x64xbf16>
    %308 = vector.shape_cast %307 : vector<1x32x64xbf16> to vector<32x64xbf16>
    %cst_118 = arith.constant dense<0.000000e+00> : vector<16x64xf32>
    %309 = tpu.matmul %306, %308, %cst_118 {dimension_numbers = #tpu.dot_dimension_numbers<[1], [0], [0], [1], [0, 0, 1, 1], [], []>} : vector<16x32xbf16>, vector<32x64xbf16>, vector<16x64xf32> -> vector<16x64xf32>
    %c1_119 = arith.constant 1 : index
    %c0_120 = arith.constant 0 : index
    %c0_121 = arith.constant 0 : index
    %310 = vector.load %arg7[%c1_119, %c0_120, %c0_121] : memref<2x1x64xf32, #tpu.memory_space<vmem>>, vector<1x1x64xf32>
    %311 = vector.shape_cast %310 : vector<1x1x64xf32> to vector<1x64xf32>
    %312 = vector.broadcast %311 : vector<1x64xf32> to vector<16x64xf32>
    %313 = arith.addf %309, %312 : vector<16x64xf32>
    %cst_122 = arith.constant 0.000000e+00 : f32
    %314 = vector.broadcast %cst_122 : f32 to vector<16x64xf32>
    %315 = arith.maximumf %313, %314 : vector<16x64xf32>
    %316 = arith.truncf %315 : vector<16x64xf32> to vector<16x64xbf16>
    %c1_123 = arith.constant 1 : index
    %c0_124 = arith.constant 0 : index
    %c0_125 = arith.constant 0 : index
    %317 = vector.load %arg8[%c1_123, %c0_124, %c0_125] : memref<2x64x32xbf16, #tpu.memory_space<vmem>>, vector<1x64x32xbf16>
    %318 = vector.shape_cast %317 : vector<1x64x32xbf16> to vector<64x32xbf16>
    %cst_126 = arith.constant dense<0.000000e+00> : vector<16x32xf32>
    %319 = tpu.matmul %316, %318, %cst_126 {dimension_numbers = #tpu.dot_dimension_numbers<[1], [0], [0], [1], [0, 0, 1, 1], [], []>} : vector<16x64xbf16>, vector<64x32xbf16>, vector<16x32xf32> -> vector<16x32xf32>
    %c1_127 = arith.constant 1 : index
    %c0_128 = arith.constant 0 : index
    %c0_129 = arith.constant 0 : index
    %320 = vector.load %arg9[%c1_127, %c0_128, %c0_129] : memref<2x1x32xf32, #tpu.memory_space<vmem>>, vector<1x1x32xf32>
    %321 = vector.shape_cast %320 : vector<1x1x32xf32> to vector<1x32xf32>
    %322 = vector.broadcast %321 : vector<1x32xf32> to vector<16x32xf32>
    %323 = arith.addf %319, %322 : vector<16x32xf32>
    %324 = arith.addf %305, %323 : vector<16x32xf32>
    %c1_130 = arith.constant 1 : index
    %c0_131 = arith.constant 0 : index
    %c0_132 = arith.constant 0 : index
    %325 = vector.load %arg12[%c1_130, %c0_131, %c0_132] : memref<2x1x32xf32, #tpu.memory_space<vmem>>, vector<1x1x32xf32>
    %326 = vector.shape_cast %325 : vector<1x1x32xf32> to vector<1x32xf32>
    %c1_133 = arith.constant 1 : index
    %c0_134 = arith.constant 0 : index
    %c0_135 = arith.constant 0 : index
    %327 = vector.load %arg13[%c1_133, %c0_134, %c0_135] : memref<2x1x32xf32, #tpu.memory_space<vmem>>, vector<1x1x32xf32>
    %328 = vector.shape_cast %327 : vector<1x1x32xf32> to vector<1x32xf32>
    %cst_136 = arith.constant dense<0.000000e+00> : vector<16xf32>
    %329 = vector.multi_reduction <add>, %324, %cst_136 [1] : vector<16x32xf32> to vector<16xf32>
    %330 = vector.shape_cast %329 : vector<16xf32> to vector<16x1xf32>
    %cst_137 = arith.constant 3.200000e+01 : f32
    %331 = vector.broadcast %cst_137 : f32 to vector<16x1xf32>
    %332 = arith.divf %330, %331 : vector<16x1xf32>
    %333 = vector.broadcast %332 : vector<16x1xf32> to vector<16x32xf32>
    %334 = arith.subf %324, %333 : vector<16x32xf32>
    %335 = arith.mulf %334, %334 : vector<16x32xf32>
    %cst_138 = arith.constant dense<0.000000e+00> : vector<16xf32>
    %336 = vector.multi_reduction <add>, %335, %cst_138 [1] : vector<16x32xf32> to vector<16xf32>
    %337 = vector.shape_cast %336 : vector<16xf32> to vector<16x1xf32>
    %cst_139 = arith.constant 3.200000e+01 : f32
    %338 = vector.broadcast %cst_139 : f32 to vector<16x1xf32>
    %339 = arith.divf %337, %338 : vector<16x1xf32>
    %340 = vector.broadcast %332 : vector<16x1xf32> to vector<16x32xf32>
    %341 = arith.subf %324, %340 : vector<16x32xf32>
    %cst_140 = arith.constant 9.99999974E-6 : f32
    %342 = vector.broadcast %cst_140 : f32 to vector<16x1xf32>
    %343 = arith.addf %339, %342 : vector<16x1xf32>
    %344 = math.rsqrt %343 : vector<16x1xf32>
    %345 = vector.broadcast %344 : vector<16x1xf32> to vector<16x32xf32>
    %346 = arith.mulf %341, %345 : vector<16x32xf32>
    %347 = vector.broadcast %326 : vector<1x32xf32> to vector<16x32xf32>
    %348 = arith.mulf %346, %347 : vector<16x32xf32>
    %349 = vector.broadcast %328 : vector<1x32xf32> to vector<16x32xf32>
    %350 = arith.addf %348, %349 : vector<16x32xf32>
    %351 = vector.shape_cast %350 : vector<16x32xf32> to vector<2x8x32xf32>
    %cst_141 = arith.constant dense<0.000000e+00> : vector<2x32xf32>
    %352 = vector.multi_reduction <add>, %351, %cst_141 [1] : vector<2x8x32xf32> to vector<2x32xf32>
    %cst_142 = arith.constant 8.000000e+00 : f32
    %353 = vector.broadcast %cst_142 : f32 to vector<2x32xf32>
    %354 = arith.divf %352, %353 : vector<2x32xf32>
    %355 = arith.truncf %354 : vector<2x32xf32> to vector<2x32xbf16>
    %c0_143 = arith.constant 0 : index
    %c0_144 = arith.constant 0 : index
    %356 = vector.load %arg14[%c0_143, %c0_144] : memref<32x128xbf16, #tpu.memory_space<vmem>>, vector<32x128xbf16>
    %cst_145 = arith.constant dense<0.000000e+00> : vector<2x128xf32>
    %357 = tpu.matmul %355, %356, %cst_145 {dimension_numbers = #tpu.dot_dimension_numbers<[1], [0], [0], [1], [0, 0, 1, 1], [], []>} : vector<2x32xbf16>, vector<32x128xbf16>, vector<2x128xf32> -> vector<2x128xf32>
    %c0_146 = arith.constant 0 : index
    %c0_147 = arith.constant 0 : index
    %358 = vector.load %arg15[%c0_146, %c0_147] : memref<1x128xf32, #tpu.memory_space<vmem>>, vector<1x128xf32>
    %359 = vector.broadcast %358 : vector<1x128xf32> to vector<2x128xf32>
    %360 = arith.addf %357, %359 : vector<2x128xf32>
    %c0_148 = arith.constant 0 : index
    %c0_149 = arith.constant 0 : index
    %c0_150 = arith.constant 0 : index
    %361 = vector.load %arg16[%c0_148, %c0_149, %c0_150] : memref<1x2x128xf32, #tpu.memory_space<vmem>>, vector<1x2x128xf32>
    %362 = vector.shape_cast %361 : vector<1x2x128xf32> to vector<2x128xf32>
    %363 = vector.shape_cast %360 : vector<2x128xf32> to vector<1x2x128xf32>
    tpu.vector_store %arg16[%c0_148, %c0_149, %c0_150], %363 {strides = array<i32>} : memref<1x2x128xf32, #tpu.memory_space<vmem>>, vector<1x2x128xf32>,
    return
  }
  func.func @transform_0(%arg0: i32) -> (i32, i32) {
    %c0_i32 = arith.constant 0 : i32
    %c0_i32_0 = arith.constant 0 : i32
    return %arg0, %c0_i32 : i32, i32
  }
  func.func @transform_1(%arg0: i32) -> (i32, i32, i32) {
    %c0_i32 = arith.constant 0 : i32
    %c0_i32_0 = arith.constant 0 : i32
    %c0_i32_1 = arith.constant 0 : i32
    %c0_i32_2 = arith.constant 0 : i32
    return %c0_i32, %c0_i32_0, %c0_i32_1 : i32, i32, i32
  }
  func.func @transform_2(%arg0: i32) -> (i32, i32, i32) {
    %c0_i32 = arith.constant 0 : i32
    %c0_i32_0 = arith.constant 0 : i32
    %c0_i32_1 = arith.constant 0 : i32
    %c0_i32_2 = arith.constant 0 : i32
    return %c0_i32, %c0_i32_0, %c0_i32_1 : i32, i32, i32
  }
  func.func @transform_3(%arg0: i32) -> (i32, i32, i32) {
    %c0_i32 = arith.constant 0 : i32
    %c0_i32_0 = arith.constant 0 : i32
    %c0_i32_1 = arith.constant 0 : i32
    %c0_i32_2 = arith.constant 0 : i32
    return %c0_i32, %c0_i32_0, %c0_i32_1 : i32, i32, i32
  }
  func.func @transform_4(%arg0: i32) -> (i32, i32, i32) {
    %c0_i32 = arith.constant 0 : i32
    %c0_i32_0 = arith.constant 0 : i32
    %c0_i32_1 = arith.constant 0 : i32
    %c0_i32_2 = arith.constant 0 : i32
    return %c0_i32, %c0_i32_0, %c0_i32_1 : i32, i32, i32
  }
  func.func @transform_5(%arg0: i32) -> (i32, i32, i32) {
    %c0_i32 = arith.constant 0 : i32
    %c0_i32_0 = arith.constant 0 : i32
    %c0_i32_1 = arith.constant 0 : i32
    %c0_i32_2 = arith.constant 0 : i32
    return %c0_i32, %c0_i32_0, %c0_i32_1 : i32, i32, i32
  }
  func.func @transform_6(%arg0: i32) -> (i32, i32, i32) {
    %c0_i32 = arith.constant 0 : i32
    %c0_i32_0 = arith.constant 0 : i32
    %c0_i32_1 = arith.constant 0 : i32
    %c0_i32_2 = arith.constant 0 : i32
    return %c0_i32, %c0_i32_0, %c0_i32_1 : i32, i32, i32
  }
  func.func @transform_7(%arg0: i32) -> (i32, i32, i32) {
    %c0_i32 = arith.constant 0 : i32
    %c0_i32_0 = arith.constant 0 : i32
    %c0_i32_1 = arith.constant 0 : i32
    %c0_i32_2 = arith.constant 0 : i32
    return %c0_i32, %c0_i32_0, %c0_i32_1 : i32, i32, i32
  }
  func.func @transform_8(%arg0: i32) -> (i32, i32, i32) {
    %c0_i32 = arith.constant 0 : i32
    %c0_i32_0 = arith.constant 0 : i32
    %c0_i32_1 = arith.constant 0 : i32
    %c0_i32_2 = arith.constant 0 : i32
    return %c0_i32, %c0_i32_0, %c0_i32_1 : i32, i32, i32
  }
  func.func @transform_9(%arg0: i32) -> (i32, i32, i32) {
    %c0_i32 = arith.constant 0 : i32
    %c0_i32_0 = arith.constant 0 : i32
    %c0_i32_1 = arith.constant 0 : i32
    %c0_i32_2 = arith.constant 0 : i32
    return %c0_i32, %c0_i32_0, %c0_i32_1 : i32, i32, i32
  }
  func.func @transform_10(%arg0: i32) -> (i32, i32, i32) {
    %c0_i32 = arith.constant 0 : i32
    %c0_i32_0 = arith.constant 0 : i32
    %c0_i32_1 = arith.constant 0 : i32
    %c0_i32_2 = arith.constant 0 : i32
    return %c0_i32, %c0_i32_0, %c0_i32_1 : i32, i32, i32
  }
  func.func @transform_11(%arg0: i32) -> (i32, i32, i32) {
    %c0_i32 = arith.constant 0 : i32
    %c0_i32_0 = arith.constant 0 : i32
    %c0_i32_1 = arith.constant 0 : i32
    %c0_i32_2 = arith.constant 0 : i32
    return %c0_i32, %c0_i32_0, %c0_i32_1 : i32, i32, i32
  }
  func.func @transform_12(%arg0: i32) -> (i32, i32, i32) {
    %c0_i32 = arith.constant 0 : i32
    %c0_i32_0 = arith.constant 0 : i32
    %c0_i32_1 = arith.constant 0 : i32
    %c0_i32_2 = arith.constant 0 : i32
    return %c0_i32, %c0_i32_0, %c0_i32_1 : i32, i32, i32
  }
  func.func @transform_13(%arg0: i32) -> (i32, i32) {
    %c0_i32 = arith.constant 0 : i32
    %c0_i32_0 = arith.constant 0 : i32
    %c0_i32_1 = arith.constant 0 : i32
    return %c0_i32, %c0_i32_0 : i32, i32
  }
  func.func @transform_14(%arg0: i32) -> (i32, i32) {
    %c0_i32 = arith.constant 0 : i32
    %c0_i32_0 = arith.constant 0 : i32
    %c0_i32_1 = arith.constant 0 : i32
    return %c0_i32, %c0_i32_0 : i32, i32
  }
  func.func @transform_15(%arg0: i32) -> (i32, i32, i32) {
    %c0_i32 = arith.constant 0 : i32
    %c0_i32_0 = arith.constant 0 : i32
    %c0_i32_1 = arith.constant 0 : i32
    return %arg0, %c0_i32, %c0_i32_0 : i32, i32, i32
  }
}

</mosaic_0001>

<llo_original>
// kernel: tpu_custom_call.1
$region0: #{tpu_custom_call.1}
  #allocation0 [shape = 'u32[]', space=smem, size = 0x4, offset = 0x4, fixed_abs, tag = 'smem constant byte address 0x4 - core index']
  #allocation1 [shape = 'u32[144,128]{1,0:T(1,128)}', space=vmem, size = 0x12000, scoped, tag = 'internal scratch']
  %s0 = inlined_call_operand.hbm [shape: f32[16,32], index: 0, kind: input, shape index: {}]
  %s1 = inlined_call_operand.hbm [shape: bf16[2,32,96], index: 1, kind: input, shape index: {}]
  %s2 = inlined_call_operand.hbm [shape: f32[2,1,96], index: 2, kind: input, shape index: {}]
  %s3 = inlined_call_operand.hbm [shape: bf16[2,32,32], index: 3, kind: input, shape index: {}]
  %s4 = inlined_call_operand.hbm [shape: f32[2,1,32], index: 4, kind: input, shape index: {}]
  %s5 = inlined_call_operand.hbm [shape: bf16[2,32,64], index: 5, kind: input, shape index: {}]
  %s6 = inlined_call_operand.hbm [shape: f32[2,1,64], index: 6, kind: input, shape index: {}]
  %s7 = inlined_call_operand.hbm [shape: bf16[2,64,32], index: 7, kind: input, shape index: {}]
  %s8 = inlined_call_operand.hbm [shape: f32[2,1,32], index: 8, kind: input, shape index: {}]
  %s9 = inlined_call_operand.hbm [shape: f32[2,1,32], index: 9, kind: input, shape index: {}]
  %s10 = inlined_call_operand.hbm [shape: f32[2,1,32], index: 10, kind: input, shape index: {}]
  %s11 = inlined_call_operand.hbm [shape: f32[2,1,32], index: 11, kind: input, shape index: {}]
  %s12 = inlined_call_operand.hbm [shape: f32[2,1,32], index: 12, kind: input, shape index: {}]
  %s13 = inlined_call_operand.hbm [shape: bf16[32,128], index: 13, kind: input, shape index: {}]
  %s14 = inlined_call_operand.hbm [shape: f32[1,128], index: 14, kind: input, shape index: {}]
  %s15 = inlined_call_operand.hbm [shape: f32[1,2,128], index: 15, kind: output, shape index: {}]
  %s16 = sld [smem:[#allocation0]]
  $region130: #{tpu_custom_call.1} parent=0
    _
  %s18 = ssub.s32 1, %s16
  %s19 = scalar_select 0, %s18, %s16
  $region1: #{tpu_custom_call.1} parent=0
    #allocation2 [shape = 'u8[8192]{0}', space=vmem, size = 0x2000, scoped, tag = 'input window, operand 0, single buffered']
    #allocation3 [shape = 's32[1]{0}', space=sflag, size = 0x4, scoped, tag = 'scoped memory for tpu_custom_call.1']
    #allocation4 [shape = 's32[1]{0}', space=sflag, size = 0x4, scoped, tag = 'scoped memory for tpu_custom_call.1']
    #allocation5 [shape = 'u8[16384]{0}', space=vmem, size = 0x4000, scoped, tag = 'input window, operand 1, single buffered']
    #allocation6 [shape = 's32[1]{0}', space=sflag, size = 0x4, scoped, tag = 'scoped memory for tpu_custom_call.1']
    #allocation7 [shape = 'u8[1024]{0}', space=vmem, size = 0x400, scoped, tag = 'input window, operand 2, single buffered']
    #allocation8 [shape = 'u8[16384]{0}', space=vmem, size = 0x4000, scoped, tag = 'input window, operand 3, single buffered']
    #allocation9 [shape = 's32[1]{0}', space=sflag, size = 0x4, scoped, tag = 'scoped memory for tpu_custom_call.1']
    #allocation10 [shape = 'u8[1024]{0}', space=vmem, size = 0x400, scoped, tag = 'input window, operand 4, single buffered']
    #allocation11 [shape = 'u8[16384]{0}', space=vmem, size = 0x4000, scoped, tag = 'input window, operand 5, single buffered']
    #allocation12 [shape = 's32[1]{0}', space=sflag, size = 0x4, scoped, tag = 'scoped memory for tpu_custom_call.1']
    #allocation13 [shape = 'u8[1024]{0}', space=vmem, size = 0x400, scoped, tag = 'input window, operand 6, single buffered']
    #allocation14 [shape = 'u8[32768]{0}', space=vmem, size = 0x8000, scoped, tag = 'input window, operand 7, single buffered']
    #allocation15 [shape = 's32[1]{0}', space=sflag, size = 0x4, scoped, tag = 'scoped memory for tpu_custom_call.1']
    #allocation16 [shape = 'u8[1024]{0}', space=vmem, size = 0x400, scoped, tag = 'input window, operand 8, single buffered']
    #allocation17 [shape = 'u8[1024]{0}', space=vmem, size = 0x400, scoped, tag = 'input window, operand 9, single buffered']
    #allocation18 [shape = 's32[1]{0}', space=sflag, size = 0x4, scoped, tag = 'scoped memory for tpu_custom_call.1']
    #allocation19 [shape = 'u8[1024]{0}', space=vmem, size = 0x400, scoped, tag = 'input window, operand 10, single buffered']
    #allocation20 [shape = 'u8[1024]{0}', space=vmem, size = 0x400, scoped, tag = 'input window, operand 11, single buffered']
    #allocation21 [shape = 's32[1]{0}', space=sflag, size = 0x4, scoped, tag = 'scoped memory for tpu_custom_call.1']
    #allocation22 [shape = 'u8[1024]{0}', space=vmem, size = 0x400, scoped, tag = 'input window, operand 12, single buffered']
    #allocation23 [shape = 'u8[8192]{0}', space=vmem, size = 0x2000, scoped, tag = 'input window, operand 13, single buffered']
    #allocation24 [shape = 's32[1]{0}', space=sflag, size = 0x4, scoped, tag = 'scoped memory for tpu_custom_call.1']
    #allocation25 [shape = 'u8[512]{0}', space=vmem, size = 0x400, scoped, tag = 'input window, operand 14, single buffered']
    #allocation26 [shape = 'u8[1024]{0}', space=vmem, size = 0x400, scoped, tag = 'output window, operand 0, single buffered']
    %20 = vsyncpa [#allocation3], 0
    %21 = vsyncpa [#allocation6], 0
    %22 = vsyncpa [#allocation9], 0
    %23 = vsyncpa [#allocation12], 0
    %24 = vsyncpa [#allocation15], 0
    %25 = vsyncpa [#allocation18], 0
    %26 = vsyncpa [#allocation21], 0
    %27 = vsyncpa [#allocation24], 0
    %28 = vsyncpa [#allocation4], 0
    // Predicated region
    $region2: #{tpu_custom_call.1} parent=1 // pred_check
      _
    $region3: #{tpu_custom_call.1} parent=1 // pred_check_branch
      %30 = sbr.rel (0) target = $region5
    $region4: #{tpu_custom_call.1} parent=1 // pred_region
      %s32 = ssub.s32 256, 256
      %33 = vsyncadd [#allocation3], %s32
      %s34 = sshll.u32 [#allocation2], 4
      %s35 = int_to_ptr.vmem [resolvable:$true] %s34
      %40 = dma.hbm_to_vmem [thread:$0]  %s0, 256, %s35, [#allocation3], 128, 128, 8
    $region5: #{tpu_custom_call.1} parent=1 // pred_fallthru
      _
    // Predicated region
    $region6: #{tpu_custom_call.1} parent=1 // pred_check
      _
    $region7: #{tpu_custom_call.1} parent=1 // pred_check_branch
      %42 = sbr.rel (0) target = $region9
    $region8: #{tpu_custom_call.1} parent=1 // pred_region
      %s44 = ssub.s32 512, 512
      %45 = vsyncadd [#allocation6], %s44
      %s46 = sshll.u32 [#allocation5], 4
      %s47 = int_to_ptr.vmem [resolvable:$true] %s46
      %52 = dma.hbm_to_vmem [thread:$0]  %s1, 512, %s47, [#allocation6], 64, 64, 4
    $region9: #{tpu_custom_call.1} parent=1 // pred_fallthru
      _
    // Predicated region
    $region10: #{tpu_custom_call.1} parent=1 // pred_check
      _
    $region11: #{tpu_custom_call.1} parent=1 // pred_check_branch
      %54 = sbr.rel (0) target = $region13
    $region12: #{tpu_custom_call.1} parent=1 // pred_region
      %s56 = ssub.s32 32, 32
      %57 = vsyncadd [#allocation6], %s56
      %s58 = sshll.u32 [#allocation7], 4
      %s59 = int_to_ptr.vmem [resolvable:$true] %s58
      %64 = dma.hbm_to_vmem [thread:$0]  %s2, 32, %s59, [#allocation6], 16, 16, 1
    $region13: #{tpu_custom_call.1} parent=1 // pred_fallthru
      _
    // Predicated region
    $region14: #{tpu_custom_call.1} parent=1 // pred_check
      _
    $region15: #{tpu_custom_call.1} parent=1 // pred_check_branch
      %66 = sbr.rel (0) target = $region17
    $region16: #{tpu_custom_call.1} parent=1 // pred_region
      %s68 = ssub.s32 512, 512
      %69 = vsyncadd [#allocation9], %s68
      %s70 = sshll.u32 [#allocation8], 4
      %s71 = int_to_ptr.vmem [resolvable:$true] %s70
      %76 = dma.hbm_to_vmem [thread:$0]  %s3, 512, %s71, [#allocation9], 64, 64, 4
    $region17: #{tpu_custom_call.1} parent=1 // pred_fallthru
      _
    // Predicated region
    $region18: #{tpu_custom_call.1} parent=1 // pred_check
      _
    $region19: #{tpu_custom_call.1} parent=1 // pred_check_branch
      %78 = sbr.rel (0) target = $region21
    $region20: #{tpu_custom_call.1} parent=1 // pred_region
      %s80 = ssub.s32 32, 32
      %81 = vsyncadd [#allocation9], %s80
      %s82 = sshll.u32 [#allocation10], 4
      %s83 = int_to_ptr.vmem [resolvable:$true] %s82
      %88 = dma.hbm_to_vmem [thread:$0]  %s4, 32, %s83, [#allocation9], 16, 16, 1
    $region21: #{tpu_custom_call.1} parent=1 // pred_fallthru
      _
    // Predicated region
    $region22: #{tpu_custom_call.1} parent=1 // pred_check
      _
    $region23: #{tpu_custom_call.1} parent=1 // pred_check_branch
      %90 = sbr.rel (0) target = $region25
    $region24: #{tpu_custom_call.1} parent=1 // pred_region
      %s92 = ssub.s32 512, 512
      %93 = vsyncadd [#allocation12], %s92
      %s94 = sshll.u32 [#allocation11], 4
      %s95 = int_to_ptr.vmem [resolvable:$true] %s94
      %100 = dma.hbm_to_vmem [thread:$0]  %s5, 512, %s95, [#allocation12], 64, 64, 4
    $region25: #{tpu_custom_call.1} parent=1 // pred_fallthru
      _
    // Predicated region
    $region26: #{tpu_custom_call.1} parent=1 // pred_check
      _
    $region27: #{tpu_custom_call.1} parent=1 // pred_check_branch
      %102 = sbr.rel (0) target = $region29
    $region28: #{tpu_custom_call.1} parent=1 // pred_region
      %s104 = ssub.s32 32, 32
      %105 = vsyncadd [#allocation12], %s104
      %s106 = sshll.u32 [#allocation13], 4
      %s107 = int_to_ptr.vmem [resolvable:$true] %s106
      %112 = dma.hbm_to_vmem [thread:$0]  %s6, 32, %s107, [#allocation12], 16, 16, 1
    $region29: #{tpu_custom_call.1} parent=1 // pred_fallthru
      _
    // Predicated region
    $region30: #{tpu_custom_call.1} parent=1 // pred_check
      _
    $region31: #{tpu_custom_call.1} parent=1 // pred_check_branch
      %114 = sbr.rel (0) target = $region33
    $region32: #{tpu_custom_call.1} parent=1 // pred_region
      %s116 = ssub.s32 1024, 1024
      %117 = vsyncadd [#allocation15], %s116
      %s118 = sshll.u32 [#allocation14], 4
      %s119 = int_to_ptr.vmem [resolvable:$true] %s118
      %124 = dma.hbm_to_vmem [thread:$0]  %s7, 1024, %s119, [#allocation15], 64, 64, 4
    $region33: #{tpu_custom_call.1} parent=1 // pred_fallthru
      _
    // Predicated region
    $region34: #{tpu_custom_call.1} parent=1 // pred_check
      _
    $region35: #{tpu_custom_call.1} parent=1 // pred_check_branch
      %126 = sbr.rel (0) target = $region37
    $region36: #{tpu_custom_call.1} parent=1 // pred_region
      %s128 = ssub.s32 32, 32
      %129 = vsyncadd [#allocation15], %s128
      %s130 = sshll.u32 [#allocation16], 4
      %s131 = int_to_ptr.vmem [resolvable:$true] %s130
      %136 = dma.hbm_to_vmem [thread:$0]  %s8, 32, %s131, [#allocation15], 16, 16, 1
    $region37: #{tpu_custom_call.1} parent=1 // pred_fallthru
      _
    // Predicated region
    $region38: #{tpu_custom_call.1} parent=1 // pred_check
      _
    $region39: #{tpu_custom_call.1} parent=1 // pred_check_branch
      %138 = sbr.rel (0) target = $region41
    $region40: #{tpu_custom_call.1} parent=1 // pred_region
      %s140 = ssub.s32 32, 32
      %141 = vsyncadd [#allocation18], %s140
      %s142 = sshll.u32 [#allocation17], 4
      %s143 = int_to_ptr.vmem [resolvable:$true] %s142
      %148 = dma.hbm_to_vmem [thread:$0]  %s9, 32, %s143, [#allocation18], 16, 16, 1
    $region41: #{tpu_custom_call.1} parent=1 // pred_fallthru
      _
    // Predicated region
    $region42: #{tpu_custom_call.1} parent=1 // pred_check
      _
    $region43: #{tpu_custom_call.1} parent=1 // pred_check_branch
      %150 = sbr.rel (0) target = $region45
    $region44: #{tpu_custom_call.1} parent=1 // pred_region
      %s152 = ssub.s32 32, 32
      %153 = vsyncadd [#allocation18], %s152
      %s154 = sshll.u32 [#allocation19], 4
      %s155 = int_to_ptr.vmem [resolvable:$true] %s154
      %160 = dma.hbm_to_vmem [thread:$0]  %s10, 32, %s155, [#allocation18], 16, 16, 1
    $region45: #{tpu_custom_call.1} parent=1 // pred_fallthru
      _
    // Predicated region
    $region46: #{tpu_custom_call.1} parent=1 // pred_check
      _
    $region47: #{tpu_custom_call.1} parent=1 // pred_check_branch
      %162 = sbr.rel (0) target = $region49
    $region48: #{tpu_custom_call.1} parent=1 // pred_region
      %s164 = ssub.s32 32, 32
      %165 = vsyncadd [#allocation21], %s164
      %s166 = sshll.u32 [#allocation20], 4
      %s167 = int_to_ptr.vmem [resolvable:$true] %s166
      %172 = dma.hbm_to_vmem [thread:$0]  %s11, 32, %s167, [#allocation21], 16, 16, 1
    $region49: #{tpu_custom_call.1} parent=1 // pred_fallthru
      _
    // Predicated region
    $region50: #{tpu_custom_call.1} parent=1 // pred_check
      _
    $region51: #{tpu_custom_call.1} parent=1 // pred_check_branch
      %174 = sbr.rel (0) target = $region53
    $region52: #{tpu_custom_call.1} parent=1 // pred_region
      %s176 = ssub.s32 32, 32
      %177 = vsyncadd [#allocation21], %s176
      %s178 = sshll.u32 [#allocation22], 4
      %s179 = int_to_ptr.vmem [resolvable:$true] %s178
      %184 = dma.hbm_to_vmem [thread:$0]  %s12, 32, %s179, [#allocation21], 16, 16, 1
    $region53: #{tpu_custom_call.1} parent=1 // pred_fallthru
      _
    // Predicated region
    $region54: #{tpu_custom_call.1} parent=1 // pred_check
      _
    $region55: #{tpu_custom_call.1} parent=1 // pred_check_branch
      %186 = sbr.rel (0) target = $region57
    $region56: #{tpu_custom_call.1} parent=1 // pred_region
      %s188 = ssub.s32 256, 256
      %189 = vsyncadd [#allocation24], %s188
      %s190 = sshll.u32 [#allocation23], 4
      %s191 = int_to_ptr.vmem [resolvable:$true] %s190
      %196 = dma.hbm_to_vmem [thread:$0]  %s13, 256, %s191, [#allocation24], 64, 64, 4
    $region57: #{tpu_custom_call.1} parent=1 // pred_fallthru
      _
    // Predicated region
    $region58: #{tpu_custom_call.1} parent=1 // pred_check
      _
    $region59: #{tpu_custom_call.1} parent=1 // pred_check_branch
      %198 = sbr.rel (0) target = $region61
    $region60: #{tpu_custom_call.1} parent=1 // pred_region
      %s200 = ssub.s32 16, 16
      %201 = vsyncadd [#allocation24], %s200
      %s203 = sshll.u32 [#allocation25], 4
      %s204 = int_to_ptr.vmem [resolvable:$true] %s203
      %206 = dma.hbm_to_vmem [thread:$0]  %s14, 16, %s204, [#allocation24]
    $region61: #{tpu_custom_call.1} parent=1 // pred_fallthru
      _
    // Predicated region
    $region62: #{tpu_custom_call.1} parent=1 // pred_check
      _
    $region63: #{tpu_custom_call.1} parent=1 // pred_check_branch
      %208 = sbr.rel (0) target = $region65
    $region64: #{tpu_custom_call.1} parent=1 // pred_region
      %209 = dma.done [#allocation3], 256
    $region65: #{tpu_custom_call.1} parent=1 // pred_fallthru
      _
    // Predicated region
    $region66: #{tpu_custom_call.1} parent=1 // pred_check
      _
    $region67: #{tpu_custom_call.1} parent=1 // pred_check_branch
      %211 = sbr.rel (0) target = $region69
    $region68: #{tpu_custom_call.1} parent=1 // pred_region
      %212 = dma.done [#allocation6], 512
    $region69: #{tpu_custom_call.1} parent=1 // pred_fallthru
      _
    // Predicated region
    $region70: #{tpu_custom_call.1} parent=1 // pred_check
      _
    $region71: #{tpu_custom_call.1} parent=1 // pred_check_branch
      %214 = sbr.rel (0) target = $region73
    $region72: #{tpu_custom_call.1} parent=1 // pred_region
      %215 = dma.done [#allocation6], 32
    $region73: #{tpu_custom_call.1} parent=1 // pred_fallthru
      _
    // Predicated region
    $region74: #{tpu_custom_call.1} parent=1 // pred_check
      _
    $region75: #{tpu_custom_call.1} parent=1 // pred_check_branch
      %217 = sbr.rel (0) target = $region77
    $region76: #{tpu_custom_call.1} parent=1 // pred_region
      %218 = dma.done [#allocation9], 512
    $region77: #{tpu_custom_call.1} parent=1 // pred_fallthru
      _
    // Predicated region
    $region78: #{tpu_custom_call.1} parent=1 // pred_check
      _
    $region79: #{tpu_custom_call.1} parent=1 // pred_check_branch
      %220 = sbr.rel (0) target = $region81
    $region80: #{tpu_custom_call.1} parent=1 // pred_region
      %221 = dma.done [#allocation9], 32
    $region81: #{tpu_custom_call.1} parent=1 // pred_fallthru
      _
    // Predicated region
    $region82: #{tpu_custom_call.1} parent=1 // pred_check
      _
    $region83: #{tpu_custom_call.1} parent=1 // pred_check_branch
      %223 = sbr.rel (0) target = $region85
    $region84: #{tpu_custom_call.1} parent=1 // pred_region
      %224 = dma.done [#allocation12], 512
    $region85: #{tpu_custom_call.1} parent=1 // pred_fallthru
      _
    // Predicated region
    $region86: #{tpu_custom_call.1} parent=1 // pred_check
      _
    $region87: #{tpu_custom_call.1} parent=1 // pred_check_branch
      %226 = sbr.rel (0) target = $region89
    $region88: #{tpu_custom_call.1} parent=1 // pred_region
      %227 = dma.done [#allocation12], 32
    $region89: #{tpu_custom_call.1} parent=1 // pred_fallthru
      _
    // Predicated region
    $region90: #{tpu_custom_call.1} parent=1 // pred_check
      _
    $region91: #{tpu_custom_call.1} parent=1 // pred_check_branch
      %229 = sbr.rel (0) target = $region93
    $region92: #{tpu_custom_call.1} parent=1 // pred_region
      %230 = dma.done [#allocation15], 1024
    $region93: #{tpu_custom_call.1} parent=1 // pred_fallthru
      _
    // Predicated region
    $region94: #{tpu_custom_call.1} parent=1 // pred_check
      _
    $region95: #{tpu_custom_call.1} parent=1 // pred_check_branch
      %232 = sbr.rel (0) target = $region97
    $region96: #{tpu_custom_call.1} parent=1 // pred_region
      %233 = dma.done [#allocation15], 32
    $region97: #{tpu_custom_call.1} parent=1 // pred_fallthru
      _
    // Predicated region
    $region98: #{tpu_custom_call.1} parent=1 // pred_check
      _
    $region99: #{tpu_custom_call.1} parent=1 // pred_check_branch
      %235 = sbr.rel (0) target = $region101
    $region100: #{tpu_custom_call.1} parent=1 // pred_region
      %236 = dma.done [#allocation18], 32
    $region101: #{tpu_custom_call.1} parent=1 // pred_fallthru
      _
    // Predicated region
    $region102: #{tpu_custom_call.1} parent=1 // pred_check
      _
    $region103: #{tpu_custom_call.1} parent=1 // pred_check_branch
      %238 = sbr.rel (0) target = $region105
    $region104: #{tpu_custom_call.1} parent=1 // pred_region
      %239 = dma.done [#allocation18], 32
    $region105: #{tpu_custom_call.1} parent=1 // pred_fallthru
      _
    // Predicated region
    $region106: #{tpu_custom_call.1} parent=1 // pred_check
      _
    $region107: #{tpu_custom_call.1} parent=1 // pred_check_branch
      %241 = sbr.rel (0) target = $region109
    $region108: #{tpu_custom_call.1} parent=1 // pred_region
      %242 = dma.done [#allocation21], 32
    $region109: #{tpu_custom_call.1} parent=1 // pred_fallthru
      _
    // Predicated region
    $region110: #{tpu_custom_call.1} parent=1 // pred_check
      _
    $region111: #{tpu_custom_call.1} parent=1 // pred_check_branch
      %244 = sbr.rel (0) target = $region113
    $region112: #{tpu_custom_call.1} parent=1 // pred_region
      %245 = dma.done [#allocation21], 32
    $region113: #{tpu_custom_call.1} parent=1 // pred_fallthru
      _
    // Predicated region
    $region114: #{tpu_custom_call.1} parent=1 // pred_check
      _
    $region115: #{tpu_custom_call.1} parent=1 // pred_check_branch
      %247 = sbr.rel (0) target = $region117
    $region116: #{tpu_custom_call.1} parent=1 // pred_region
      %248 = dma.done [#allocation24], 256
    $region117: #{tpu_custom_call.1} parent=1 // pred_fallthru
      _
    // Predicated region
    $region118: #{tpu_custom_call.1} parent=1 // pred_check
      _
    $region119: #{tpu_custom_call.1} parent=1 // pred_check_branch
      %250 = sbr.rel (0) target = $region121
    $region120: #{tpu_custom_call.1} parent=1 // pred_region
      %251 = dma.done [#allocation24], 16
    $region121: #{tpu_custom_call.1} parent=1 // pred_fallthru
      _
    %v253 = vld [vmem:[#allocation2] sm:$0xff]
    %v254 = vld [vmem:[#allocation2 + $0x8] sm:$0xff]
    %v255 = vpack.c.bf16 %v254, %v253
    %v256 = vld [vmem:[#allocation5] sm:$0xf]
    %v257 = vld [vmem:[#allocation5 + $0x4] sm:$0xf]
    %v258 = vld [vmem:[#allocation5 + $0x8] sm:$0xf]
    %v259 = vld [vmem:[#allocation5 + $0xc] sm:$0xf]
    %v260 = vld [vmem:[#allocation7] sm:$0x1]
    %v262 = vlaneseq
    %v263 = vshrl.u32 %v262, 7
    %v264 = vsub.s32 0, %v263
    %v265 = vrot.slane %v260, %v264
    %v271 = vunpack.c.l.b16 %v256
    %v272 = vunpack.c.l.b16 %v257
    %v273 = vunpack.c.l.b16 %v258
    %v274 = vunpack.c.l.b16 %v259
    %v275 = vpack.c.b16 %v272, %v271
    %v276 = vpack.c.b16 %v274, %v273
    %vm279 = vcmask 261120
    %v281 = vsel %vm279, %v255, 0
    %283 = vmatprep.subr.bf16.mxu0 0
    %284 = vmatpush1.bf16.msra.mxu0 %v275
    %285 = vmatprep.subr.bf16.mxu0 0
    %286 = vmatpush1.bf16.msra.mxu0 %v276
    %287 = vmatprep.subr.bf16.mxu0 0
    %288 = vmatpush1.bf16.msra.mxu0 0
    %289 = vmatprep.subr.bf16.mxu0 0
    %290 = vmatpush1.bf16.msra.mxu0 0
    %291 = vmatprep.subr.bf16.mxu0 0
    %292 = vmatpush1.bf16.msra.mxu0 0
    %293 = vmatprep.subr.bf16.mxu0 0
    %294 = vmatpush1.bf16.msra.mxu0 0
    %295 = vmatprep.subr.bf16.mxu0 0
    %296 = vmatpush1.bf16.msra.mxu0 0
    %297 = vmatprep.subr.bf16.mxu0 0
    %298 = vmatpush1.bf16.msra.mxu0 0
    %299 = vmatprep.subr.bf16.mxu0 0
    %300 = vmatpush1.bf16.msra.mxu0 0
    %301 = vmatprep.subr.bf16.mxu0 0
    %302 = vmatpush1.bf16.msra.mxu0 0
    %303 = vmatprep.subr.bf16.mxu0 0
    %304 = vmatpush1.bf16.msra.mxu0 0
    %305 = vmatprep.subr.bf16.mxu0 0
    %306 = vmatpush1.bf16.msra.mxu0 0
    %307 = vmatprep.subr.bf16.mxu0 0
    %308 = vmatpush1.bf16.msra.mxu0 0
    %309 = vmatprep.subr.bf16.mxu0 0
    %310 = vmatpush1.bf16.msra.mxu0 0
    %311 = vmatprep.subr.bf16.mxu0 0
    %312 = vmatpush1.bf16.msra.mxu0 0
    %313 = vmatprep.subr.bf16.mxu0 0
    %314 = vmatpush1.bf16.msra.mxu0 0
    %315 = vmatprep.mubr.bf16.mxu0 0
    %316 = vmatmul.mubr.bf16.gmra.mrb[0].mxu0 %v281
    %v317 = vpop.f32.mrb[0].mxu0
    %v318 = vadd.f32 %v265, %v317
    %v319 = vpop.f32.mrb[0].mxu0
    %v320 = vpop.f32.mrb[0].mxu0
    %v321 = vadd.f32 %v265, %v320
    %v322 = vpop.f32.mrb[0].mxu0
    %323 = vdwg.mxu0
    %v324 = vpack.c.bf16 %v318, %v318
    %v325 = vpack.c.bf16 %v321, %v321
    %327 = vrot.lane.b32.xlu0 %v324, 96
    %v328 = vpop.permute.xlu0 %327
    %vm329 = vcmask 64512
    %v331 = vsel %vm329, %v324, 0
    %v334 = vsel %vm329, %v328, 0
    %336 = vmatprep.subr.bf16.mxu0 0
    %337 = vmatpush1.bf16.xpose.msra.mxu0 %v334
    %338 = vmatprep.subr.bf16.mxu0 0
    %339 = vmatpush1.bf16.xpose.msra.mxu0 0
    %340 = vmatprep.subr.bf16.mxu0 0
    %341 = vmatpush1.bf16.xpose.msra.mxu0 0
    %342 = vmatprep.subr.bf16.mxu0 0
    %343 = vmatpush1.bf16.xpose.msra.mxu0 0
    %344 = vmatprep.subr.bf16.mxu0 0
    %345 = vmatpush1.bf16.xpose.msra.mxu0 0
    %346 = vmatprep.subr.bf16.mxu0 0
    %347 = vmatpush1.bf16.xpose.msra.mxu0 0
    %348 = vmatprep.subr.bf16.mxu0 0
    %349 = vmatpush1.bf16.xpose.msra.mxu0 0
    %350 = vmatprep.subr.bf16.mxu0 0
    %351 = vmatpush1.bf16.xpose.msra.mxu0 0
    %352 = vmatprep.subr.bf16.mxu0 0
    %353 = vmatpush1.bf16.xpose.msra.mxu0 0
    %354 = vmatprep.subr.bf16.mxu0 0
    %355 = vmatpush1.bf16.xpose.msra.mxu0 0
    %356 = vmatprep.subr.bf16.mxu0 0
    %357 = vmatpush1.bf16.xpose.msra.mxu0 0
    %358 = vmatprep.subr.bf16.mxu0 0
    %359 = vmatpush1.bf16.xpose.msra.mxu0 0
    %360 = vmatprep.subr.bf16.mxu0 0
    %361 = vmatpush1.bf16.xpose.msra.mxu0 0
    %362 = vmatprep.subr.bf16.mxu0 0
    %363 = vmatpush1.bf16.xpose.msra.mxu0 0
    %364 = vmatprep.subr.bf16.mxu0 0
    %365 = vmatpush1.bf16.xpose.msra.mxu0 0
    %366 = vmatprep.subr.bf16.mxu0 0
    %367 = vmatpush1.bf16.xpose.msra.mxu0 0
    %368 = vmatprep.mubr.bf16.mxu0 0
    %369 = vmatmul.mubr.bf16.gmra.mrb[0].mxu0 %v331
    %v370 = vpop.f32.mrb[0].mxu0
    %v371 = vadd.f32 0.0, %v370
    %v372 = vpop.f32.mrb[0].mxu0
    %v373 = vpop.f32.mrb[0].mxu0
    %v374 = vpop.f32.mrb[0].mxu0
    %375 = vdwg.mxu0
    %377 = vrot.lane.b32.xlu0 %v325, 96
    %v378 = vpop.permute.xlu0 %377
    %v380 = vsel %vm329, %v325, 0
    %v383 = vsel %vm329, %v378, 0
    %385 = vmatprep.subr.bf16.mxu0 0
    %386 = vmatpush1.bf16.xpose.msra.mxu0 %v383
    %387 = vmatprep.subr.bf16.mxu0 0
    %388 = vmatpush1.bf16.xpose.msra.mxu0 0
    %389 = vmatprep.subr.bf16.mxu0 0
    %390 = vmatpush1.bf16.xpose.msra.mxu0 0
    %391 = vmatprep.subr.bf16.mxu0 0
    %392 = vmatpush1.bf16.xpose.msra.mxu0 0
    %393 = vmatprep.subr.bf16.mxu0 0
    %394 = vmatpush1.bf16.xpose.msra.mxu0 0
    %395 = vmatprep.subr.bf16.mxu0 0
    %396 = vmatpush1.bf16.xpose.msra.mxu0 0
    %397 = vmatprep.subr.bf16.mxu0 0
    %398 = vmatpush1.bf16.xpose.msra.mxu0 0
    %399 = vmatprep.subr.bf16.mxu0 0
    %400 = vmatpush1.bf16.xpose.msra.mxu0 0
    %401 = vmatprep.subr.bf16.mxu0 0
    %402 = vmatpush1.bf16.xpose.msra.mxu0 0
    %403 = vmatprep.subr.bf16.mxu0 0
    %404 = vmatpush1.bf16.xpose.msra.mxu0 0
    %405 = vmatprep.subr.bf16.mxu0 0
    %406 = vmatpush1.bf16.xpose.msra.mxu0 0
    %407 = vmatprep.subr.bf16.mxu0 0
    %408 = vmatpush1.bf16.xpose.msra.mxu0 0
    %409 = vmatprep.subr.bf16.mxu0 0
    %410 = vmatpush1.bf16.xpose.msra.mxu0 0
    %411 = vmatprep.subr.bf16.mxu0 0
    %412 = vmatpush1.bf16.xpose.msra.mxu0 0
    %413 = vmatprep.subr.bf16.mxu0 0
    %414 = vmatpush1.bf16.xpose.msra.mxu0 0
    %415 = vmatprep.subr.bf16.mxu0 0
    %416 = vmatpush1.bf16.xpose.msra.mxu0 0
    %417 = vmatprep.mubr.bf16.mxu0 0
    %418 = vmatmul.mubr.bf16.gmra.mrb[0].mxu0 %v380
    %v419 = vpop.f32.mrb[0].mxu0
    %v420 = vadd.f32 0.0, %v419
    %v421 = vpop.f32.mrb[0].mxu0
    %v422 = vpop.f32.mrb[0].mxu0
    %v423 = vpop.f32.mrb[0].mxu0
    %424 = vdwg.mxu0
    %v425 = vmul.f32 %v371, 0.35355338
    %v426 = vmul.f32 %v420, 0.35355338
    %v427 = vsel %vm329, %v425, -inf
    %428 = vmax.xlane.f32.xlu0 %v427
    %v429 = vpop.xlane.xlu0 %428
    %v430 = vsel %vm329, %v426, -inf
    %431 = vmax.xlane.f32.xlu0 %v430
    %v432 = vpop.xlane.xlu0 %431
    %v433 = vsub.f32 %v425, %v429
    %v434 = vsub.f32 %v426, %v432
    %v435 = vmul.f32 %v433, 1.442695
    %v436 = vpow.pop %v435
    %v437 = vmul.f32 %v434, 1.442695
    %v438 = vpow.pop %v437
    %v439 = vsel %vm329, %v436, 0.0
    %440 = vadd.xlane.f32.xlu0 %v439
    %v441 = vpop.xlane.xlu0 %440
    %v442 = vsel %vm329, %v438, 0.0
    %443 = vadd.xlane.f32.xlu0 %v442
    %v444 = vpop.xlane.xlu0 %443
    %v445 = vrcp.pop %v441
    %v446 = vrcp.pop %v444
    %v447 = vmul.f32 %v436, %v445
    %v448 = vmul.f32 %v438, %v446
    %v449 = vpack.c.bf16 %v447, %v447
    %v450 = vpack.c.bf16 %v448, %v448
    %451 = vrot.lane.b32.xlu0 %v324, 64
    %v452 = vpop.permute.xlu0 %451
    %v454 = vsel %vm329, %v449, 0
    %vm456 = vcmask 1043456
    %v458 = vsel %vm456, %v452, 0
    %460 = vmatprep.subr.bf16.mxu0 0
    %461 = vmatpush1.bf16.msra.mxu0 %v458
    %462 = vmatprep.subr.bf16.mxu0 0
    %463 = vmatpush1.bf16.msra.mxu0 0
    %464 = vmatprep.subr.bf16.mxu0 0
    %465 = vmatpush1.bf16.msra.mxu0 0
    %466 = vmatprep.subr.bf16.mxu0 0
    %467 = vmatpush1.bf16.msra.mxu0 0
    %468 = vmatprep.subr.bf16.mxu0 0
    %469 = vmatpush1.bf16.msra.mxu0 0
    %470 = vmatprep.subr.bf16.mxu0 0
    %471 = vmatpush1.bf16.msra.mxu0 0
    %472 = vmatprep.subr.bf16.mxu0 0
    %473 = vmatpush1.bf16.msra.mxu0 0
    %474 = vmatprep.subr.bf16.mxu0 0
    %475 = vmatpush1.bf16.msra.mxu0 0
    %476 = vmatprep.subr.bf16.mxu0 0
    %477 = vmatpush1.bf16.msra.mxu0 0
    %478 = vmatprep.subr.bf16.mxu0 0
    %479 = vmatpush1.bf16.msra.mxu0 0
    %480 = vmatprep.subr.bf16.mxu0 0
    %481 = vmatpush1.bf16.msra.mxu0 0
    %482 = vmatprep.subr.bf16.mxu0 0
    %483 = vmatpush1.bf16.msra.mxu0 0
    %484 = vmatprep.subr.bf16.mxu0 0
    %485 = vmatpush1.bf16.msra.mxu0 0
    %486 = vmatprep.subr.bf16.mxu0 0
    %487 = vmatpush1.bf16.msra.mxu0 0
    %488 = vmatprep.subr.bf16.mxu0 0
    %489 = vmatpush1.bf16.msra.mxu0 0
    %490 = vmatprep.subr.bf16.mxu0 0
    %491 = vmatpush1.bf16.msra.mxu0 0
    %492 = vmatprep.mubr.bf16.mxu0 0
    %493 = vmatmul.mubr.bf16.gmra.mrb[0].mxu0 %v454
    %v494 = vpop.f32.mrb[0].mxu0
    %v495 = vadd.f32 0.0, %v494
    %v496 = vpop.f32.mrb[0].mxu0
    %v497 = vpop.f32.mrb[0].mxu0
    %v498 = vpop.f32.mrb[0].mxu0
    %499 = vdwg.mxu0
    %500 = vrot.lane.b32.xlu0 %v325, 64
    %v501 = vpop.permute.xlu0 %500
    %v503 = vsel %vm329, %v450, 0
    %v506 = vsel %vm456, %v501, 0
    %508 = vmatprep.subr.bf16.mxu0 0
    %509 = vmatpush1.bf16.msra.mxu0 %v506
    %510 = vmatprep.subr.bf16.mxu0 0
    %511 = vmatpush1.bf16.msra.mxu0 0
    %512 = vmatprep.subr.bf16.mxu0 0
    %513 = vmatpush1.bf16.msra.mxu0 0
    %514 = vmatprep.subr.bf16.mxu0 0
    %515 = vmatpush1.bf16.msra.mxu0 0
    %516 = vmatprep.subr.bf16.mxu0 0
    %517 = vmatpush1.bf16.msra.mxu0 0
    %518 = vmatprep.subr.bf16.mxu0 0
    %519 = vmatpush1.bf16.msra.mxu0 0
    %520 = vmatprep.subr.bf16.mxu0 0
    %521 = vmatpush1.bf16.msra.mxu0 0
    %522 = vmatprep.subr.bf16.mxu0 0
    %523 = vmatpush1.bf16.msra.mxu0 0
    %524 = vmatprep.subr.bf16.mxu0 0
    %525 = vmatpush1.bf16.msra.mxu0 0
    %526 = vmatprep.subr.bf16.mxu0 0
    %527 = vmatpush1.bf16.msra.mxu0 0
    %528 = vmatprep.subr.bf16.mxu0 0
    %529 = vmatpush1.bf16.msra.mxu0 0
    %530 = vmatprep.subr.bf16.mxu0 0
    %531 = vmatpush1.bf16.msra.mxu0 0
    %532 = vmatprep.subr.bf16.mxu0 0
    %533 = vmatpush1.bf16.msra.mxu0 0
    %534 = vmatprep.subr.bf16.mxu0 0
    %535 = vmatpush1.bf16.msra.mxu0 0
    %536 = vmatprep.subr.bf16.mxu0 0
    %537 = vmatpush1.bf16.msra.mxu0 0
    %538 = vmatprep.subr.bf16.mxu0 0
    %539 = vmatpush1.bf16.msra.mxu0 0
    %540 = vmatprep.mubr.bf16.mxu0 0
    %541 = vmatmul.mubr.bf16.gmra.mrb[0].mxu0 %v503
    %v542 = vpop.f32.mrb[0].mxu0
    %v543 = vadd.f32 0.0, %v542
    %v544 = vpop.f32.mrb[0].mxu0
    %v545 = vpop.f32.mrb[0].mxu0
    %v546 = vpop.f32.mrb[0].mxu0
    %547 = vdwg.mxu0
    %548 = vrot.lane.b32.xlu0 %v324, 120
    %v549 = vpop.permute.xlu0 %548
    %550 = vrot.lane.b32.xlu0 %v324, 88
    %v551 = vpop.permute.xlu0 %550
    %v553 = vsel %vm329, %v549, 0
    %v556 = vsel %vm329, %v551, 0
    %558 = vmatprep.subr.bf16.mxu0 0
    %559 = vmatpush1.bf16.xpose.msra.mxu0 %v556
    %560 = vmatprep.subr.bf16.mxu0 0
    %561 = vmatpush1.bf16.xpose.msra.mxu0 0
    %562 = vmatprep.subr.bf16.mxu0 0
    %563 = vmatpush1.bf16.xpose.msra.mxu0 0
    %564 = vmatprep.subr.bf16.mxu0 0
    %565 = vmatpush1.bf16.xpose.msra.mxu0 0
    %566 = vmatprep.subr.bf16.mxu0 0
    %567 = vmatpush1.bf16.xpose.msra.mxu0 0
    %568 = vmatprep.subr.bf16.mxu0 0
    %569 = vmatpush1.bf16.xpose.msra.mxu0 0
    %570 = vmatprep.subr.bf16.mxu0 0
    %571 = vmatpush1.bf16.xpose.msra.mxu0 0
    %572 = vmatprep.subr.bf16.mxu0 0
    %573 = vmatpush1.bf16.xpose.msra.mxu0 0
    %574 = vmatprep.subr.bf16.mxu0 0
    %575 = vmatpush1.bf16.xpose.msra.mxu0 0
    %576 = vmatprep.subr.bf16.mxu0 0
    %577 = vmatpush1.bf16.xpose.msra.mxu0 0
    %578 = vmatprep.subr.bf16.mxu0 0
    %579 = vmatpush1.bf16.xpose.msra.mxu0 0
    %580 = vmatprep.subr.bf16.mxu0 0
    %581 = vmatpush1.bf16.xpose.msra.mxu0 0
    %582 = vmatprep.subr.bf16.mxu0 0
    %583 = vmatpush1.bf16.xpose.msra.mxu0 0
    %584 = vmatprep.subr.bf16.mxu0 0
    %585 = vmatpush1.bf16.xpose.msra.mxu0 0
    %586 = vmatprep.subr.bf16.mxu0 0
    %587 = vmatpush1.bf16.xpose.msra.mxu0 0
    %588 = vmatprep.subr.bf16.mxu0 0
    %589 = vmatpush1.bf16.xpose.msra.mxu0 0
    %590 = vmatprep.mubr.bf16.mxu0 0
    %591 = vmatmul.mubr.bf16.gmra.mrb[0].mxu0 %v553
    %v592 = vpop.f32.mrb[0].mxu0
    %v593 = vadd.f32 0.0, %v592
    %v594 = vpop.f32.mrb[0].mxu0
    %v595 = vpop.f32.mrb[0].mxu0
    %v596 = vpop.f32.mrb[0].mxu0
    %597 = vdwg.mxu0
    %598 = vrot.lane.b32.xlu0 %v325, 120
    %v599 = vpop.permute.xlu0 %598
    %600 = vrot.lane.b32.xlu0 %v325, 88
    %v601 = vpop.permute.xlu0 %600
    %v603 = vsel %vm329, %v599, 0
    %v606 = vsel %vm329, %v601, 0
    %608 = vmatprep.subr.bf16.mxu0 0
    %609 = vmatpush1.bf16.xpose.msra.mxu0 %v606
    %610 = vmatprep.subr.bf16.mxu0 0
    %611 = vmatpush1.bf16.xpose.msra.mxu0 0
    %612 = vmatprep.subr.bf16.mxu0 0
    %613 = vmatpush1.bf16.xpose.msra.mxu0 0
    %614 = vmatprep.subr.bf16.mxu0 0
    %615 = vmatpush1.bf16.xpose.msra.mxu0 0
    %616 = vmatprep.subr.bf16.mxu0 0
    %617 = vmatpush1.bf16.xpose.msra.mxu0 0
    %618 = vmatprep.subr.bf16.mxu0 0
    %619 = vmatpush1.bf16.xpose.msra.mxu0 0
    %620 = vmatprep.subr.bf16.mxu0 0
    %621 = vmatpush1.bf16.xpose.msra.mxu0 0
    %622 = vmatprep.subr.bf16.mxu0 0
    %623 = vmatpush1.bf16.xpose.msra.mxu0 0
    %624 = vmatprep.subr.bf16.mxu0 0
    %625 = vmatpush1.bf16.xpose.msra.mxu0 0
    %626 = vmatprep.subr.bf16.mxu0 0
    %627 = vmatpush1.bf16.xpose.msra.mxu0 0
    %628 = vmatprep.subr.bf16.mxu0 0
    %629 = vmatpush1.bf16.xpose.msra.mxu0 0
    %630 = vmatprep.subr.bf16.mxu0 0
    %631 = vmatpush1.bf16.xpose.msra.mxu0 0
    %632 = vmatprep.subr.bf16.mxu0 0
    %633 = vmatpush1.bf16.xpose.msra.mxu0 0
    %634 = vmatprep.subr.bf16.mxu0 0
    %635 = vmatpush1.bf16.xpose.msra.mxu0 0
    %636 = vmatprep.subr.bf16.mxu0 0
    %637 = vmatpush1.bf16.xpose.msra.mxu0 0
    %638 = vmatprep.subr.bf16.mxu0 0
    %639 = vmatpush1.bf16.xpose.msra.mxu0 0
    %640 = vmatprep.mubr.bf16.mxu0 0
    %641 = vmatmul.mubr.bf16.gmra.mrb[0].mxu0 %v603
    %v642 = vpop.f32.mrb[0].mxu0
    %v643 = vadd.f32 0.0, %v642
    %v644 = vpop.f32.mrb[0].mxu0
    %v645 = vpop.f32.mrb[0].mxu0
    %v646 = vpop.f32.mrb[0].mxu0
    %647 = vdwg.mxu0
    %v648 = vmul.f32 %v593, 0.35355338
    %v649 = vmul.f32 %v643, 0.35355338
    %v650 = vsel %vm329, %v648, -inf
    %651 = vmax.xlane.f32.xlu0 %v650
    %v652 = vpop.xlane.xlu0 %651
    %v653 = vsel %vm329, %v649, -inf
    %654 = vmax.xlane.f32.xlu0 %v653
    %v655 = vpop.xlane.xlu0 %654
    %v656 = vsub.f32 %v648, %v652
    %v657 = vsub.f32 %v649, %v655
    %v658 = vmul.f32 %v656, 1.442695
    %v659 = vpow.pop %v658
    %v660 = vmul.f32 %v657, 1.442695
    %v661 = vpow.pop %v660
    %v662 = vsel %vm329, %v659, 0.0
    %663 = vadd.xlane.f32.xlu0 %v662
    %v664 = vpop.xlane.xlu0 %663
    %v665 = vsel %vm329, %v661, 0.0
    %666 = vadd.xlane.f32.xlu0 %v665
    %v667 = vpop.xlane.xlu0 %666
    %v668 = vrcp.pop %v664
    %v669 = vrcp.pop %v667
    %v670 = vmul.f32 %v659, %v668
    %v671 = vmul.f32 %v661, %v669
    %v672 = vpack.c.bf16 %v670, %v670
    %v673 = vpack.c.bf16 %v671, %v671
    %674 = vrot.lane.b32.xlu0 %v324, 56
    %v675 = vpop.permute.xlu0 %674
    %v677 = vsel %vm329, %v672, 0
    %v680 = vsel %vm456, %v675, 0
    %682 = vmatprep.subr.bf16.mxu0 0
    %683 = vmatpush1.bf16.msra.mxu0 %v680
    %684 = vmatprep.subr.bf16.mxu0 0
    %685 = vmatpush1.bf16.msra.mxu0 0
    %686 = vmatprep.subr.bf16.mxu0 0
    %687 = vmatpush1.bf16.msra.mxu0 0
    %688 = vmatprep.subr.bf16.mxu0 0
    %689 = vmatpush1.bf16.msra.mxu0 0
    %690 = vmatprep.subr.bf16.mxu0 0
    %691 = vmatpush1.bf16.msra.mxu0 0
    %692 = vmatprep.subr.bf16.mxu0 0
    %693 = vmatpush1.bf16.msra.mxu0 0
    %694 = vmatprep.subr.bf16.mxu0 0
    %695 = vmatpush1.bf16.msra.mxu0 0
    %696 = vmatprep.subr.bf16.mxu0 0
    %697 = vmatpush1.bf16.msra.mxu0 0
    %698 = vmatprep.subr.bf16.mxu0 0
    %699 = vmatpush1.bf16.msra.mxu0 0
    %700 = vmatprep.subr.bf16.mxu0 0
    %701 = vmatpush1.bf16.msra.mxu0 0
    %702 = vmatprep.subr.bf16.mxu0 0
    %703 = vmatpush1.bf16.msra.mxu0 0
    %704 = vmatprep.subr.bf16.mxu0 0
    %705 = vmatpush1.bf16.msra.mxu0 0
    %706 = vmatprep.subr.bf16.mxu0 0
    %707 = vmatpush1.bf16.msra.mxu0 0
    %708 = vmatprep.subr.bf16.mxu0 0
    %709 = vmatpush1.bf16.msra.mxu0 0
    %710 = vmatprep.subr.bf16.mxu0 0
    %711 = vmatpush1.bf16.msra.mxu0 0
    %712 = vmatprep.subr.bf16.mxu0 0
    %713 = vmatpush1.bf16.msra.mxu0 0
    %714 = vmatprep.mubr.bf16.mxu0 0
    %715 = vmatmul.mubr.bf16.gmra.mrb[0].mxu0 %v677
    %v716 = vpop.f32.mrb[0].mxu0
    %v717 = vadd.f32 0.0, %v716
    %v718 = vpop.f32.mrb[0].mxu0
    %v719 = vpop.f32.mrb[0].mxu0
    %v720 = vpop.f32.mrb[0].mxu0
    %721 = vdwg.mxu0
    %722 = vrot.lane.b32.xlu0 %v325, 56
    %v723 = vpop.permute.xlu0 %722
    %v725 = vsel %vm329, %v673, 0
    %v728 = vsel %vm456, %v723, 0
    %730 = vmatprep.subr.bf16.mxu0 0
    %731 = vmatpush1.bf16.msra.mxu0 %v728
    %732 = vmatprep.subr.bf16.mxu0 0
    %733 = vmatpush1.bf16.msra.mxu0 0
    %734 = vmatprep.subr.bf16.mxu0 0
    %735 = vmatpush1.bf16.msra.mxu0 0
    %736 = vmatprep.subr.bf16.mxu0 0
    %737 = vmatpush1.bf16.msra.mxu0 0
    %738 = vmatprep.subr.bf16.mxu0 0
    %739 = vmatpush1.bf16.msra.mxu0 0
    %740 = vmatprep.subr.bf16.mxu0 0
    %741 = vmatpush1.bf16.msra.mxu0 0
    %742 = vmatprep.subr.bf16.mxu0 0
    %743 = vmatpush1.bf16.msra.mxu0 0
    %744 = vmatprep.subr.bf16.mxu0 0
    %745 = vmatpush1.bf16.msra.mxu0 0
    %746 = vmatprep.subr.bf16.mxu0 0
    %747 = vmatpush1.bf16.msra.mxu0 0
    %748 = vmatprep.subr.bf16.mxu0 0
    %749 = vmatpush1.bf16.msra.mxu0 0
    %750 = vmatprep.subr.bf16.mxu0 0
    %751 = vmatpush1.bf16.msra.mxu0 0
    %752 = vmatprep.subr.bf16.mxu0 0
    %753 = vmatpush1.bf16.msra.mxu0 0
    %754 = vmatprep.subr.bf16.mxu0 0
    %755 = vmatpush1.bf16.msra.mxu0 0
    %756 = vmatprep.subr.bf16.mxu0 0
    %757 = vmatpush1.bf16.msra.mxu0 0
    %758 = vmatprep.subr.bf16.mxu0 0
    %759 = vmatpush1.bf16.msra.mxu0 0
    %760 = vmatprep.subr.bf16.mxu0 0
    %761 = vmatpush1.bf16.msra.mxu0 0
    %762 = vmatprep.mubr.bf16.mxu0 0
    %763 = vmatmul.mubr.bf16.gmra.mrb[0].mxu0 %v725
    %v764 = vpop.f32.mrb[0].mxu0
    %v765 = vadd.f32 0.0, %v764
    %v766 = vpop.f32.mrb[0].mxu0
    %v767 = vpop.f32.mrb[0].mxu0
    %v768 = vpop.f32.mrb[0].mxu0
    %769 = vdwg.mxu0
    %770 = vrot.lane.b32.xlu0 %v324, 112
    %v771 = vpop.permute.xlu0 %770
    %772 = vrot.lane.b32.xlu0 %v324, 80
    %v773 = vpop.permute.xlu0 %772
    %v775 = vsel %vm329, %v771, 0
    %v778 = vsel %vm329, %v773, 0
    %780 = vmatprep.subr.bf16.mxu0 0
    %781 = vmatpush1.bf16.xpose.msra.mxu0 %v778
    %782 = vmatprep.subr.bf16.mxu0 0
    %783 = vmatpush1.bf16.xpose.msra.mxu0 0
    %784 = vmatprep.subr.bf16.mxu0 0
    %785 = vmatpush1.bf16.xpose.msra.mxu0 0
    %786 = vmatprep.subr.bf16.mxu0 0
    %787 = vmatpush1.bf16.xpose.msra.mxu0 0
    %788 = vmatprep.subr.bf16.mxu0 0
    %789 = vmatpush1.bf16.xpose.msra.mxu0 0
    %790 = vmatprep.subr.bf16.mxu0 0
    %791 = vmatpush1.bf16.xpose.msra.mxu0 0
    %792 = vmatprep.subr.bf16.mxu0 0
    %793 = vmatpush1.bf16.xpose.msra.mxu0 0
    %794 = vmatprep.subr.bf16.mxu0 0
    %795 = vmatpush1.bf16.xpose.msra.mxu0 0
    %796 = vmatprep.subr.bf16.mxu0 0
    %797 = vmatpush1.bf16.xpose.msra.mxu0 0
    %798 = vmatprep.subr.bf16.mxu0 0
    %799 = vmatpush1.bf16.xpose.msra.mxu0 0
    %800 = vmatprep.subr.bf16.mxu0 0
    %801 = vmatpush1.bf16.xpose.msra.mxu0 0
    %802 = vmatprep.subr.bf16.mxu0 0
    %803 = vmatpush1.bf16.xpose.msra.mxu0 0
    %804 = vmatprep.subr.bf16.mxu0 0
    %805 = vmatpush1.bf16.xpose.msra.mxu0 0
    %806 = vmatprep.subr.bf16.mxu0 0
    %807 = vmatpush1.bf16.xpose.msra.mxu0 0
    %808 = vmatprep.subr.bf16.mxu0 0
    %809 = vmatpush1.bf16.xpose.msra.mxu0 0
    %810 = vmatprep.subr.bf16.mxu0 0
    %811 = vmatpush1.bf16.xpose.msra.mxu0 0
    %812 = vmatprep.mubr.bf16.mxu0 0
    %813 = vmatmul.mubr.bf16.gmra.mrb[0].mxu0 %v775
    %v814 = vpop.f32.mrb[0].mxu0
    %v815 = vadd.f32 0.0, %v814
    %v816 = vpop.f32.mrb[0].mxu0
    %v817 = vpop.f32.mrb[0].mxu0
    %v818 = vpop.f32.mrb[0].mxu0
    %819 = vdwg.mxu0
    %820 = vrot.lane.b32.xlu0 %v325, 112
    %v821 = vpop.permute.xlu0 %820
    %822 = vrot.lane.b32.xlu0 %v325, 80
    %v823 = vpop.permute.xlu0 %822
    %v825 = vsel %vm329, %v821, 0
    %v828 = vsel %vm329, %v823, 0
    %830 = vmatprep.subr.bf16.mxu0 0
    %831 = vmatpush1.bf16.xpose.msra.mxu0 %v828
    %832 = vmatprep.subr.bf16.mxu0 0
    %833 = vmatpush1.bf16.xpose.msra.mxu0 0
    %834 = vmatprep.subr.bf16.mxu0 0
    %835 = vmatpush1.bf16.xpose.msra.mxu0 0
    %836 = vmatprep.subr.bf16.mxu0 0
    %837 = vmatpush1.bf16.xpose.msra.mxu0 0
    %838 = vmatprep.subr.bf16.mxu0 0
    %839 = vmatpush1.bf16.xpose.msra.mxu0 0
    %840 = vmatprep.subr.bf16.mxu0 0
    %841 = vmatpush1.bf16.xpose.msra.mxu0 0
    %842 = vmatprep.subr.bf16.mxu0 0
    %843 = vmatpush1.bf16.xpose.msra.mxu0 0
    %844 = vmatprep.subr.bf16.mxu0 0
    %845 = vmatpush1.bf16.xpose.msra.mxu0 0
    %846 = vmatprep.subr.bf16.mxu0 0
    %847 = vmatpush1.bf16.xpose.msra.mxu0 0
    %848 = vmatprep.subr.bf16.mxu0 0
    %849 = vmatpush1.bf16.xpose.msra.mxu0 0
    %850 = vmatprep.subr.bf16.mxu0 0
    %851 = vmatpush1.bf16.xpose.msra.mxu0 0
    %852 = vmatprep.subr.bf16.mxu0 0
    %853 = vmatpush1.bf16.xpose.msra.mxu0 0
    %854 = vmatprep.subr.bf16.mxu0 0
    %855 = vmatpush1.bf16.xpose.msra.mxu0 0
    %856 = vmatprep.subr.bf16.mxu0 0
    %857 = vmatpush1.bf16.xpose.msra.mxu0 0
    %858 = vmatprep.subr.bf16.mxu0 0
    %859 = vmatpush1.bf16.xpose.msra.mxu0 0
    %860 = vmatprep.subr.bf16.mxu0 0
    %861 = vmatpush1.bf16.xpose.msra.mxu0 0
    %862 = vmatprep.mubr.bf16.mxu0 0
    %863 = vmatmul.mubr.bf16.gmra.mrb[0].mxu0 %v825
    %v864 = vpop.f32.mrb[0].mxu0
    %v865 = vadd.f32 0.0, %v864
    %v866 = vpop.f32.mrb[0].mxu0
    %v867 = vpop.f32.mrb[0].mxu0
    %v868 = vpop.f32.mrb[0].mxu0
    %869 = vdwg.mxu0
    %v870 = vmul.f32 %v815, 0.35355338
    %v871 = vmul.f32 %v865, 0.35355338
    %v872 = vsel %vm329, %v870, -inf
    %873 = vmax.xlane.f32.xlu0 %v872
    %v874 = vpop.xlane.xlu0 %873
    %v875 = vsel %vm329, %v871, -inf
    %876 = vmax.xlane.f32.xlu0 %v875
    %v877 = vpop.xlane.xlu0 %876
    %v878 = vsub.f32 %v870, %v874
    %v879 = vsub.f32 %v871, %v877
    %v880 = vmul.f32 %v878, 1.442695
    %v881 = vpow.pop %v880
    %v882 = vmul.f32 %v879, 1.442695
    %v883 = vpow.pop %v882
    %v884 = vsel %vm329, %v881, 0.0
    %885 = vadd.xlane.f32.xlu0 %v884
    %v886 = vpop.xlane.xlu0 %885
    %v887 = vsel %vm329, %v883, 0.0
    %888 = vadd.xlane.f32.xlu0 %v887
    %v889 = vpop.xlane.xlu0 %888
    %v890 = vrcp.pop %v886
    %v891 = vrcp.pop %v889
    %v892 = vmul.f32 %v881, %v890
    %v893 = vmul.f32 %v883, %v891
    %v894 = vpack.c.bf16 %v892, %v892
    %v895 = vpack.c.bf16 %v893, %v893
    %896 = vrot.lane.b32.xlu0 %v324, 48
    %v897 = vpop.permute.xlu0 %896
    %v899 = vsel %vm329, %v894, 0
    %v902 = vsel %vm456, %v897, 0
    %904 = vmatprep.subr.bf16.mxu0 0
    %905 = vmatpush1.bf16.msra.mxu0 %v902
    %906 = vmatprep.subr.bf16.mxu0 0
    %907 = vmatpush1.bf16.msra.mxu0 0
    %908 = vmatprep.subr.bf16.mxu0 0
    %909 = vmatpush1.bf16.msra.mxu0 0
    %910 = vmatprep.subr.bf16.mxu0 0
    %911 = vmatpush1.bf16.msra.mxu0 0
    %912 = vmatprep.subr.bf16.mxu0 0
    %913 = vmatpush1.bf16.msra.mxu0 0
    %914 = vmatprep.subr.bf16.mxu0 0
    %915 = vmatpush1.bf16.msra.mxu0 0
    %916 = vmatprep.subr.bf16.mxu0 0
    %917 = vmatpush1.bf16.msra.mxu0 0
    %918 = vmatprep.subr.bf16.mxu0 0
    %919 = vmatpush1.bf16.msra.mxu0 0
    %920 = vmatprep.subr.bf16.mxu0 0
    %921 = vmatpush1.bf16.msra.mxu0 0
    %922 = vmatprep.subr.bf16.mxu0 0
    %923 = vmatpush1.bf16.msra.mxu0 0
    %924 = vmatprep.subr.bf16.mxu0 0
    %925 = vmatpush1.bf16.msra.mxu0 0
    %926 = vmatprep.subr.bf16.mxu0 0
    %927 = vmatpush1.bf16.msra.mxu0 0
    %928 = vmatprep.subr.bf16.mxu0 0
    %929 = vmatpush1.bf16.msra.mxu0 0
    %930 = vmatprep.subr.bf16.mxu0 0
    %931 = vmatpush1.bf16.msra.mxu0 0
    %932 = vmatprep.subr.bf16.mxu0 0
    %933 = vmatpush1.bf16.msra.mxu0 0
    %934 = vmatprep.subr.bf16.mxu0 0
    %935 = vmatpush1.bf16.msra.mxu0 0
    %936 = vmatprep.mubr.bf16.mxu0 0
    %937 = vmatmul.mubr.bf16.gmra.mrb[0].mxu0 %v899
    %v938 = vpop.f32.mrb[0].mxu0
    %v939 = vadd.f32 0.0, %v938
    %v940 = vpop.f32.mrb[0].mxu0
    %v941 = vpop.f32.mrb[0].mxu0
    %v942 = vpop.f32.mrb[0].mxu0
    %943 = vdwg.mxu0
    %944 = vrot.lane.b32.xlu0 %v325, 48
    %v945 = vpop.permute.xlu0 %944
    %v947 = vsel %vm329, %v895, 0
    %v950 = vsel %vm456, %v945, 0
    %952 = vmatprep.subr.bf16.mxu0 0
    %953 = vmatpush1.bf16.msra.mxu0 %v950
    %954 = vmatprep.subr.bf16.mxu0 0
    %955 = vmatpush1.bf16.msra.mxu0 0
    %956 = vmatprep.subr.bf16.mxu0 0
    %957 = vmatpush1.bf16.msra.mxu0 0
    %958 = vmatprep.subr.bf16.mxu0 0
    %959 = vmatpush1.bf16.msra.mxu0 0
    %960 = vmatprep.subr.bf16.mxu0 0
    %961 = vmatpush1.bf16.msra.mxu0 0
    %962 = vmatprep.subr.bf16.mxu0 0
    %963 = vmatpush1.bf16.msra.mxu0 0
    %964 = vmatprep.subr.bf16.mxu0 0
    %965 = vmatpush1.bf16.msra.mxu0 0
    %966 = vmatprep.subr.bf16.mxu0 0
    %967 = vmatpush1.bf16.msra.mxu0 0
    %968 = vmatprep.subr.bf16.mxu0 0
    %969 = vmatpush1.bf16.msra.mxu0 0
    %970 = vmatprep.subr.bf16.mxu0 0
    %971 = vmatpush1.bf16.msra.mxu0 0
    %972 = vmatprep.subr.bf16.mxu0 0
    %973 = vmatpush1.bf16.msra.mxu0 0
    %974 = vmatprep.subr.bf16.mxu0 0
    %975 = vmatpush1.bf16.msra.mxu0 0
    %976 = vmatprep.subr.bf16.mxu0 0
    %977 = vmatpush1.bf16.msra.mxu0 0
    %978 = vmatprep.subr.bf16.mxu0 0
    %979 = vmatpush1.bf16.msra.mxu0 0
    %980 = vmatprep.subr.bf16.mxu0 0
    %981 = vmatpush1.bf16.msra.mxu0 0
    %982 = vmatprep.subr.bf16.mxu0 0
    %983 = vmatpush1.bf16.msra.mxu0 0
    %984 = vmatprep.mubr.bf16.mxu0 0
    %985 = vmatmul.mubr.bf16.gmra.mrb[0].mxu0 %v947
    %v986 = vpop.f32.mrb[0].mxu0
    %v987 = vadd.f32 0.0, %v986
    %v988 = vpop.f32.mrb[0].mxu0
    %v989 = vpop.f32.mrb[0].mxu0
    %v990 = vpop.f32.mrb[0].mxu0
    %991 = vdwg.mxu0
    %992 = vrot.lane.b32.xlu0 %v324, 104
    %v993 = vpop.permute.xlu0 %992
    %994 = vrot.lane.b32.xlu0 %v324, 72
    %v995 = vpop.permute.xlu0 %994
    %v997 = vsel %vm329, %v993, 0
    %v1000 = vsel %vm329, %v995, 0
    %1002 = vmatprep.subr.bf16.mxu0 0
    %1003 = vmatpush1.bf16.xpose.msra.mxu0 %v1000
    %1004 = vmatprep.subr.bf16.mxu0 0
    %1005 = vmatpush1.bf16.xpose.msra.mxu0 0
    %1006 = vmatprep.subr.bf16.mxu0 0
    %1007 = vmatpush1.bf16.xpose.msra.mxu0 0
    %1008 = vmatprep.subr.bf16.mxu0 0
    %1009 = vmatpush1.bf16.xpose.msra.mxu0 0
    %1010 = vmatprep.subr.bf16.mxu0 0
    %1011 = vmatpush1.bf16.xpose.msra.mxu0 0
    %1012 = vmatprep.subr.bf16.mxu0 0
    %1013 = vmatpush1.bf16.xpose.msra.mxu0 0
    %1014 = vmatprep.subr.bf16.mxu0 0
    %1015 = vmatpush1.bf16.xpose.msra.mxu0 0
    %1016 = vmatprep.subr.bf16.mxu0 0
    %1017 = vmatpush1.bf16.xpose.msra.mxu0 0
    %1018 = vmatprep.subr.bf16.mxu0 0
    %1019 = vmatpush1.bf16.xpose.msra.mxu0 0
    %1020 = vmatprep.subr.bf16.mxu0 0
    %1021 = vmatpush1.bf16.xpose.msra.mxu0 0
    %1022 = vmatprep.subr.bf16.mxu0 0
    %1023 = vmatpush1.bf16.xpose.msra.mxu0 0
    %1024 = vmatprep.subr.bf16.mxu0 0
    %1025 = vmatpush1.bf16.xpose.msra.mxu0 0
    %1026 = vmatprep.subr.bf16.mxu0 0
    %1027 = vmatpush1.bf16.xpose.msra.mxu0 0
    %1028 = vmatprep.subr.bf16.mxu0 0
    %1029 = vmatpush1.bf16.xpose.msra.mxu0 0
    %1030 = vmatprep.subr.bf16.mxu0 0
    %1031 = vmatpush1.bf16.xpose.msra.mxu0 0
    %1032 = vmatprep.subr.bf16.mxu0 0
    %1033 = vmatpush1.bf16.xpose.msra.mxu0 0
    %1034 = vmatprep.mubr.bf16.mxu0 0
    %1035 = vmatmul.mubr.bf16.gmra.mrb[0].mxu0 %v997
    %v1036 = vpop.f32.mrb[0].mxu0
    %v1037 = vadd.f32 0.0, %v1036
    %v1038 = vpop.f32.mrb[0].mxu0
    %v1039 = vpop.f32.mrb[0].mxu0
    %v1040 = vpop.f32.mrb[0].mxu0
    %1041 = vdwg.mxu0
    %1042 = vrot.lane.b32.xlu0 %v325, 104
    %v1043 = vpop.permute.xlu0 %1042
    %1044 = vrot.lane.b32.xlu0 %v325, 72
    %v1045 = vpop.permute.xlu0 %1044
    %v1047 = vsel %vm329, %v1043, 0
    %v1050 = vsel %vm329, %v1045, 0
    %1052 = vmatprep.subr.bf16.mxu0 0
    %1053 = vmatpush1.bf16.xpose.msra.mxu0 %v1050
    %1054 = vmatprep.subr.bf16.mxu0 0
    %1055 = vmatpush1.bf16.xpose.msra.mxu0 0
    %1056 = vmatprep.subr.bf16.mxu0 0
    %1057 = vmatpush1.bf16.xpose.msra.mxu0 0
    %1058 = vmatprep.subr.bf16.mxu0 0
    %1059 = vmatpush1.bf16.xpose.msra.mxu0 0
    %1060 = vmatprep.subr.bf16.mxu0 0
    %1061 = vmatpush1.bf16.xpose.msra.mxu0 0
    %1062 = vmatprep.subr.bf16.mxu0 0
    %1063 = vmatpush1.bf16.xpose.msra.mxu0 0
    %1064 = vmatprep.subr.bf16.mxu0 0
    %1065 = vmatpush1.bf16.xpose.msra.mxu0 0
    %1066 = vmatprep.subr.bf16.mxu0 0
    %1067 = vmatpush1.bf16.xpose.msra.mxu0 0
    %1068 = vmatprep.subr.bf16.mxu0 0
    %1069 = vmatpush1.bf16.xpose.msra.mxu0 0
    %1070 = vmatprep.subr.bf16.mxu0 0
    %1071 = vmatpush1.bf16.xpose.msra.mxu0 0
    %1072 = vmatprep.subr.bf16.mxu0 0
    %1073 = vmatpush1.bf16.xpose.msra.mxu0 0
    %1074 = vmatprep.subr.bf16.mxu0 0
    %1075 = vmatpush1.bf16.xpose.msra.mxu0 0
    %1076 = vmatprep.subr.bf16.mxu0 0
    %1077 = vmatpush1.bf16.xpose.msra.mxu0 0
    %1078 = vmatprep.subr.bf16.mxu0 0
    %1079 = vmatpush1.bf16.xpose.msra.mxu0 0
    %1080 = vmatprep.subr.bf16.mxu0 0
    %1081 = vmatpush1.bf16.xpose.msra.mxu0 0
    %1082 = vmatprep.subr.bf16.mxu0 0
    %1083 = vmatpush1.bf16.xpose.msra.mxu0 0
    %1084 = vmatprep.mubr.bf16.mxu0 0
    %1085 = vmatmul.mubr.bf16.gmra.mrb[0].mxu0 %v1047
    %v1086 = vpop.f32.mrb[0].mxu0
    %v1087 = vadd.f32 0.0, %v1086
    %v1088 = vpop.f32.mrb[0].mxu0
    %v1089 = vpop.f32.mrb[0].mxu0
    %v1090 = vpop.f32.mrb[0].mxu0
    %1091 = vdwg.mxu0
    %v1092 = vmul.f32 %v1037, 0.35355338
    %v1093 = vmul.f32 %v1087, 0.35355338
    %v1094 = vsel %vm329, %v1092, -inf
    %1095 = vmax.xlane.f32.xlu0 %v1094
    %v1096 = vpop.xlane.xlu0 %1095
    %v1097 = vsel %vm329, %v1093, -inf
    %1098 = vmax.xlane.f32.xlu0 %v1097
    %v1099 = vpop.xlane.xlu0 %1098
    %v1100 = vsub.f32 %v1092, %v1096
    %v1101 = vsub.f32 %v1093, %v1099
    %v1102 = vmul.f32 %v1100, 1.442695
    %v1103 = vpow.pop %v1102
    %v1104 = vmul.f32 %v1101, 1.442695
    %v1105 = vpow.pop %v1104
    %v1106 = vsel %vm329, %v1103, 0.0
    %1107 = vadd.xlane.f32.xlu0 %v1106
    %v1108 = vpop.xlane.xlu0 %1107
    %v1109 = vsel %vm329, %v1105, 0.0
    %1110 = vadd.xlane.f32.xlu0 %v1109
    %v1111 = vpop.xlane.xlu0 %1110
    %v1112 = vrcp.pop %v1108
    %v1113 = vrcp.pop %v1111
    %v1114 = vmul.f32 %v1103, %v1112
    %v1115 = vmul.f32 %v1105, %v1113
    %v1116 = vpack.c.bf16 %v1114, %v1114
    %v1117 = vpack.c.bf16 %v1115, %v1115
    %1118 = vrot.lane.b32.xlu0 %v324, 40
    %v1119 = vpop.permute.xlu0 %1118
    %v1121 = vsel %vm329, %v1116, 0
    %v1124 = vsel %vm456, %v1119, 0
    %1126 = vmatprep.subr.bf16.mxu0 0
    %1127 = vmatpush1.bf16.msra.mxu0 %v1124
    %1128 = vmatprep.subr.bf16.mxu0 0
    %1129 = vmatpush1.bf16.msra.mxu0 0
    %1130 = vmatprep.subr.bf16.mxu0 0
    %1131 = vmatpush1.bf16.msra.mxu0 0
    %1132 = vmatprep.subr.bf16.mxu0 0
    %1133 = vmatpush1.bf16.msra.mxu0 0
    %1134 = vmatprep.subr.bf16.mxu0 0
    %1135 = vmatpush1.bf16.msra.mxu0 0
    %1136 = vmatprep.subr.bf16.mxu0 0
    %1137 = vmatpush1.bf16.msra.mxu0 0
    %1138 = vmatprep.subr.bf16.mxu0 0
    %1139 = vmatpush1.bf16.msra.mxu0 0
    %1140 = vmatprep.subr.bf16.mxu0 0
    %1141 = vmatpush1.bf16.msra.mxu0 0
    %1142 = vmatprep.subr.bf16.mxu0 0
    %1143 = vmatpush1.bf16.msra.mxu0 0
    %1144 = vmatprep.subr.bf16.mxu0 0
    %1145 = vmatpush1.bf16.msra.mxu0 0
    %1146 = vmatprep.subr.bf16.mxu0 0
    %1147 = vmatpush1.bf16.msra.mxu0 0
    %1148 = vmatprep.subr.bf16.mxu0 0
    %1149 = vmatpush1.bf16.msra.mxu0 0
    %1150 = vmatprep.subr.bf16.mxu0 0
    %1151 = vmatpush1.bf16.msra.mxu0 0
    %1152 = vmatprep.subr.bf16.mxu0 0
    %1153 = vmatpush1.bf16.msra.mxu0 0
    %1154 = vmatprep.subr.bf16.mxu0 0
    %1155 = vmatpush1.bf16.msra.mxu0 0
    %1156 = vmatprep.subr.bf16.mxu0 0
    %1157 = vmatpush1.bf16.msra.mxu0 0
    %1158 = vmatprep.mubr.bf16.mxu0 0
    %1159 = vmatmul.mubr.bf16.gmra.mrb[0].mxu0 %v1121
    %v1160 = vpop.f32.mrb[0].mxu0
    %v1161 = vadd.f32 0.0, %v1160
    %v1162 = vpop.f32.mrb[0].mxu0
    %v1163 = vpop.f32.mrb[0].mxu0
    %v1164 = vpop.f32.mrb[0].mxu0
    %1165 = vdwg.mxu0
    %1166 = vrot.lane.b32.xlu0 %v325, 40
    %v1167 = vpop.permute.xlu0 %1166
    %v1169 = vsel %vm329, %v1117, 0
    %v1172 = vsel %vm456, %v1167, 0
    %1174 = vmatprep.subr.bf16.mxu0 0
    %1175 = vmatpush1.bf16.msra.mxu0 %v1172
    %1176 = vmatprep.subr.bf16.mxu0 0
    %1177 = vmatpush1.bf16.msra.mxu0 0
    %1178 = vmatprep.subr.bf16.mxu0 0
    %1179 = vmatpush1.bf16.msra.mxu0 0
    %1180 = vmatprep.subr.bf16.mxu0 0
    %1181 = vmatpush1.bf16.msra.mxu0 0
    %1182 = vmatprep.subr.bf16.mxu0 0
    %1183 = vmatpush1.bf16.msra.mxu0 0
    %1184 = vmatprep.subr.bf16.mxu0 0
    %1185 = vmatpush1.bf16.msra.mxu0 0
    %1186 = vmatprep.subr.bf16.mxu0 0
    %1187 = vmatpush1.bf16.msra.mxu0 0
    %1188 = vmatprep.subr.bf16.mxu0 0
    %1189 = vmatpush1.bf16.msra.mxu0 0
    %1190 = vmatprep.subr.bf16.mxu0 0
    %1191 = vmatpush1.bf16.msra.mxu0 0
    %1192 = vmatprep.subr.bf16.mxu0 0
    %1193 = vmatpush1.bf16.msra.mxu0 0
    %1194 = vmatprep.subr.bf16.mxu0 0
    %1195 = vmatpush1.bf16.msra.mxu0 0
    %1196 = vmatprep.subr.bf16.mxu0 0
    %1197 = vmatpush1.bf16.msra.mxu0 0
    %1198 = vmatprep.subr.bf16.mxu0 0
    %1199 = vmatpush1.bf16.msra.mxu0 0
    %1200 = vmatprep.subr.bf16.mxu0 0
    %1201 = vmatpush1.bf16.msra.mxu0 0
    %1202 = vmatprep.subr.bf16.mxu0 0
    %1203 = vmatpush1.bf16.msra.mxu0 0
    %1204 = vmatprep.subr.bf16.mxu0 0
    %1205 = vmatpush1.bf16.msra.mxu0 0
    %1206 = vmatprep.mubr.bf16.mxu0 0
    %1207 = vmatmul.mubr.bf16.gmra.mrb[0].mxu0 %v1169
    %v1208 = vpop.f32.mrb[0].mxu0
    %v1209 = vadd.f32 0.0, %v1208
    %v1210 = vpop.f32.mrb[0].mxu0
    %v1211 = vpop.f32.mrb[0].mxu0
    %v1212 = vpop.f32.mrb[0].mxu0
    %1213 = vdwg.mxu0
    %1216 = vrot.lane.b32.xlu0 %v717, 8
    %v1217 = vpop.permute.xlu0 %1216
    %1218 = vrot.lane.b32.xlu0 %v765, 8
    %v1219 = vpop.permute.xlu0 %1218
    %1224 = vrot.lane.b32.xlu0 %v939, 16
    %v1225 = vpop.permute.xlu0 %1224
    %1226 = vrot.lane.b32.xlu0 %v987, 16
    %v1227 = vpop.permute.xlu0 %1226
    %1232 = vrot.lane.b32.xlu0 %v1161, 24
    %v1233 = vpop.permute.xlu0 %1232
    %1234 = vrot.lane.b32.xlu0 %v1209, 24
    %v1235 = vpop.permute.xlu0 %1234
    %v1238 = vsel %vm329, %v495, %v1217
    %v1239 = vsel %vm329, %v543, %v1219
    %vm1240 = vcmask 130048
    %v1241 = vsel %vm1240, %v1238, %v1225
    %v1242 = vsel %vm1240, %v1239, %v1227
    %vm1243 = vcmask 195584
    %v1244 = vsel %vm1243, %v1241, %v1233
    %v1245 = vsel %vm1243, %v1242, %v1235
    %v1246 = vpack.c.bf16 %v1245, %v1244
    %v1247 = vld [vmem:[#allocation8] sm:$0xf]
    %v1248 = vld [vmem:[#allocation8 + $0x4] sm:$0xf]
    %v1249 = vld [vmem:[#allocation8 + $0x8] sm:$0xf]
    %v1250 = vld [vmem:[#allocation8 + $0xc] sm:$0xf]
    %v1251 = vld [vmem:[#allocation10] sm:$0x1]
    %v1253 = vlaneseq
    %v1254 = vshrl.u32 %v1253, 7
    %v1255 = vsub.s32 0, %v1254
    %v1256 = vrot.slane %v1251, %v1255
    %v1262 = vunpack.c.l.b16 %v1247
    %v1263 = vunpack.c.l.b16 %v1248
    %v1264 = vunpack.c.l.b16 %v1249
    %v1265 = vunpack.c.l.b16 %v1250
    %v1266 = vpack.c.b16 %v1263, %v1262
    %v1267 = vpack.c.b16 %v1265, %v1264
    %v1271 = vsel %vm279, %v1246, 0
    %1273 = vmatprep.subr.bf16.mxu0 0
    %1274 = vmatpush1.bf16.msra.mxu0 %v1266
    %1275 = vmatprep.subr.bf16.mxu0 0
    %1276 = vmatpush1.bf16.msra.mxu0 %v1267
    %1277 = vmatprep.subr.bf16.mxu0 0
    %1278 = vmatpush1.bf16.msra.mxu0 0
    %1279 = vmatprep.subr.bf16.mxu0 0
    %1280 = vmatpush1.bf16.msra.mxu0 0
    %1281 = vmatprep.subr.bf16.mxu0 0
    %1282 = vmatpush1.bf16.msra.mxu0 0
    %1283 = vmatprep.subr.bf16.mxu0 0
    %1284 = vmatpush1.bf16.msra.mxu0 0
    %1285 = vmatprep.subr.bf16.mxu0 0
    %1286 = vmatpush1.bf16.msra.mxu0 0
    %1287 = vmatprep.subr.bf16.mxu0 0
    %1288 = vmatpush1.bf16.msra.mxu0 0
    %1289 = vmatprep.subr.bf16.mxu0 0
    %1290 = vmatpush1.bf16.msra.mxu0 0
    %1291 = vmatprep.subr.bf16.mxu0 0
    %1292 = vmatpush1.bf16.msra.mxu0 0
    %1293 = vmatprep.subr.bf16.mxu0 0
    %1294 = vmatpush1.bf16.msra.mxu0 0
    %1295 = vmatprep.subr.bf16.mxu0 0
    %1296 = vmatpush1.bf16.msra.mxu0 0
    %1297 = vmatprep.subr.bf16.mxu0 0
    %1298 = vmatpush1.bf16.msra.mxu0 0
    %1299 = vmatprep.subr.bf16.mxu0 0
    %1300 = vmatpush1.bf16.msra.mxu0 0
    %1301 = vmatprep.subr.bf16.mxu0 0
    %1302 = vmatpush1.bf16.msra.mxu0 0
    %1303 = vmatprep.subr.bf16.mxu0 0
    %1304 = vmatpush1.bf16.msra.mxu0 0
    %1305 = vmatprep.mubr.bf16.mxu0 0
    %1306 = vmatmul.mubr.bf16.gmra.mrb[0].mxu0 %v1271
    %v1307 = vpop.f32.mrb[0].mxu0
    %v1308 = vadd.f32 %v1256, %v1307
    %v1309 = vpop.f32.mrb[0].mxu0
    %v1310 = vpop.f32.mrb[0].mxu0
    %v1311 = vadd.f32 %v1256, %v1310
    %v1312 = vpop.f32.mrb[0].mxu0
    %1313 = vdwg.mxu0
    %v1314 = vadd.f32 %v253, %v1308
    %v1315 = vadd.f32 %v254, %v1311
    %v1316 = vld [vmem:[#allocation17] sm:$0x1]
    %v1317 = vld [vmem:[#allocation19] sm:$0x1]
    %v1318 = vsel %vm279, %v1314, 0.0
    %1319 = vadd.xlane.f32.xlu0 %v1318
    %v1320 = vpop.xlane.xlu0 %1319
    %v1321 = vsel %vm279, %v1315, 0.0
    %1322 = vadd.xlane.f32.xlu0 %v1321
    %v1323 = vpop.xlane.xlu0 %1322
    %v1324 = vrcp.pop 32.0
    %v1325 = vmul.f32 %v1320, %v1324
    %v1326 = vmul.f32 %v1323, %v1324
    %v1327 = vsub.f32 %v1314, %v1325
    %v1328 = vsub.f32 %v1315, %v1326
    %v1329 = vmul.f32 %v1327, %v1327
    %v1330 = vmul.f32 %v1328, %v1328
    %v1331 = vsel %vm279, %v1329, 0.0
    %1332 = vadd.xlane.f32.xlu0 %v1331
    %v1333 = vpop.xlane.xlu0 %1332
    %v1334 = vsel %vm279, %v1330, 0.0
    %1335 = vadd.xlane.f32.xlu0 %v1334
    %v1336 = vpop.xlane.xlu0 %1335
    %v1337 = vmul.f32 %v1333, %v1324
    %v1338 = vmul.f32 %v1336, %v1324
    %v1339 = vadd.f32 %v1337, 1e-05
    %v1340 = vadd.f32 %v1338, 1e-05
    %v1341 = vrsqrt.pop %v1339
    %v1342 = vrsqrt.pop %v1340
    %v1343 = vmul.f32 %v1327, %v1341
    %v1344 = vmul.f32 %v1328, %v1342
    %v1346 = vlaneseq
    %v1347 = vshrl.u32 %v1346, 7
    %v1348 = vsub.s32 0, %v1347
    %v1349 = vrot.slane %v1316, %v1348
    %v1351 = vmul.f32 %v1343, %v1349
    %v1352 = vmul.f32 %v1344, %v1349
    %v1354 = vlaneseq
    %v1355 = vshrl.u32 %v1354, 7
    %v1356 = vsub.s32 0, %v1355
    %v1357 = vrot.slane %v1317, %v1356
    %v1359 = vadd.f32 %v1351, %v1357
    %v1360 = vadd.f32 %v1352, %v1357
    %v1361 = vpack.c.bf16 %v1360, %v1359
    %v1362 = vld [vmem:[#allocation11] sm:$0xf]
    %v1363 = vld [vmem:[#allocation11 + $0x4] sm:$0xf]
    %v1364 = vld [vmem:[#allocation11 + $0x8] sm:$0xf]
    %v1365 = vld [vmem:[#allocation11 + $0xc] sm:$0xf]
    %v1366 = vld [vmem:[#allocation13] sm:$0x1]
    %v1368 = vlaneseq
    %v1369 = vshrl.u32 %v1368, 7
    %v1370 = vsub.s32 0, %v1369
    %v1371 = vrot.slane %v1366, %v1370
    %v1377 = vunpack.c.l.b16 %v1362
    %v1378 = vunpack.c.l.b16 %v1363
    %v1379 = vunpack.c.l.b16 %v1364
    %v1380 = vunpack.c.l.b16 %v1365
    %v1381 = vpack.c.b16 %v1378, %v1377
    %v1382 = vpack.c.b16 %v1380, %v1379
    %v1386 = vsel %vm279, %v1361, 0
    %1388 = vmatprep.subr.bf16.mxu0 0
    %1389 = vmatpush1.bf16.msra.mxu0 %v1381
    %1390 = vmatprep.subr.bf16.mxu0 0
    %1391 = vmatpush1.bf16.msra.mxu0 %v1382
    %1392 = vmatprep.subr.bf16.mxu0 0
    %1393 = vmatpush1.bf16.msra.mxu0 0
    %1394 = vmatprep.subr.bf16.mxu0 0
    %1395 = vmatpush1.bf16.msra.mxu0 0
    %1396 = vmatprep.subr.bf16.mxu0 0
    %1397 = vmatpush1.bf16.msra.mxu0 0
    %1398 = vmatprep.subr.bf16.mxu0 0
    %1399 = vmatpush1.bf16.msra.mxu0 0
    %1400 = vmatprep.subr.bf16.mxu0 0
    %1401 = vmatpush1.bf16.msra.mxu0 0
    %1402 = vmatprep.subr.bf16.mxu0 0
    %1403 = vmatpush1.bf16.msra.mxu0 0
    %1404 = vmatprep.subr.bf16.mxu0 0
    %1405 = vmatpush1.bf16.msra.mxu0 0
    %1406 = vmatprep.subr.bf16.mxu0 0
    %1407 = vmatpush1.bf16.msra.mxu0 0
    %1408 = vmatprep.subr.bf16.mxu0 0
    %1409 = vmatpush1.bf16.msra.mxu0 0
    %1410 = vmatprep.subr.bf16.mxu0 0
    %1411 = vmatpush1.bf16.msra.mxu0 0
    %1412 = vmatprep.subr.bf16.mxu0 0
    %1413 = vmatpush1.bf16.msra.mxu0 0
    %1414 = vmatprep.subr.bf16.mxu0 0
    %1415 = vmatpush1.bf16.msra.mxu0 0
    %1416 = vmatprep.subr.bf16.mxu0 0
    %1417 = vmatpush1.bf16.msra.mxu0 0
    %1418 = vmatprep.subr.bf16.mxu0 0
    %1419 = vmatpush1.bf16.msra.mxu0 0
    %1420 = vmatprep.mubr.bf16.mxu0 0
    %1421 = vmatmul.mubr.bf16.gmra.mrb[0].mxu0 %v1386
    %v1422 = vpop.f32.mrb[0].mxu0
    %v1423 = vadd.f32 %v1371, %v1422
    %v1424 = vpop.f32.mrb[0].mxu0
    %v1425 = vpop.f32.mrb[0].mxu0
    %v1426 = vadd.f32 %v1371, %v1425
    %v1427 = vpop.f32.mrb[0].mxu0
    %1428 = vdwg.mxu0
    %v1429 = vmax.f32 %v1423, 0.0
    %v1430 = vmax.f32 %v1426, 0.0
    %v1431 = vpack.c.bf16 %v1430, %v1429
    %v1432 = vld [vmem:[#allocation14] sm:$0xf]
    %v1433 = vld [vmem:[#allocation14 + $0x4] sm:$0xf]
    %v1434 = vld [vmem:[#allocation14 + $0x8] sm:$0xf]
    %v1435 = vld [vmem:[#allocation14 + $0xc] sm:$0xf]
    %v1436 = vld [vmem:[#allocation14 + $0x10] sm:$0xf]
    %v1437 = vld [vmem:[#allocation14 + $0x14] sm:$0xf]
    %v1438 = vld [vmem:[#allocation14 + $0x18] sm:$0xf]
    %v1439 = vld [vmem:[#allocation14 + $0x1c] sm:$0xf]
    %v1440 = vld [vmem:[#allocation16] sm:$0x1]
    %v1442 = vlaneseq
    %v1443 = vshrl.u32 %v1442, 7
    %v1444 = vsub.s32 0, %v1443
    %v1445 = vrot.slane %v1440, %v1444
    %v1455 = vunpack.c.l.b16 %v1432
    %v1456 = vunpack.c.l.b16 %v1433
    %v1457 = vunpack.c.l.b16 %v1434
    %v1458 = vunpack.c.l.b16 %v1435
    %v1459 = vunpack.c.l.b16 %v1436
    %v1460 = vunpack.c.l.b16 %v1437
    %v1461 = vunpack.c.l.b16 %v1438
    %v1462 = vunpack.c.l.b16 %v1439
    %v1463 = vpack.c.b16 %v1456, %v1455
    %v1464 = vpack.c.b16 %v1458, %v1457
    %v1465 = vpack.c.b16 %v1460, %v1459
    %v1466 = vpack.c.b16 %v1462, %v1461
    %vm1471 = vcmask 523264
    %v1473 = vsel %vm1471, %v1431, 0
    %1475 = vmatprep.subr.bf16.mxu0 0
    %1476 = vmatpush1.bf16.msra.mxu0 %v1463
    %1477 = vmatprep.subr.bf16.mxu0 0
    %1478 = vmatpush1.bf16.msra.mxu0 %v1464
    %1479 = vmatprep.subr.bf16.mxu0 0
    %1480 = vmatpush1.bf16.msra.mxu0 %v1465
    %1481 = vmatprep.subr.bf16.mxu0 0
    %1482 = vmatpush1.bf16.msra.mxu0 %v1466
    %1483 = vmatprep.subr.bf16.mxu0 0
    %1484 = vmatpush1.bf16.msra.mxu0 0
    %1485 = vmatprep.subr.bf16.mxu0 0
    %1486 = vmatpush1.bf16.msra.mxu0 0
    %1487 = vmatprep.subr.bf16.mxu0 0
    %1488 = vmatpush1.bf16.msra.mxu0 0
    %1489 = vmatprep.subr.bf16.mxu0 0
    %1490 = vmatpush1.bf16.msra.mxu0 0
    %1491 = vmatprep.subr.bf16.mxu0 0
    %1492 = vmatpush1.bf16.msra.mxu0 0
    %1493 = vmatprep.subr.bf16.mxu0 0
    %1494 = vmatpush1.bf16.msra.mxu0 0
    %1495 = vmatprep.subr.bf16.mxu0 0
    %1496 = vmatpush1.bf16.msra.mxu0 0
    %1497 = vmatprep.subr.bf16.mxu0 0
    %1498 = vmatpush1.bf16.msra.mxu0 0
    %1499 = vmatprep.subr.bf16.mxu0 0
    %1500 = vmatpush1.bf16.msra.mxu0 0
    %1501 = vmatprep.subr.bf16.mxu0 0
    %1502 = vmatpush1.bf16.msra.mxu0 0
    %1503 = vmatprep.subr.bf16.mxu0 0
    %1504 = vmatpush1.bf16.msra.mxu0 0
    %1505 = vmatprep.subr.bf16.mxu0 0
    %1506 = vmatpush1.bf16.msra.mxu0 0
    %1507 = vmatprep.mubr.bf16.mxu0 0
    %1508 = vmatmul.mubr.bf16.gmra.mrb[0].mxu0 %v1473
    %v1509 = vpop.f32.mrb[0].mxu0
    %v1510 = vadd.f32 %v1445, %v1509
    %v1511 = vpop.f32.mrb[0].mxu0
    %v1512 = vpop.f32.mrb[0].mxu0
    %v1513 = vadd.f32 %v1445, %v1512
    %v1514 = vpop.f32.mrb[0].mxu0
    %1515 = vdwg.mxu0
    %v1516 = vadd.f32 %v1359, %v1510
    %v1517 = vadd.f32 %v1360, %v1513
    %v1518 = vld [vmem:[#allocation20] sm:$0x1]
    %v1519 = vld [vmem:[#allocation22] sm:$0x1]
    %v1520 = vsel %vm279, %v1516, 0.0
    %1521 = vadd.xlane.f32.xlu0 %v1520
    %v1522 = vpop.xlane.xlu0 %1521
    %v1523 = vsel %vm279, %v1517, 0.0
    %1524 = vadd.xlane.f32.xlu0 %v1523
    %v1525 = vpop.xlane.xlu0 %1524
    %v1526 = vmul.f32 %v1522, %v1324
    %v1527 = vmul.f32 %v1525, %v1324
    %v1528 = vsub.f32 %v1516, %v1526
    %v1529 = vsub.f32 %v1517, %v1527
    %v1530 = vmul.f32 %v1528, %v1528
    %v1531 = vmul.f32 %v1529, %v1529
    %v1532 = vsel %vm279, %v1530, 0.0
    %1533 = vadd.xlane.f32.xlu0 %v1532
    %v1534 = vpop.xlane.xlu0 %1533
    %v1535 = vsel %vm279, %v1531, 0.0
    %1536 = vadd.xlane.f32.xlu0 %v1535
    %v1537 = vpop.xlane.xlu0 %1536
    %v1538 = vmul.f32 %v1534, %v1324
    %v1539 = vmul.f32 %v1537, %v1324
    %v1540 = vadd.f32 %v1538, 1e-05
    %v1541 = vadd.f32 %v1539, 1e-05
    %v1542 = vrsqrt.pop %v1540
    %v1543 = vrsqrt.pop %v1541
    %v1544 = vmul.f32 %v1528, %v1542
    %v1545 = vmul.f32 %v1529, %v1543
    %v1547 = vlaneseq
    %v1548 = vshrl.u32 %v1547, 7
    %v1549 = vsub.s32 0, %v1548
    %v1550 = vrot.slane %v1518, %v1549
    %v1552 = vmul.f32 %v1544, %v1550
    %v1553 = vmul.f32 %v1545, %v1550
    %v1555 = vlaneseq
    %v1556 = vshrl.u32 %v1555, 7
    %v1557 = vsub.s32 0, %v1556
    %v1558 = vrot.slane %v1519, %v1557
    %v1560 = vadd.f32 %v1552, %v1558
    %v1561 = vadd.f32 %v1553, %v1558
    %v1562 = vpack.c.bf16 %v1561, %v1560
    %s1563 = scalar_lea.vmem [#allocation5], 16
    %v1564 = vld [vmem:[%s1563] sm:$0xf]
    %v1565 = vld [vmem:[%s1563 + $0x4] sm:$0xf]
    %v1566 = vld [vmem:[%s1563 + $0x8] sm:$0xf]
    %v1567 = vld [vmem:[%s1563 + $0xc] sm:$0xf]
    %s1568 = scalar_lea.vmem [#allocation7], 1
    %v1569 = vld [vmem:[%s1568] sm:$0x1]
    %v1571 = vlaneseq
    %v1572 = vshrl.u32 %v1571, 7
    %v1573 = vsub.s32 0, %v1572
    %v1574 = vrot.slane %v1569, %v1573
    %v1580 = vunpack.c.l.b16 %v1564
    %v1581 = vunpack.c.l.b16 %v1565
    %v1582 = vunpack.c.l.b16 %v1566
    %v1583 = vunpack.c.l.b16 %v1567
    %v1584 = vpack.c.b16 %v1581, %v1580
    %v1585 = vpack.c.b16 %v1583, %v1582
    %v1589 = vsel %vm279, %v1562, 0
    %1591 = vmatprep.subr.bf16.mxu0 0
    %1592 = vmatpush1.bf16.msra.mxu0 %v1584
    %1593 = vmatprep.subr.bf16.mxu0 0
    %1594 = vmatpush1.bf16.msra.mxu0 %v1585
    %1595 = vmatprep.subr.bf16.mxu0 0
    %1596 = vmatpush1.bf16.msra.mxu0 0
    %1597 = vmatprep.subr.bf16.mxu0 0
    %1598 = vmatpush1.bf16.msra.mxu0 0
    %1599 = vmatprep.subr.bf16.mxu0 0
    %1600 = vmatpush1.bf16.msra.mxu0 0
    %1601 = vmatprep.subr.bf16.mxu0 0
    %1602 = vmatpush1.bf16.msra.mxu0 0
    %1603 = vmatprep.subr.bf16.mxu0 0
    %1604 = vmatpush1.bf16.msra.mxu0 0
    %1605 = vmatprep.subr.bf16.mxu0 0
    %1606 = vmatpush1.bf16.msra.mxu0 0
    %1607 = vmatprep.subr.bf16.mxu0 0
    %1608 = vmatpush1.bf16.msra.mxu0 0
    %1609 = vmatprep.subr.bf16.mxu0 0
    %1610 = vmatpush1.bf16.msra.mxu0 0
    %1611 = vmatprep.subr.bf16.mxu0 0
    %1612 = vmatpush1.bf16.msra.mxu0 0
    %1613 = vmatprep.subr.bf16.mxu0 0
    %1614 = vmatpush1.bf16.msra.mxu0 0
    %1615 = vmatprep.subr.bf16.mxu0 0
    %1616 = vmatpush1.bf16.msra.mxu0 0
    %1617 = vmatprep.subr.bf16.mxu0 0
    %1618 = vmatpush1.bf16.msra.mxu0 0
    %1619 = vmatprep.subr.bf16.mxu0 0
    %1620 = vmatpush1.bf16.msra.mxu0 0
    %1621 = vmatprep.subr.bf16.mxu0 0
    %1622 = vmatpush1.bf16.msra.mxu0 0
    %1623 = vmatprep.mubr.bf16.mxu0 0
    %1624 = vmatmul.mubr.bf16.gmra.mrb[0].mxu0 %v1589
    %v1625 = vpop.f32.mrb[0].mxu0
    %v1626 = vadd.f32 %v1574, %v1625
    %v1627 = vpop.f32.mrb[0].mxu0
    %v1628 = vpop.f32.mrb[0].mxu0
    %v1629 = vadd.f32 %v1574, %v1628
    %v1630 = vpop.f32.mrb[0].mxu0
    %1631 = vdwg.mxu0
    %v1632 = vpack.c.bf16 %v1626, %v1626
    %v1633 = vpack.c.bf16 %v1629, %v1629
    %1635 = vrot.lane.b32.xlu0 %v1632, 96
    %v1636 = vpop.permute.xlu0 %1635
    %v1638 = vsel %vm329, %v1632, 0
    %v1641 = vsel %vm329, %v1636, 0
    %1643 = vmatprep.subr.bf16.mxu0 0
    %1644 = vmatpush1.bf16.xpose.msra.mxu0 %v1641
    %1645 = vmatprep.subr.bf16.mxu0 0
    %1646 = vmatpush1.bf16.xpose.msra.mxu0 0
    %1647 = vmatprep.subr.bf16.mxu0 0
    %1648 = vmatpush1.bf16.xpose.msra.mxu0 0
    %1649 = vmatprep.subr.bf16.mxu0 0
    %1650 = vmatpush1.bf16.xpose.msra.mxu0 0
    %1651 = vmatprep.subr.bf16.mxu0 0
    %1652 = vmatpush1.bf16.xpose.msra.mxu0 0
    %1653 = vmatprep.subr.bf16.mxu0 0
    %1654 = vmatpush1.bf16.xpose.msra.mxu0 0
    %1655 = vmatprep.subr.bf16.mxu0 0
    %1656 = vmatpush1.bf16.xpose.msra.mxu0 0
    %1657 = vmatprep.subr.bf16.mxu0 0
    %1658 = vmatpush1.bf16.xpose.msra.mxu0 0
    %1659 = vmatprep.subr.bf16.mxu0 0
    %1660 = vmatpush1.bf16.xpose.msra.mxu0 0
    %1661 = vmatprep.subr.bf16.mxu0 0
    %1662 = vmatpush1.bf16.xpose.msra.mxu0 0
    %1663 = vmatprep.subr.bf16.mxu0 0
    %1664 = vmatpush1.bf16.xpose.msra.mxu0 0
    %1665 = vmatprep.subr.bf16.mxu0 0
    %1666 = vmatpush1.bf16.xpose.msra.mxu0 0
    %1667 = vmatprep.subr.bf16.mxu0 0
    %1668 = vmatpush1.bf16.xpose.msra.mxu0 0
    %1669 = vmatprep.subr.bf16.mxu0 0
    %1670 = vmatpush1.bf16.xpose.msra.mxu0 0
    %1671 = vmatprep.subr.bf16.mxu0 0
    %1672 = vmatpush1.bf16.xpose.msra.mxu0 0
    %1673 = vmatprep.subr.bf16.mxu0 0
    %1674 = vmatpush1.bf16.xpose.msra.mxu0 0
    %1675 = vmatprep.mubr.bf16.mxu0 0
    %1676 = vmatmul.mubr.bf16.gmra.mrb[0].mxu0 %v1638
    %v1677 = vpop.f32.mrb[0].mxu0
    %v1678 = vadd.f32 0.0, %v1677
    %v1679 = vpop.f32.mrb[0].mxu0
    %v1680 = vpop.f32.mrb[0].mxu0
    %v1681 = vpop.f32.mrb[0].mxu0
    %1682 = vdwg.mxu0
    %1684 = vrot.lane.b32.xlu0 %v1633, 96
    %v1685 = vpop.permute.xlu0 %1684
    %v1687 = vsel %vm329, %v1633, 0
    %v1690 = vsel %vm329, %v1685, 0
    %1692 = vmatprep.subr.bf16.mxu0 0
    %1693 = vmatpush1.bf16.xpose.msra.mxu0 %v1690
    %1694 = vmatprep.subr.bf16.mxu0 0
    %1695 = vmatpush1.bf16.xpose.msra.mxu0 0
    %1696 = vmatprep.subr.bf16.mxu0 0
    %1697 = vmatpush1.bf16.xpose.msra.mxu0 0
    %1698 = vmatprep.subr.bf16.mxu0 0
    %1699 = vmatpush1.bf16.xpose.msra.mxu0 0
    %1700 = vmatprep.subr.bf16.mxu0 0
    %1701 = vmatpush1.bf16.xpose.msra.mxu0 0
    %1702 = vmatprep.subr.bf16.mxu0 0
    %1703 = vmatpush1.bf16.xpose.msra.mxu0 0
    %1704 = vmatprep.subr.bf16.mxu0 0
    %1705 = vmatpush1.bf16.xpose.msra.mxu0 0
    %1706 = vmatprep.subr.bf16.mxu0 0
    %1707 = vmatpush1.bf16.xpose.msra.mxu0 0
    %1708 = vmatprep.subr.bf16.mxu0 0
    %1709 = vmatpush1.bf16.xpose.msra.mxu0 0
    %1710 = vmatprep.subr.bf16.mxu0 0
    %1711 = vmatpush1.bf16.xpose.msra.mxu0 0
    %1712 = vmatprep.subr.bf16.mxu0 0
    %1713 = vmatpush1.bf16.xpose.msra.mxu0 0
    %1714 = vmatprep.subr.bf16.mxu0 0
    %1715 = vmatpush1.bf16.xpose.msra.mxu0 0
    %1716 = vmatprep.subr.bf16.mxu0 0
    %1717 = vmatpush1.bf16.xpose.msra.mxu0 0
    %1718 = vmatprep.subr.bf16.mxu0 0
    %1719 = vmatpush1.bf16.xpose.msra.mxu0 0
    %1720 = vmatprep.subr.bf16.mxu0 0
    %1721 = vmatpush1.bf16.xpose.msra.mxu0 0
    %1722 = vmatprep.subr.bf16.mxu0 0
    %1723 = vmatpush1.bf16.xpose.msra.mxu0 0
    %1724 = vmatprep.mubr.bf16.mxu0 0
    %1725 = vmatmul.mubr.bf16.gmra.mrb[0].mxu0 %v1687
    %v1726 = vpop.f32.mrb[0].mxu0
    %v1727 = vadd.f32 0.0, %v1726
    %v1728 = vpop.f32.mrb[0].mxu0
    %v1729 = vpop.f32.mrb[0].mxu0
    %v1730 = vpop.f32.mrb[0].mxu0
    %1731 = vdwg.mxu0
    %v1732 = vmul.f32 %v1678, 0.35355338
    %v1733 = vmul.f32 %v1727, 0.35355338
    %v1734 = vsel %vm329, %v1732, -inf
    %1735 = vmax.xlane.f32.xlu0 %v1734
    %v1736 = vpop.xlane.xlu0 %1735
    %v1737 = vsel %vm329, %v1733, -inf
    %1738 = vmax.xlane.f32.xlu0 %v1737
    %v1739 = vpop.xlane.xlu0 %1738
    %v1740 = vsub.f32 %v1732, %v1736
    %v1741 = vsub.f32 %v1733, %v1739
    %v1742 = vmul.f32 %v1740, 1.442695
    %v1743 = vpow.pop %v1742
    %v1744 = vmul.f32 %v1741, 1.442695
    %v1745 = vpow.pop %v1744
    %v1746 = vsel %vm329, %v1743, 0.0
    %1747 = vadd.xlane.f32.xlu0 %v1746
    %v1748 = vpop.xlane.xlu0 %1747
    %v1749 = vsel %vm329, %v1745, 0.0
    %1750 = vadd.xlane.f32.xlu0 %v1749
    %v1751 = vpop.xlane.xlu0 %1750
    %v1752 = vrcp.pop %v1748
    %v1753 = vrcp.pop %v1751
    %v1754 = vmul.f32 %v1743, %v1752
    %v1755 = vmul.f32 %v1745, %v1753
    %v1756 = vpack.c.bf16 %v1754, %v1754
    %v1757 = vpack.c.bf16 %v1755, %v1755
    %1758 = vrot.lane.b32.xlu0 %v1632, 64
    %v1759 = vpop.permute.xlu0 %1758
    %v1761 = vsel %vm329, %v1756, 0
    %v1764 = vsel %vm456, %v1759, 0
    %1766 = vmatprep.subr.bf16.mxu0 0
    %1767 = vmatpush1.bf16.msra.mxu0 %v1764
    %1768 = vmatprep.subr.bf16.mxu0 0
    %1769 = vmatpush1.bf16.msra.mxu0 0
    %1770 = vmatprep.subr.bf16.mxu0 0
    %1771 = vmatpush1.bf16.msra.mxu0 0
    %1772 = vmatprep.subr.bf16.mxu0 0
    %1773 = vmatpush1.bf16.msra.mxu0 0
    %1774 = vmatprep.subr.bf16.mxu0 0
    %1775 = vmatpush1.bf16.msra.mxu0 0
    %1776 = vmatprep.subr.bf16.mxu0 0
    %1777 = vmatpush1.bf16.msra.mxu0 0
    %1778 = vmatprep.subr.bf16.mxu0 0
    %1779 = vmatpush1.bf16.msra.mxu0 0
    %1780 = vmatprep.subr.bf16.mxu0 0
    %1781 = vmatpush1.bf16.msra.mxu0 0
    %1782 = vmatprep.subr.bf16.mxu0 0
    %1783 = vmatpush1.bf16.msra.mxu0 0
    %1784 = vmatprep.subr.bf16.mxu0 0
    %1785 = vmatpush1.bf16.msra.mxu0 0
    %1786 = vmatprep.subr.bf16.mxu0 0
    %1787 = vmatpush1.bf16.msra.mxu0 0
    %1788 = vmatprep.subr.bf16.mxu0 0
    %1789 = vmatpush1.bf16.msra.mxu0 0
    %1790 = vmatprep.subr.bf16.mxu0 0
    %1791 = vmatpush1.bf16.msra.mxu0 0
    %1792 = vmatprep.subr.bf16.mxu0 0
    %1793 = vmatpush1.bf16.msra.mxu0 0
    %1794 = vmatprep.subr.bf16.mxu0 0
    %1795 = vmatpush1.bf16.msra.mxu0 0
    %1796 = vmatprep.subr.bf16.mxu0 0
    %1797 = vmatpush1.bf16.msra.mxu0 0
    %1798 = vmatprep.mubr.bf16.mxu0 0
    %1799 = vmatmul.mubr.bf16.gmra.mrb[0].mxu0 %v1761
    %v1800 = vpop.f32.mrb[0].mxu0
    %v1801 = vadd.f32 0.0, %v1800
    %v1802 = vpop.f32.mrb[0].mxu0
    %v1803 = vpop.f32.mrb[0].mxu0
    %v1804 = vpop.f32.mrb[0].mxu0
    %1805 = vdwg.mxu0
    %1806 = vrot.lane.b32.xlu0 %v1633, 64
    %v1807 = vpop.permute.xlu0 %1806
    %v1809 = vsel %vm329, %v1757, 0
    %v1812 = vsel %vm456, %v1807, 0
    %1814 = vmatprep.subr.bf16.mxu0 0
    %1815 = vmatpush1.bf16.msra.mxu0 %v1812
    %1816 = vmatprep.subr.bf16.mxu0 0
    %1817 = vmatpush1.bf16.msra.mxu0 0
    %1818 = vmatprep.subr.bf16.mxu0 0
    %1819 = vmatpush1.bf16.msra.mxu0 0
    %1820 = vmatprep.subr.bf16.mxu0 0
    %1821 = vmatpush1.bf16.msra.mxu0 0
    %1822 = vmatprep.subr.bf16.mxu0 0
    %1823 = vmatpush1.bf16.msra.mxu0 0
    %1824 = vmatprep.subr.bf16.mxu0 0
    %1825 = vmatpush1.bf16.msra.mxu0 0
    %1826 = vmatprep.subr.bf16.mxu0 0
    %1827 = vmatpush1.bf16.msra.mxu0 0
    %1828 = vmatprep.subr.bf16.mxu0 0
    %1829 = vmatpush1.bf16.msra.mxu0 0
    %1830 = vmatprep.subr.bf16.mxu0 0
    %1831 = vmatpush1.bf16.msra.mxu0 0
    %1832 = vmatprep.subr.bf16.mxu0 0
    %1833 = vmatpush1.bf16.msra.mxu0 0
    %1834 = vmatprep.subr.bf16.mxu0 0
    %1835 = vmatpush1.bf16.msra.mxu0 0
    %1836 = vmatprep.subr.bf16.mxu0 0
    %1837 = vmatpush1.bf16.msra.mxu0 0
    %1838 = vmatprep.subr.bf16.mxu0 0
    %1839 = vmatpush1.bf16.msra.mxu0 0
    %1840 = vmatprep.subr.bf16.mxu0 0
    %1841 = vmatpush1.bf16.msra.mxu0 0
    %1842 = vmatprep.subr.bf16.mxu0 0
    %1843 = vmatpush1.bf16.msra.mxu0 0
    %1844 = vmatprep.subr.bf16.mxu0 0
    %1845 = vmatpush1.bf16.msra.mxu0 0
    %1846 = vmatprep.mubr.bf16.mxu0 0
    %1847 = vmatmul.mubr.bf16.gmra.mrb[0].mxu0 %v1809
    %v1848 = vpop.f32.mrb[0].mxu0
    %v1849 = vadd.f32 0.0, %v1848
    %v1850 = vpop.f32.mrb[0].mxu0
    %v1851 = vpop.f32.mrb[0].mxu0
    %v1852 = vpop.f32.mrb[0].mxu0
    %1853 = vdwg.mxu0
    %1854 = vrot.lane.b32.xlu0 %v1632, 120
    %v1855 = vpop.permute.xlu0 %1854
    %1856 = vrot.lane.b32.xlu0 %v1632, 88
    %v1857 = vpop.permute.xlu0 %1856
    %v1859 = vsel %vm329, %v1855, 0
    %v1862 = vsel %vm329, %v1857, 0
    %1864 = vmatprep.subr.bf16.mxu0 0
    %1865 = vmatpush1.bf16.xpose.msra.mxu0 %v1862
    %1866 = vmatprep.subr.bf16.mxu0 0
    %1867 = vmatpush1.bf16.xpose.msra.mxu0 0
    %1868 = vmatprep.subr.bf16.mxu0 0
    %1869 = vmatpush1.bf16.xpose.msra.mxu0 0
    %1870 = vmatprep.subr.bf16.mxu0 0
    %1871 = vmatpush1.bf16.xpose.msra.mxu0 0
    %1872 = vmatprep.subr.bf16.mxu0 0
    %1873 = vmatpush1.bf16.xpose.msra.mxu0 0
    %1874 = vmatprep.subr.bf16.mxu0 0
    %1875 = vmatpush1.bf16.xpose.msra.mxu0 0
    %1876 = vmatprep.subr.bf16.mxu0 0
    %1877 = vmatpush1.bf16.xpose.msra.mxu0 0
    %1878 = vmatprep.subr.bf16.mxu0 0
    %1879 = vmatpush1.bf16.xpose.msra.mxu0 0
    %1880 = vmatprep.subr.bf16.mxu0 0
    %1881 = vmatpush1.bf16.xpose.msra.mxu0 0
    %1882 = vmatprep.subr.bf16.mxu0 0
    %1883 = vmatpush1.bf16.xpose.msra.mxu0 0
    %1884 = vmatprep.subr.bf16.mxu0 0
    %1885 = vmatpush1.bf16.xpose.msra.mxu0 0
    %1886 = vmatprep.subr.bf16.mxu0 0
    %1887 = vmatpush1.bf16.xpose.msra.mxu0 0
    %1888 = vmatprep.subr.bf16.mxu0 0
    %1889 = vmatpush1.bf16.xpose.msra.mxu0 0
    %1890 = vmatprep.subr.bf16.mxu0 0
    %1891 = vmatpush1.bf16.xpose.msra.mxu0 0
    %1892 = vmatprep.subr.bf16.mxu0 0
    %1893 = vmatpush1.bf16.xpose.msra.mxu0 0
    %1894 = vmatprep.subr.bf16.mxu0 0
    %1895 = vmatpush1.bf16.xpose.msra.mxu0 0
    %1896 = vmatprep.mubr.bf16.mxu0 0
    %1897 = vmatmul.mubr.bf16.gmra.mrb[0].mxu0 %v1859
    %v1898 = vpop.f32.mrb[0].mxu0
    %v1899 = vadd.f32 0.0, %v1898
    %v1900 = vpop.f32.mrb[0].mxu0
    %v1901 = vpop.f32.mrb[0].mxu0
    %v1902 = vpop.f32.mrb[0].mxu0
    %1903 = vdwg.mxu0
    %1904 = vrot.lane.b32.xlu0 %v1633, 120
    %v1905 = vpop.permute.xlu0 %1904
    %1906 = vrot.lane.b32.xlu0 %v1633, 88
    %v1907 = vpop.permute.xlu0 %1906
    %v1909 = vsel %vm329, %v1905, 0
    %v1912 = vsel %vm329, %v1907, 0
    %1914 = vmatprep.subr.bf16.mxu0 0
    %1915 = vmatpush1.bf16.xpose.msra.mxu0 %v1912
    %1916 = vmatprep.subr.bf16.mxu0 0
    %1917 = vmatpush1.bf16.xpose.msra.mxu0 0
    %1918 = vmatprep.subr.bf16.mxu0 0
    %1919 = vmatpush1.bf16.xpose.msra.mxu0 0
    %1920 = vmatprep.subr.bf16.mxu0 0
    %1921 = vmatpush1.bf16.xpose.msra.mxu0 0
    %1922 = vmatprep.subr.bf16.mxu0 0
    %1923 = vmatpush1.bf16.xpose.msra.mxu0 0
    %1924 = vmatprep.subr.bf16.mxu0 0
    %1925 = vmatpush1.bf16.xpose.msra.mxu0 0
    %1926 = vmatprep.subr.bf16.mxu0 0
    %1927 = vmatpush1.bf16.xpose.msra.mxu0 0
    %1928 = vmatprep.subr.bf16.mxu0 0
    %1929 = vmatpush1.bf16.xpose.msra.mxu0 0
    %1930 = vmatprep.subr.bf16.mxu0 0
    %1931 = vmatpush1.bf16.xpose.msra.mxu0 0
    %1932 = vmatprep.subr.bf16.mxu0 0
    %1933 = vmatpush1.bf16.xpose.msra.mxu0 0
    %1934 = vmatprep.subr.bf16.mxu0 0
    %1935 = vmatpush1.bf16.xpose.msra.mxu0 0
    %1936 = vmatprep.subr.bf16.mxu0 0
    %1937 = vmatpush1.bf16.xpose.msra.mxu0 0
    %1938 = vmatprep.subr.bf16.mxu0 0
    %1939 = vmatpush1.bf16.xpose.msra.mxu0 0
    %1940 = vmatprep.subr.bf16.mxu0 0
    %1941 = vmatpush1.bf16.xpose.msra.mxu0 0
    %1942 = vmatprep.subr.bf16.mxu0 0
    %1943 = vmatpush1.bf16.xpose.msra.mxu0 0
    %1944 = vmatprep.subr.bf16.mxu0 0
    %1945 = vmatpush1.bf16.xpose.msra.mxu0 0
    %1946 = vmatprep.mubr.bf16.mxu0 0
    %1947 = vmatmul.mubr.bf16.gmra.mrb[0].mxu0 %v1909
    %v1948 = vpop.f32.mrb[0].mxu0
    %v1949 = vadd.f32 0.0, %v1948
    %v1950 = vpop.f32.mrb[0].mxu0
    %v1951 = vpop.f32.mrb[0].mxu0
    %v1952 = vpop.f32.mrb[0].mxu0
    %1953 = vdwg.mxu0
    %v1954 = vmul.f32 %v1899, 0.35355338
    %v1955 = vmul.f32 %v1949, 0.35355338
    %v1956 = vsel %vm329, %v1954, -inf
    %1957 = vmax.xlane.f32.xlu0 %v1956
    %v1958 = vpop.xlane.xlu0 %1957
    %v1959 = vsel %vm329, %v1955, -inf
    %1960 = vmax.xlane.f32.xlu0 %v1959
    %v1961 = vpop.xlane.xlu0 %1960
    %v1962 = vsub.f32 %v1954, %v1958
    %v1963 = vsub.f32 %v1955, %v1961
    %v1964 = vmul.f32 %v1962, 1.442695
    %v1965 = vpow.pop %v1964
    %v1966 = vmul.f32 %v1963, 1.442695
    %v1967 = vpow.pop %v1966
    %v1968 = vsel %vm329, %v1965, 0.0
    %1969 = vadd.xlane.f32.xlu0 %v1968
    %v1970 = vpop.xlane.xlu0 %1969
    %v1971 = vsel %vm329, %v1967, 0.0
    %1972 = vadd.xlane.f32.xlu0 %v1971
    %v1973 = vpop.xlane.xlu0 %1972
    %v1974 = vrcp.pop %v1970
    %v1975 = vrcp.pop %v1973
    %v1976 = vmul.f32 %v1965, %v1974
    %v1977 = vmul.f32 %v1967, %v1975
    %v1978 = vpack.c.bf16 %v1976, %v1976
    %v1979 = vpack.c.bf16 %v1977, %v1977
    %1980 = vrot.lane.b32.xlu0 %v1632, 56
    %v1981 = vpop.permute.xlu0 %1980
    %v1983 = vsel %vm329, %v1978, 0
    %v1986 = vsel %vm456, %v1981, 0
    %1988 = vmatprep.subr.bf16.mxu0 0
    %1989 = vmatpush1.bf16.msra.mxu0 %v1986
    %1990 = vmatprep.subr.bf16.mxu0 0
    %1991 = vmatpush1.bf16.msra.mxu0 0
    %1992 = vmatprep.subr.bf16.mxu0 0
    %1993 = vmatpush1.bf16.msra.mxu0 0
    %1994 = vmatprep.subr.bf16.mxu0 0
    %1995 = vmatpush1.bf16.msra.mxu0 0
    %1996 = vmatprep.subr.bf16.mxu0 0
    %1997 = vmatpush1.bf16.msra.mxu0 0
    %1998 = vmatprep.subr.bf16.mxu0 0
    %1999 = vmatpush1.bf16.msra.mxu0 0
    %2000 = vmatprep.subr.bf16.mxu0 0
    %2001 = vmatpush1.bf16.msra.mxu0 0
    %2002 = vmatprep.subr.bf16.mxu0 0
    %2003 = vmatpush1.bf16.msra.mxu0 0
    %2004 = vmatprep.subr.bf16.mxu0 0
    %2005 = vmatpush1.bf16.msra.mxu0 0
    %2006 = vmatprep.subr.bf16.mxu0 0
    %2007 = vmatpush1.bf16.msra.mxu0 0
    %2008 = vmatprep.subr.bf16.mxu0 0
    %2009 = vmatpush1.bf16.msra.mxu0 0
    %2010 = vmatprep.subr.bf16.mxu0 0
    %2011 = vmatpush1.bf16.msra.mxu0 0
    %2012 = vmatprep.subr.bf16.mxu0 0
    %2013 = vmatpush1.bf16.msra.mxu0 0
    %2014 = vmatprep.subr.bf16.mxu0 0
    %2015 = vmatpush1.bf16.msra.mxu0 0
    %2016 = vmatprep.subr.bf16.mxu0 0
    %2017 = vmatpush1.bf16.msra.mxu0 0
    %2018 = vmatprep.subr.bf16.mxu0 0
    %2019 = vmatpush1.bf16.msra.mxu0 0
    %2020 = vmatprep.mubr.bf16.mxu0 0
    %2021 = vmatmul.mubr.bf16.gmra.mrb[0].mxu0 %v1983
    %v2022 = vpop.f32.mrb[0].mxu0
    %v2023 = vadd.f32 0.0, %v2022
    %v2024 = vpop.f32.mrb[0].mxu0
    %v2025 = vpop.f32.mrb[0].mxu0
    %v2026 = vpop.f32.mrb[0].mxu0
    %2027 = vdwg.mxu0
    %2028 = vrot.lane.b32.xlu0 %v1633, 56
    %v2029 = vpop.permute.xlu0 %2028
    %v2031 = vsel %vm329, %v1979, 0
    %v2034 = vsel %vm456, %v2029, 0
    %2036 = vmatprep.subr.bf16.mxu0 0
    %2037 = vmatpush1.bf16.msra.mxu0 %v2034
    %2038 = vmatprep.subr.bf16.mxu0 0
    %2039 = vmatpush1.bf16.msra.mxu0 0
    %2040 = vmatprep.subr.bf16.mxu0 0
    %2041 = vmatpush1.bf16.msra.mxu0 0
    %2042 = vmatprep.subr.bf16.mxu0 0
    %2043 = vmatpush1.bf16.msra.mxu0 0
    %2044 = vmatprep.subr.bf16.mxu0 0
    %2045 = vmatpush1.bf16.msra.mxu0 0
    %2046 = vmatprep.subr.bf16.mxu0 0
    %2047 = vmatpush1.bf16.msra.mxu0 0
    %2048 = vmatprep.subr.bf16.mxu0 0
    %2049 = vmatpush1.bf16.msra.mxu0 0
    %2050 = vmatprep.subr.bf16.mxu0 0
    %2051 = vmatpush1.bf16.msra.mxu0 0
    %2052 = vmatprep.subr.bf16.mxu0 0
    %2053 = vmatpush1.bf16.msra.mxu0 0
    %2054 = vmatprep.subr.bf16.mxu0 0
    %2055 = vmatpush1.bf16.msra.mxu0 0
    %2056 = vmatprep.subr.bf16.mxu0 0
    %2057 = vmatpush1.bf16.msra.mxu0 0
    %2058 = vmatprep.subr.bf16.mxu0 0
    %2059 = vmatpush1.bf16.msra.mxu0 0
    %2060 = vmatprep.subr.bf16.mxu0 0
    %2061 = vmatpush1.bf16.msra.mxu0 0
    %2062 = vmatprep.subr.bf16.mxu0 0
    %2063 = vmatpush1.bf16.msra.mxu0 0
    %2064 = vmatprep.subr.bf16.mxu0 0
    %2065 = vmatpush1.bf16.msra.mxu0 0
    %2066 = vmatprep.subr.bf16.mxu0 0
    %2067 = vmatpush1.bf16.msra.mxu0 0
    %2068 = vmatprep.mubr.bf16.mxu0 0
    %2069 = vmatmul.mubr.bf16.gmra.mrb[0].mxu0 %v2031
    %v2070 = vpop.f32.mrb[0].mxu0
    %v2071 = vadd.f32 0.0, %v2070
    %v2072 = vpop.f32.mrb[0].mxu0
    %v2073 = vpop.f32.mrb[0].mxu0
    %v2074 = vpop.f32.mrb[0].mxu0
    %2075 = vdwg.mxu0
    %2076 = vrot.lane.b32.xlu0 %v1632, 112
    %v2077 = vpop.permute.xlu0 %2076
    %2078 = vrot.lane.b32.xlu0 %v1632, 80
    %v2079 = vpop.permute.xlu0 %2078
    %v2081 = vsel %vm329, %v2077, 0
    %v2084 = vsel %vm329, %v2079, 0
    %2086 = vmatprep.subr.bf16.mxu0 0
    %2087 = vmatpush1.bf16.xpose.msra.mxu0 %v2084
    %2088 = vmatprep.subr.bf16.mxu0 0
    %2089 = vmatpush1.bf16.xpose.msra.mxu0 0
    %2090 = vmatprep.subr.bf16.mxu0 0
    %2091 = vmatpush1.bf16.xpose.msra.mxu0 0
    %2092 = vmatprep.subr.bf16.mxu0 0
    %2093 = vmatpush1.bf16.xpose.msra.mxu0 0
    %2094 = vmatprep.subr.bf16.mxu0 0
    %2095 = vmatpush1.bf16.xpose.msra.mxu0 0
    %2096 = vmatprep.subr.bf16.mxu0 0
    %2097 = vmatpush1.bf16.xpose.msra.mxu0 0
    %2098 = vmatprep.subr.bf16.mxu0 0
    %2099 = vmatpush1.bf16.xpose.msra.mxu0 0
    %2100 = vmatprep.subr.bf16.mxu0 0
    %2101 = vmatpush1.bf16.xpose.msra.mxu0 0
    %2102 = vmatprep.subr.bf16.mxu0 0
    %2103 = vmatpush1.bf16.xpose.msra.mxu0 0
    %2104 = vmatprep.subr.bf16.mxu0 0
    %2105 = vmatpush1.bf16.xpose.msra.mxu0 0
    %2106 = vmatprep.subr.bf16.mxu0 0
    %2107 = vmatpush1.bf16.xpose.msra.mxu0 0
    %2108 = vmatprep.subr.bf16.mxu0 0
    %2109 = vmatpush1.bf16.xpose.msra.mxu0 0
    %2110 = vmatprep.subr.bf16.mxu0 0
    %2111 = vmatpush1.bf16.xpose.msra.mxu0 0
    %2112 = vmatprep.subr.bf16.mxu0 0
    %2113 = vmatpush1.bf16.xpose.msra.mxu0 0
    %2114 = vmatprep.subr.bf16.mxu0 0
    %2115 = vmatpush1.bf16.xpose.msra.mxu0 0
    %2116 = vmatprep.subr.bf16.mxu0 0
    %2117 = vmatpush1.bf16.xpose.msra.mxu0 0
    %2118 = vmatprep.mubr.bf16.mxu0 0
    %2119 = vmatmul.mubr.bf16.gmra.mrb[0].mxu0 %v2081
    %v2120 = vpop.f32.mrb[0].mxu0
    %v2121 = vadd.f32 0.0, %v2120
    %v2122 = vpop.f32.mrb[0].mxu0
    %v2123 = vpop.f32.mrb[0].mxu0
    %v2124 = vpop.f32.mrb[0].mxu0
    %2125 = vdwg.mxu0
    %2126 = vrot.lane.b32.xlu0 %v1633, 112
    %v2127 = vpop.permute.xlu0 %2126
    %2128 = vrot.lane.b32.xlu0 %v1633, 80
    %v2129 = vpop.permute.xlu0 %2128
    %v2131 = vsel %vm329, %v2127, 0
    %v2134 = vsel %vm329, %v2129, 0
    %2136 = vmatprep.subr.bf16.mxu0 0
    %2137 = vmatpush1.bf16.xpose.msra.mxu0 %v2134
    %2138 = vmatprep.subr.bf16.mxu0 0
    %2139 = vmatpush1.bf16.xpose.msra.mxu0 0
    %2140 = vmatprep.subr.bf16.mxu0 0
    %2141 = vmatpush1.bf16.xpose.msra.mxu0 0
    %2142 = vmatprep.subr.bf16.mxu0 0
    %2143 = vmatpush1.bf16.xpose.msra.mxu0 0
    %2144 = vmatprep.subr.bf16.mxu0 0
    %2145 = vmatpush1.bf16.xpose.msra.mxu0 0
    %2146 = vmatprep.subr.bf16.mxu0 0
    %2147 = vmatpush1.bf16.xpose.msra.mxu0 0
    %2148 = vmatprep.subr.bf16.mxu0 0
    %2149 = vmatpush1.bf16.xpose.msra.mxu0 0
    %2150 = vmatprep.subr.bf16.mxu0 0
    %2151 = vmatpush1.bf16.xpose.msra.mxu0 0
    %2152 = vmatprep.subr.bf16.mxu0 0
    %2153 = vmatpush1.bf16.xpose.msra.mxu0 0
    %2154 = vmatprep.subr.bf16.mxu0 0
    %2155 = vmatpush1.bf16.xpose.msra.mxu0 0
    %2156 = vmatprep.subr.bf16.mxu0 0
    %2157 = vmatpush1.bf16.xpose.msra.mxu0 0
    %2158 = vmatprep.subr.bf16.mxu0 0
    %2159 = vmatpush1.bf16.xpose.msra.mxu0 0
    %2160 = vmatprep.subr.bf16.mxu0 0
    %2161 = vmatpush1.bf16.xpose.msra.mxu0 0
    %2162 = vmatprep.subr.bf16.mxu0 0
    %2163 = vmatpush1.bf16.xpose.msra.mxu0 0
    %2164 = vmatprep.subr.bf16.mxu0 0
    %2165 = vmatpush1.bf16.xpose.msra.mxu0 0
    %2166 = vmatprep.subr.bf16.mxu0 0
    %2167 = vmatpush1.bf16.xpose.msra.mxu0 0
    %2168 = vmatprep.mubr.bf16.mxu0 0
    %2169 = vmatmul.mubr.bf16.gmra.mrb[0].mxu0 %v2131
    %v2170 = vpop.f32.mrb[0].mxu0
    %v2171 = vadd.f32 0.0, %v2170
    %v2172 = vpop.f32.mrb[0].mxu0
    %v2173 = vpop.f32.mrb[0].mxu0
    %v2174 = vpop.f32.mrb[0].mxu0
    %2175 = vdwg.mxu0
    %v2176 = vmul.f32 %v2121, 0.35355338
    %v2177 = vmul.f32 %v2171, 0.35355338
    %v2178 = vsel %vm329, %v2176, -inf
    %2179 = vmax.xlane.f32.xlu0 %v2178
    %v2180 = vpop.xlane.xlu0 %2179
    %v2181 = vsel %vm329, %v2177, -inf
    %2182 = vmax.xlane.f32.xlu0 %v2181
    %v2183 = vpop.xlane.xlu0 %2182
    %v2184 = vsub.f32 %v2176, %v2180
    %v2185 = vsub.f32 %v2177, %v2183
    %v2186 = vmul.f32 %v2184, 1.442695
    %v2187 = vpow.pop %v2186
    %v2188 = vmul.f32 %v2185, 1.442695
    %v2189 = vpow.pop %v2188
    %v2190 = vsel %vm329, %v2187, 0.0
    %2191 = vadd.xlane.f32.xlu0 %v2190
    %v2192 = vpop.xlane.xlu0 %2191
    %v2193 = vsel %vm329, %v2189, 0.0
    %2194 = vadd.xlane.f32.xlu0 %v2193
    %v2195 = vpop.xlane.xlu0 %2194
    %v2196 = vrcp.pop %v2192
    %v2197 = vrcp.pop %v2195
    %v2198 = vmul.f32 %v2187, %v2196
    %v2199 = vmul.f32 %v2189, %v2197
    %v2200 = vpack.c.bf16 %v2198, %v2198
    %v2201 = vpack.c.bf16 %v2199, %v2199
    %2202 = vrot.lane.b32.xlu0 %v1632, 48
    %v2203 = vpop.permute.xlu0 %2202
    %v2205 = vsel %vm329, %v2200, 0
    %v2208 = vsel %vm456, %v2203, 0
    %2210 = vmatprep.subr.bf16.mxu0 0
    %2211 = vmatpush1.bf16.msra.mxu0 %v2208
    %2212 = vmatprep.subr.bf16.mxu0 0
    %2213 = vmatpush1.bf16.msra.mxu0 0
    %2214 = vmatprep.subr.bf16.mxu0 0
    %2215 = vmatpush1.bf16.msra.mxu0 0
    %2216 = vmatprep.subr.bf16.mxu0 0
    %2217 = vmatpush1.bf16.msra.mxu0 0
    %2218 = vmatprep.subr.bf16.mxu0 0
    %2219 = vmatpush1.bf16.msra.mxu0 0
    %2220 = vmatprep.subr.bf16.mxu0 0
    %2221 = vmatpush1.bf16.msra.mxu0 0
    %2222 = vmatprep.subr.bf16.mxu0 0
    %2223 = vmatpush1.bf16.msra.mxu0 0
    %2224 = vmatprep.subr.bf16.mxu0 0
    %2225 = vmatpush1.bf16.msra.mxu0 0
    %2226 = vmatprep.subr.bf16.mxu0 0
    %2227 = vmatpush1.bf16.msra.mxu0 0
    %2228 = vmatprep.subr.bf16.mxu0 0
    %2229 = vmatpush1.bf16.msra.mxu0 0
    %2230 = vmatprep.subr.bf16.mxu0 0
    %2231 = vmatpush1.bf16.msra.mxu0 0
    %2232 = vmatprep.subr.bf16.mxu0 0
    %2233 = vmatpush1.bf16.msra.mxu0 0
    %2234 = vmatprep.subr.bf16.mxu0 0
    %2235 = vmatpush1.bf16.msra.mxu0 0
    %2236 = vmatprep.subr.bf16.mxu0 0
    %2237 = vmatpush1.bf16.msra.mxu0 0
    %2238 = vmatprep.subr.bf16.mxu0 0
    %2239 = vmatpush1.bf16.msra.mxu0 0
    %2240 = vmatprep.subr.bf16.mxu0 0
    %2241 = vmatpush1.bf16.msra.mxu0 0
    %2242 = vmatprep.mubr.bf16.mxu0 0
    %2243 = vmatmul.mubr.bf16.gmra.mrb[0].mxu0 %v2205
    %v2244 = vpop.f32.mrb[0].mxu0
    %v2245 = vadd.f32 0.0, %v2244
    %v2246 = vpop.f32.mrb[0].mxu0
    %v2247 = vpop.f32.mrb[0].mxu0
    %v2248 = vpop.f32.mrb[0].mxu0
    %2249 = vdwg.mxu0
    %2250 = vrot.lane.b32.xlu0 %v1633, 48
    %v2251 = vpop.permute.xlu0 %2250
    %v2253 = vsel %vm329, %v2201, 0
    %v2256 = vsel %vm456, %v2251, 0
    %2258 = vmatprep.subr.bf16.mxu0 0
    %2259 = vmatpush1.bf16.msra.mxu0 %v2256
    %2260 = vmatprep.subr.bf16.mxu0 0
    %2261 = vmatpush1.bf16.msra.mxu0 0
    %2262 = vmatprep.subr.bf16.mxu0 0
    %2263 = vmatpush1.bf16.msra.mxu0 0
    %2264 = vmatprep.subr.bf16.mxu0 0
    %2265 = vmatpush1.bf16.msra.mxu0 0
    %2266 = vmatprep.subr.bf16.mxu0 0
    %2267 = vmatpush1.bf16.msra.mxu0 0
    %2268 = vmatprep.subr.bf16.mxu0 0
    %2269 = vmatpush1.bf16.msra.mxu0 0
    %2270 = vmatprep.subr.bf16.mxu0 0
    %2271 = vmatpush1.bf16.msra.mxu0 0
    %2272 = vmatprep.subr.bf16.mxu0 0
    %2273 = vmatpush1.bf16.msra.mxu0 0
    %2274 = vmatprep.subr.bf16.mxu0 0
    %2275 = vmatpush1.bf16.msra.mxu0 0
    %2276 = vmatprep.subr.bf16.mxu0 0
    %2277 = vmatpush1.bf16.msra.mxu0 0
    %2278 = vmatprep.subr.bf16.mxu0 0
    %2279 = vmatpush1.bf16.msra.mxu0 0
    %2280 = vmatprep.subr.bf16.mxu0 0
    %2281 = vmatpush1.bf16.msra.mxu0 0
    %2282 = vmatprep.subr.bf16.mxu0 0
    %2283 = vmatpush1.bf16.msra.mxu0 0
    %2284 = vmatprep.subr.bf16.mxu0 0
    %2285 = vmatpush1.bf16.msra.mxu0 0
    %2286 = vmatprep.subr.bf16.mxu0 0
    %2287 = vmatpush1.bf16.msra.mxu0 0
    %2288 = vmatprep.subr.bf16.mxu0 0
    %2289 = vmatpush1.bf16.msra.mxu0 0
    %2290 = vmatprep.mubr.bf16.mxu0 0
    %2291 = vmatmul.mubr.bf16.gmra.mrb[0].mxu0 %v2253
    %v2292 = vpop.f32.mrb[0].mxu0
    %v2293 = vadd.f32 0.0, %v2292
    %v2294 = vpop.f32.mrb[0].mxu0
    %v2295 = vpop.f32.mrb[0].mxu0
    %v2296 = vpop.f32.mrb[0].mxu0
    %2297 = vdwg.mxu0
    %2298 = vrot.lane.b32.xlu0 %v1632, 104
    %v2299 = vpop.permute.xlu0 %2298
    %2300 = vrot.lane.b32.xlu0 %v1632, 72
    %v2301 = vpop.permute.xlu0 %2300
    %v2303 = vsel %vm329, %v2299, 0
    %v2306 = vsel %vm329, %v2301, 0
    %2308 = vmatprep.subr.bf16.mxu0 0
    %2309 = vmatpush1.bf16.xpose.msra.mxu0 %v2306
    %2310 = vmatprep.subr.bf16.mxu0 0
    %2311 = vmatpush1.bf16.xpose.msra.mxu0 0
    %2312 = vmatprep.subr.bf16.mxu0 0
    %2313 = vmatpush1.bf16.xpose.msra.mxu0 0
    %2314 = vmatprep.subr.bf16.mxu0 0
    %2315 = vmatpush1.bf16.xpose.msra.mxu0 0
    %2316 = vmatprep.subr.bf16.mxu0 0
    %2317 = vmatpush1.bf16.xpose.msra.mxu0 0
    %2318 = vmatprep.subr.bf16.mxu0 0
    %2319 = vmatpush1.bf16.xpose.msra.mxu0 0
    %2320 = vmatprep.subr.bf16.mxu0 0
    %2321 = vmatpush1.bf16.xpose.msra.mxu0 0
    %2322 = vmatprep.subr.bf16.mxu0 0
    %2323 = vmatpush1.bf16.xpose.msra.mxu0 0
    %2324 = vmatprep.subr.bf16.mxu0 0
    %2325 = vmatpush1.bf16.xpose.msra.mxu0 0
    %2326 = vmatprep.subr.bf16.mxu0 0
    %2327 = vmatpush1.bf16.xpose.msra.mxu0 0
    %2328 = vmatprep.subr.bf16.mxu0 0
    %2329 = vmatpush1.bf16.xpose.msra.mxu0 0
    %2330 = vmatprep.subr.bf16.mxu0 0
    %2331 = vmatpush1.bf16.xpose.msra.mxu0 0
    %2332 = vmatprep.subr.bf16.mxu0 0
    %2333 = vmatpush1.bf16.xpose.msra.mxu0 0
    %2334 = vmatprep.subr.bf16.mxu0 0
    %2335 = vmatpush1.bf16.xpose.msra.mxu0 0
    %2336 = vmatprep.subr.bf16.mxu0 0
    %2337 = vmatpush1.bf16.xpose.msra.mxu0 0
    %2338 = vmatprep.subr.bf16.mxu0 0
    %2339 = vmatpush1.bf16.xpose.msra.mxu0 0
    %2340 = vmatprep.mubr.bf16.mxu0 0
    %2341 = vmatmul.mubr.bf16.gmra.mrb[0].mxu0 %v2303
    %v2342 = vpop.f32.mrb[0].mxu0
    %v2343 = vadd.f32 0.0, %v2342
    %v2344 = vpop.f32.mrb[0].mxu0
    %v2345 = vpop.f32.mrb[0].mxu0
    %v2346 = vpop.f32.mrb[0].mxu0
    %2347 = vdwg.mxu0
    %2348 = vrot.lane.b32.xlu0 %v1633, 104
    %v2349 = vpop.permute.xlu0 %2348
    %2350 = vrot.lane.b32.xlu0 %v1633, 72
    %v2351 = vpop.permute.xlu0 %2350
    %v2353 = vsel %vm329, %v2349, 0
    %v2356 = vsel %vm329, %v2351, 0
    %2358 = vmatprep.subr.bf16.mxu0 0
    %2359 = vmatpush1.bf16.xpose.msra.mxu0 %v2356
    %2360 = vmatprep.subr.bf16.mxu0 0
    %2361 = vmatpush1.bf16.xpose.msra.mxu0 0
    %2362 = vmatprep.subr.bf16.mxu0 0
    %2363 = vmatpush1.bf16.xpose.msra.mxu0 0
    %2364 = vmatprep.subr.bf16.mxu0 0
    %2365 = vmatpush1.bf16.xpose.msra.mxu0 0
    %2366 = vmatprep.subr.bf16.mxu0 0
    %2367 = vmatpush1.bf16.xpose.msra.mxu0 0
    %2368 = vmatprep.subr.bf16.mxu0 0
    %2369 = vmatpush1.bf16.xpose.msra.mxu0 0
    %2370 = vmatprep.subr.bf16.mxu0 0
    %2371 = vmatpush1.bf16.xpose.msra.mxu0 0
    %2372 = vmatprep.subr.bf16.mxu0 0
    %2373 = vmatpush1.bf16.xpose.msra.mxu0 0
    %2374 = vmatprep.subr.bf16.mxu0 0
    %2375 = vmatpush1.bf16.xpose.msra.mxu0 0
    %2376 = vmatprep.subr.bf16.mxu0 0
    %2377 = vmatpush1.bf16.xpose.msra.mxu0 0
    %2378 = vmatprep.subr.bf16.mxu0 0
    %2379 = vmatpush1.bf16.xpose.msra.mxu0 0
    %2380 = vmatprep.subr.bf16.mxu0 0
    %2381 = vmatpush1.bf16.xpose.msra.mxu0 0
    %2382 = vmatprep.subr.bf16.mxu0 0
    %2383 = vmatpush1.bf16.xpose.msra.mxu0 0
    %2384 = vmatprep.subr.bf16.mxu0 0
    %2385 = vmatpush1.bf16.xpose.msra.mxu0 0
    %2386 = vmatprep.subr.bf16.mxu0 0
    %2387 = vmatpush1.bf16.xpose.msra.mxu0 0
    %2388 = vmatprep.subr.bf16.mxu0 0
    %2389 = vmatpush1.bf16.xpose.msra.mxu0 0
    %2390 = vmatprep.mubr.bf16.mxu0 0
    %2391 = vmatmul.mubr.bf16.gmra.mrb[0].mxu0 %v2353
    %v2392 = vpop.f32.mrb[0].mxu0
    %v2393 = vadd.f32 0.0, %v2392
    %v2394 = vpop.f32.mrb[0].mxu0
    %v2395 = vpop.f32.mrb[0].mxu0
    %v2396 = vpop.f32.mrb[0].mxu0
    %2397 = vdwg.mxu0
    %v2398 = vmul.f32 %v2343, 0.35355338
    %v2399 = vmul.f32 %v2393, 0.35355338
    %v2400 = vsel %vm329, %v2398, -inf
    %2401 = vmax.xlane.f32.xlu0 %v2400
    %v2402 = vpop.xlane.xlu0 %2401
    %v2403 = vsel %vm329, %v2399, -inf
    %2404 = vmax.xlane.f32.xlu0 %v2403
    %v2405 = vpop.xlane.xlu0 %2404
    %v2406 = vsub.f32 %v2398, %v2402
    %v2407 = vsub.f32 %v2399, %v2405
    %v2408 = vmul.f32 %v2406, 1.442695
    %v2409 = vpow.pop %v2408
    %v2410 = vmul.f32 %v2407, 1.442695
    %v2411 = vpow.pop %v2410
    %v2412 = vsel %vm329, %v2409, 0.0
    %2413 = vadd.xlane.f32.xlu0 %v2412
    %v2414 = vpop.xlane.xlu0 %2413
    %v2415 = vsel %vm329, %v2411, 0.0
    %2416 = vadd.xlane.f32.xlu0 %v2415
    %v2417 = vpop.xlane.xlu0 %2416
    %v2418 = vrcp.pop %v2414
    %v2419 = vrcp.pop %v2417
    %v2420 = vmul.f32 %v2409, %v2418
    %v2421 = vmul.f32 %v2411, %v2419
    %v2422 = vpack.c.bf16 %v2420, %v2420
    %v2423 = vpack.c.bf16 %v2421, %v2421
    %2424 = vrot.lane.b32.xlu0 %v1632, 40
    %v2425 = vpop.permute.xlu0 %2424
    %v2427 = vsel %vm329, %v2422, 0
    %v2430 = vsel %vm456, %v2425, 0
    %2432 = vmatprep.subr.bf16.mxu0 0
    %2433 = vmatpush1.bf16.msra.mxu0 %v2430
    %2434 = vmatprep.subr.bf16.mxu0 0
    %2435 = vmatpush1.bf16.msra.mxu0 0
    %2436 = vmatprep.subr.bf16.mxu0 0
    %2437 = vmatpush1.bf16.msra.mxu0 0
    %2438 = vmatprep.subr.bf16.mxu0 0
    %2439 = vmatpush1.bf16.msra.mxu0 0
    %2440 = vmatprep.subr.bf16.mxu0 0
    %2441 = vmatpush1.bf16.msra.mxu0 0
    %2442 = vmatprep.subr.bf16.mxu0 0
    %2443 = vmatpush1.bf16.msra.mxu0 0
    %2444 = vmatprep.subr.bf16.mxu0 0
    %2445 = vmatpush1.bf16.msra.mxu0 0
    %2446 = vmatprep.subr.bf16.mxu0 0
    %2447 = vmatpush1.bf16.msra.mxu0 0
    %2448 = vmatprep.subr.bf16.mxu0 0
    %2449 = vmatpush1.bf16.msra.mxu0 0
    %2450 = vmatprep.subr.bf16.mxu0 0
    %2451 = vmatpush1.bf16.msra.mxu0 0
    %2452 = vmatprep.subr.bf16.mxu0 0
    %2453 = vmatpush1.bf16.msra.mxu0 0
    %2454 = vmatprep.subr.bf16.mxu0 0
    %2455 = vmatpush1.bf16.msra.mxu0 0
    %2456 = vmatprep.subr.bf16.mxu0 0
    %2457 = vmatpush1.bf16.msra.mxu0 0
    %2458 = vmatprep.subr.bf16.mxu0 0
    %2459 = vmatpush1.bf16.msra.mxu0 0
    %2460 = vmatprep.subr.bf16.mxu0 0
    %2461 = vmatpush1.bf16.msra.mxu0 0
    %2462 = vmatprep.subr.bf16.mxu0 0
    %2463 = vmatpush1.bf16.msra.mxu0 0
    %2464 = vmatprep.mubr.bf16.mxu0 0
    %2465 = vmatmul.mubr.bf16.gmra.mrb[0].mxu0 %v2427
    %v2466 = vpop.f32.mrb[0].mxu0
    %v2467 = vadd.f32 0.0, %v2466
    %v2468 = vpop.f32.mrb[0].mxu0
    %v2469 = vpop.f32.mrb[0].mxu0
    %v2470 = vpop.f32.mrb[0].mxu0
    %2471 = vdwg.mxu0
    %2472 = vrot.lane.b32.xlu0 %v1633, 40
    %v2473 = vpop.permute.xlu0 %2472
    %v2475 = vsel %vm329, %v2423, 0
    %v2478 = vsel %vm456, %v2473, 0
    %2480 = vmatprep.subr.bf16.mxu0 0
    %2481 = vmatpush1.bf16.msra.mxu0 %v2478
    %2482 = vmatprep.subr.bf16.mxu0 0
    %2483 = vmatpush1.bf16.msra.mxu0 0
    %2484 = vmatprep.subr.bf16.mxu0 0
    %2485 = vmatpush1.bf16.msra.mxu0 0
    %2486 = vmatprep.subr.bf16.mxu0 0
    %2487 = vmatpush1.bf16.msra.mxu0 0
    %2488 = vmatprep.subr.bf16.mxu0 0
    %2489 = vmatpush1.bf16.msra.mxu0 0
    %2490 = vmatprep.subr.bf16.mxu0 0
    %2491 = vmatpush1.bf16.msra.mxu0 0
    %2492 = vmatprep.subr.bf16.mxu0 0
    %2493 = vmatpush1.bf16.msra.mxu0 0
    %2494 = vmatprep.subr.bf16.mxu0 0
    %2495 = vmatpush1.bf16.msra.mxu0 0
    %2496 = vmatprep.subr.bf16.mxu0 0
    %2497 = vmatpush1.bf16.msra.mxu0 0
    %2498 = vmatprep.subr.bf16.mxu0 0
    %2499 = vmatpush1.bf16.msra.mxu0 0
    %2500 = vmatprep.subr.bf16.mxu0 0
    %2501 = vmatpush1.bf16.msra.mxu0 0
    %2502 = vmatprep.subr.bf16.mxu0 0
    %2503 = vmatpush1.bf16.msra.mxu0 0
    %2504 = vmatprep.subr.bf16.mxu0 0
    %2505 = vmatpush1.bf16.msra.mxu0 0
    %2506 = vmatprep.subr.bf16.mxu0 0
    %2507 = vmatpush1.bf16.msra.mxu0 0
    %2508 = vmatprep.subr.bf16.mxu0 0
    %2509 = vmatpush1.bf16.msra.mxu0 0
    %2510 = vmatprep.subr.bf16.mxu0 0
    %2511 = vmatpush1.bf16.msra.mxu0 0
    %2512 = vmatprep.mubr.bf16.mxu0 0
    %2513 = vmatmul.mubr.bf16.gmra.mrb[0].mxu0 %v2475
    %v2514 = vpop.f32.mrb[0].mxu0
    %v2515 = vadd.f32 0.0, %v2514
    %v2516 = vpop.f32.mrb[0].mxu0
    %v2517 = vpop.f32.mrb[0].mxu0
    %v2518 = vpop.f32.mrb[0].mxu0
    %2519 = vdwg.mxu0
    %2522 = vrot.lane.b32.xlu0 %v2023, 8
    %v2523 = vpop.permute.xlu0 %2522
    %2524 = vrot.lane.b32.xlu0 %v2071, 8
    %v2525 = vpop.permute.xlu0 %2524
    %2530 = vrot.lane.b32.xlu0 %v2245, 16
    %v2531 = vpop.permute.xlu0 %2530
    %2532 = vrot.lane.b32.xlu0 %v2293, 16
    %v2533 = vpop.permute.xlu0 %2532
    %2538 = vrot.lane.b32.xlu0 %v2467, 24
    %v2539 = vpop.permute.xlu0 %2538
    %2540 = vrot.lane.b32.xlu0 %v2515, 24
    %v2541 = vpop.permute.xlu0 %2540
    %v2544 = vsel %vm329, %v1801, %v2523
    %v2545 = vsel %vm329, %v1849, %v2525
    %v2546 = vsel %vm1240, %v2544, %v2531
    %v2547 = vsel %vm1240, %v2545, %v2533
    %v2548 = vsel %vm1243, %v2546, %v2539
    %v2549 = vsel %vm1243, %v2547, %v2541
    %v2550 = vpack.c.bf16 %v2549, %v2548
    %s2551 = scalar_lea.vmem [#allocation8], 16
    %v2552 = vld [vmem:[%s2551] sm:$0xf]
    %v2553 = vld [vmem:[%s2551 + $0x4] sm:$0xf]
    %v2554 = vld [vmem:[%s2551 + $0x8] sm:$0xf]
    %v2555 = vld [vmem:[%s2551 + $0xc] sm:$0xf]
    %s2556 = scalar_lea.vmem [#allocation10], 1
    %v2557 = vld [vmem:[%s2556] sm:$0x1]
    %v2559 = vlaneseq
    %v2560 = vshrl.u32 %v2559, 7
    %v2561 = vsub.s32 0, %v2560
    %v2562 = vrot.slane %v2557, %v2561
    %v2568 = vunpack.c.l.b16 %v2552
    %v2569 = vunpack.c.l.b16 %v2553
    %v2570 = vunpack.c.l.b16 %v2554
    %v2571 = vunpack.c.l.b16 %v2555
    %v2572 = vpack.c.b16 %v2569, %v2568
    %v2573 = vpack.c.b16 %v2571, %v2570
    %v2577 = vsel %vm279, %v2550, 0
    %2579 = vmatprep.subr.bf16.mxu0 0
    %2580 = vmatpush1.bf16.msra.mxu0 %v2572
    %2581 = vmatprep.subr.bf16.mxu0 0
    %2582 = vmatpush1.bf16.msra.mxu0 %v2573
    %2583 = vmatprep.subr.bf16.mxu0 0
    %2584 = vmatpush1.bf16.msra.mxu0 0
    %2585 = vmatprep.subr.bf16.mxu0 0
    %2586 = vmatpush1.bf16.msra.mxu0 0
    %2587 = vmatprep.subr.bf16.mxu0 0
    %2588 = vmatpush1.bf16.msra.mxu0 0
    %2589 = vmatprep.subr.bf16.mxu0 0
    %2590 = vmatpush1.bf16.msra.mxu0 0
    %2591 = vmatprep.subr.bf16.mxu0 0
    %2592 = vmatpush1.bf16.msra.mxu0 0
    %2593 = vmatprep.subr.bf16.mxu0 0
    %2594 = vmatpush1.bf16.msra.mxu0 0
    %2595 = vmatprep.subr.bf16.mxu0 0
    %2596 = vmatpush1.bf16.msra.mxu0 0
    %2597 = vmatprep.subr.bf16.mxu0 0
    %2598 = vmatpush1.bf16.msra.mxu0 0
    %2599 = vmatprep.subr.bf16.mxu0 0
    %2600 = vmatpush1.bf16.msra.mxu0 0
    %2601 = vmatprep.subr.bf16.mxu0 0
    %2602 = vmatpush1.bf16.msra.mxu0 0
    %2603 = vmatprep.subr.bf16.mxu0 0
    %2604 = vmatpush1.bf16.msra.mxu0 0
    %2605 = vmatprep.subr.bf16.mxu0 0
    %2606 = vmatpush1.bf16.msra.mxu0 0
    %2607 = vmatprep.subr.bf16.mxu0 0
    %2608 = vmatpush1.bf16.msra.mxu0 0
    %2609 = vmatprep.subr.bf16.mxu0 0
    %2610 = vmatpush1.bf16.msra.mxu0 0
    %2611 = vmatprep.mubr.bf16.mxu0 0
    %2612 = vmatmul.mubr.bf16.gmra.mrb[0].mxu0 %v2577
    %v2613 = vpop.f32.mrb[0].mxu0
    %v2614 = vadd.f32 %v2562, %v2613
    %v2615 = vpop.f32.mrb[0].mxu0
    %v2616 = vpop.f32.mrb[0].mxu0
    %v2617 = vadd.f32 %v2562, %v2616
    %v2618 = vpop.f32.mrb[0].mxu0
    %2619 = vdwg.mxu0
    %v2620 = vadd.f32 %v1560, %v2614
    %v2621 = vadd.f32 %v1561, %v2617
    %s2622 = scalar_lea.vmem [#allocation17], 1
    %v2623 = vld [vmem:[%s2622] sm:$0x1]
    %s2624 = scalar_lea.vmem [#allocation19], 1
    %v2625 = vld [vmem:[%s2624] sm:$0x1]
    %v2626 = vsel %vm279, %v2620, 0.0
    %2627 = vadd.xlane.f32.xlu0 %v2626
    %v2628 = vpop.xlane.xlu0 %2627
    %v2629 = vsel %vm279, %v2621, 0.0
    %2630 = vadd.xlane.f32.xlu0 %v2629
    %v2631 = vpop.xlane.xlu0 %2630
    %v2632 = vmul.f32 %v2628, %v1324
    %v2633 = vmul.f32 %v2631, %v1324
    %v2634 = vsub.f32 %v2620, %v2632
    %v2635 = vsub.f32 %v2621, %v2633
    %v2636 = vmul.f32 %v2634, %v2634
    %v2637 = vmul.f32 %v2635, %v2635
    %v2638 = vsel %vm279, %v2636, 0.0
    %2639 = vadd.xlane.f32.xlu0 %v2638
    %v2640 = vpop.xlane.xlu0 %2639
    %v2641 = vsel %vm279, %v2637, 0.0
    %2642 = vadd.xlane.f32.xlu0 %v2641
    %v2643 = vpop.xlane.xlu0 %2642
    %v2644 = vmul.f32 %v2640, %v1324
    %v2645 = vmul.f32 %v2643, %v1324
    %v2646 = vadd.f32 %v2644, 1e-05
    %v2647 = vadd.f32 %v2645, 1e-05
    %v2648 = vrsqrt.pop %v2646
    %v2649 = vrsqrt.pop %v2647
    %v2650 = vmul.f32 %v2634, %v2648
    %v2651 = vmul.f32 %v2635, %v2649
    %v2653 = vlaneseq
    %v2654 = vshrl.u32 %v2653, 7
    %v2655 = vsub.s32 0, %v2654
    %v2656 = vrot.slane %v2623, %v2655
    %v2658 = vmul.f32 %v2650, %v2656
    %v2659 = vmul.f32 %v2651, %v2656
    %v2661 = vlaneseq
    %v2662 = vshrl.u32 %v2661, 7
    %v2663 = vsub.s32 0, %v2662
    %v2664 = vrot.slane %v2625, %v2663
    %v2666 = vadd.f32 %v2658, %v2664
    %v2667 = vadd.f32 %v2659, %v2664
    %v2668 = vpack.c.bf16 %v2667, %v2666
    %s2669 = scalar_lea.vmem [#allocation11], 16
    %v2670 = vld [vmem:[%s2669] sm:$0xf]
    %v2671 = vld [vmem:[%s2669 + $0x4] sm:$0xf]
    %v2672 = vld [vmem:[%s2669 + $0x8] sm:$0xf]
    %v2673 = vld [vmem:[%s2669 + $0xc] sm:$0xf]
    %s2674 = scalar_lea.vmem [#allocation13], 1
    %v2675 = vld [vmem:[%s2674] sm:$0x1]
    %v2677 = vlaneseq
    %v2678 = vshrl.u32 %v2677, 7
    %v2679 = vsub.s32 0, %v2678
    %v2680 = vrot.slane %v2675, %v2679
    %v2686 = vunpack.c.l.b16 %v2670
    %v2687 = vunpack.c.l.b16 %v2671
    %v2688 = vunpack.c.l.b16 %v2672
    %v2689 = vunpack.c.l.b16 %v2673
    %v2690 = vpack.c.b16 %v2687, %v2686
    %v2691 = vpack.c.b16 %v2689, %v2688
    %v2695 = vsel %vm279, %v2668, 0
    %2697 = vmatprep.subr.bf16.mxu0 0
    %2698 = vmatpush1.bf16.msra.mxu0 %v2690
    %2699 = vmatprep.subr.bf16.mxu0 0
    %2700 = vmatpush1.bf16.msra.mxu0 %v2691
    %2701 = vmatprep.subr.bf16.mxu0 0
    %2702 = vmatpush1.bf16.msra.mxu0 0
    %2703 = vmatprep.subr.bf16.mxu0 0
    %2704 = vmatpush1.bf16.msra.mxu0 0
    %2705 = vmatprep.subr.bf16.mxu0 0
    %2706 = vmatpush1.bf16.msra.mxu0 0
    %2707 = vmatprep.subr.bf16.mxu0 0
    %2708 = vmatpush1.bf16.msra.mxu0 0
    %2709 = vmatprep.subr.bf16.mxu0 0
    %2710 = vmatpush1.bf16.msra.mxu0 0
    %2711 = vmatprep.subr.bf16.mxu0 0
    %2712 = vmatpush1.bf16.msra.mxu0 0
    %2713 = vmatprep.subr.bf16.mxu0 0
    %2714 = vmatpush1.bf16.msra.mxu0 0
    %2715 = vmatprep.subr.bf16.mxu0 0
    %2716 = vmatpush1.bf16.msra.mxu0 0
    %2717 = vmatprep.subr.bf16.mxu0 0
    %2718 = vmatpush1.bf16.msra.mxu0 0
    %2719 = vmatprep.subr.bf16.mxu0 0
    %2720 = vmatpush1.bf16.msra.mxu0 0
    %2721 = vmatprep.subr.bf16.mxu0 0
    %2722 = vmatpush1.bf16.msra.mxu0 0
    %2723 = vmatprep.subr.bf16.mxu0 0
    %2724 = vmatpush1.bf16.msra.mxu0 0
    %2725 = vmatprep.subr.bf16.mxu0 0
    %2726 = vmatpush1.bf16.msra.mxu0 0
    %2727 = vmatprep.subr.bf16.mxu0 0
    %2728 = vmatpush1.bf16.msra.mxu0 0
    %2729 = vmatprep.mubr.bf16.mxu0 0
    %2730 = vmatmul.mubr.bf16.gmra.mrb[0].mxu0 %v2695
    %v2731 = vpop.f32.mrb[0].mxu0
    %v2732 = vadd.f32 %v2680, %v2731
    %v2733 = vpop.f32.mrb[0].mxu0
    %v2734 = vpop.f32.mrb[0].mxu0
    %v2735 = vadd.f32 %v2680, %v2734
    %v2736 = vpop.f32.mrb[0].mxu0
    %2737 = vdwg.mxu0
    %v2738 = vmax.f32 %v2732, 0.0
    %v2739 = vmax.f32 %v2735, 0.0
    %v2740 = vpack.c.bf16 %v2739, %v2738
    %s2741 = scalar_lea.vmem [#allocation14], 32
    %v2742 = vld [vmem:[%s2741] sm:$0xf]
    %v2743 = vld [vmem:[%s2741 + $0x4] sm:$0xf]
    %v2744 = vld [vmem:[%s2741 + $0x8] sm:$0xf]
    %v2745 = vld [vmem:[%s2741 + $0xc] sm:$0xf]
    %v2746 = vld [vmem:[%s2741 + $0x10] sm:$0xf]
    %v2747 = vld [vmem:[%s2741 + $0x14] sm:$0xf]
    %v2748 = vld [vmem:[%s2741 + $0x18] sm:$0xf]
    %v2749 = vld [vmem:[%s2741 + $0x1c] sm:$0xf]
    %s2750 = scalar_lea.vmem [#allocation16], 1
    %v2751 = vld [vmem:[%s2750] sm:$0x1]
    %v2753 = vlaneseq
    %v2754 = vshrl.u32 %v2753, 7
    %v2755 = vsub.s32 0, %v2754
    %v2756 = vrot.slane %v2751, %v2755
    %v2766 = vunpack.c.l.b16 %v2742
    %v2767 = vunpack.c.l.b16 %v2743
    %v2768 = vunpack.c.l.b16 %v2744
    %v2769 = vunpack.c.l.b16 %v2745
    %v2770 = vunpack.c.l.b16 %v2746
    %v2771 = vunpack.c.l.b16 %v2747
    %v2772 = vunpack.c.l.b16 %v2748
    %v2773 = vunpack.c.l.b16 %v2749
    %v2774 = vpack.c.b16 %v2767, %v2766
    %v2775 = vpack.c.b16 %v2769, %v2768
    %v2776 = vpack.c.b16 %v2771, %v2770
    %v2777 = vpack.c.b16 %v2773, %v2772
    %v2783 = vsel %vm1471, %v2740, 0
    %2785 = vmatprep.subr.bf16.mxu0 0
    %2786 = vmatpush1.bf16.msra.mxu0 %v2774
    %2787 = vmatprep.subr.bf16.mxu0 0
    %2788 = vmatpush1.bf16.msra.mxu0 %v2775
    %2789 = vmatprep.subr.bf16.mxu0 0
    %2790 = vmatpush1.bf16.msra.mxu0 %v2776
    %2791 = vmatprep.subr.bf16.mxu0 0
    %2792 = vmatpush1.bf16.msra.mxu0 %v2777
    %2793 = vmatprep.subr.bf16.mxu0 0
    %2794 = vmatpush1.bf16.msra.mxu0 0
    %2795 = vmatprep.subr.bf16.mxu0 0
    %2796 = vmatpush1.bf16.msra.mxu0 0
    %2797 = vmatprep.subr.bf16.mxu0 0
    %2798 = vmatpush1.bf16.msra.mxu0 0
    %2799 = vmatprep.subr.bf16.mxu0 0
    %2800 = vmatpush1.bf16.msra.mxu0 0
    %2801 = vmatprep.subr.bf16.mxu0 0
    %2802 = vmatpush1.bf16.msra.mxu0 0
    %2803 = vmatprep.subr.bf16.mxu0 0
    %2804 = vmatpush1.bf16.msra.mxu0 0
    %2805 = vmatprep.subr.bf16.mxu0 0
    %2806 = vmatpush1.bf16.msra.mxu0 0
    %2807 = vmatprep.subr.bf16.mxu0 0
    %2808 = vmatpush1.bf16.msra.mxu0 0
    %2809 = vmatprep.subr.bf16.mxu0 0
    %2810 = vmatpush1.bf16.msra.mxu0 0
    %2811 = vmatprep.subr.bf16.mxu0 0
    %2812 = vmatpush1.bf16.msra.mxu0 0
    %2813 = vmatprep.subr.bf16.mxu0 0
    %2814 = vmatpush1.bf16.msra.mxu0 0
    %2815 = vmatprep.subr.bf16.mxu0 0
    %2816 = vmatpush1.bf16.msra.mxu0 0
    %2817 = vmatprep.mubr.bf16.mxu0 0
    %2818 = vmatmul.mubr.bf16.gmra.mrb[0].mxu0 %v2783
    %v2819 = vpop.f32.mrb[0].mxu0
    %v2820 = vadd.f32 %v2756, %v2819
    %v2821 = vpop.f32.mrb[0].mxu0
    %v2822 = vpop.f32.mrb[0].mxu0
    %v2823 = vadd.f32 %v2756, %v2822
    %v2824 = vpop.f32.mrb[0].mxu0
    %2825 = vdwg.mxu0
    %v2826 = vadd.f32 %v2666, %v2820
    %v2827 = vadd.f32 %v2667, %v2823
    %s2828 = scalar_lea.vmem [#allocation20], 1
    %v2829 = vld [vmem:[%s2828] sm:$0x1]
    %s2830 = scalar_lea.vmem [#allocation22], 1
    %v2831 = vld [vmem:[%s2830] sm:$0x1]
    %v2832 = vsel %vm279, %v2826, 0.0
    %2833 = vadd.xlane.f32.xlu0 %v2832
    %v2834 = vpop.xlane.xlu0 %2833
    %v2835 = vsel %vm279, %v2827, 0.0
    %2836 = vadd.xlane.f32.xlu0 %v2835
    %v2837 = vpop.xlane.xlu0 %2836
    %v2838 = vmul.f32 %v2834, %v1324
    %v2839 = vmul.f32 %v2837, %v1324
    %v2840 = vsub.f32 %v2826, %v2838
    %v2841 = vsub.f32 %v2827, %v2839
    %v2842 = vmul.f32 %v2840, %v2840
    %v2843 = vmul.f32 %v2841, %v2841
    %v2844 = vsel %vm279, %v2842, 0.0
    %2845 = vadd.xlane.f32.xlu0 %v2844
    %v2846 = vpop.xlane.xlu0 %2845
    %v2847 = vsel %vm279, %v2843, 0.0
    %2848 = vadd.xlane.f32.xlu0 %v2847
    %v2849 = vpop.xlane.xlu0 %2848
    %v2850 = vmul.f32 %v2846, %v1324
    %v2851 = vmul.f32 %v2849, %v1324
    %v2852 = vadd.f32 %v2850, 1e-05
    %v2853 = vadd.f32 %v2851, 1e-05
    %v2854 = vrsqrt.pop %v2852
    %v2855 = vrsqrt.pop %v2853
    %v2856 = vmul.f32 %v2840, %v2854
    %v2857 = vmul.f32 %v2841, %v2855
    %v2859 = vlaneseq
    %v2860 = vshrl.u32 %v2859, 7
    %v2861 = vsub.s32 0, %v2860
    %v2862 = vrot.slane %v2829, %v2861
    %v2864 = vmul.f32 %v2856, %v2862
    %v2865 = vmul.f32 %v2857, %v2862
    %v2867 = vlaneseq
    %v2868 = vshrl.u32 %v2867, 7
    %v2869 = vsub.s32 0, %v2868
    %v2870 = vrot.slane %v2831, %v2869
    %v2872 = vadd.f32 %v2864, %v2870
    %v2873 = vadd.f32 %v2865, %v2870
    %v2874 = vsel %vm279, %v2872, 0.0
    %v2875 = vrot.slane %v2874, 4
    %v2876 = vadd.f32 %v2874, %v2875
    %v2877 = vrot.slane %v2876, 2
    %v2878 = vadd.f32 %v2876, %v2877
    %v2879 = vrot.slane %v2878, 1
    %v2880 = vadd.f32 %v2878, %v2879
    %v2881 = vsel %vm279, %v2873, 0.0
    %v2882 = vrot.slane %v2881, 4
    %v2883 = vadd.f32 %v2881, %v2882
    %v2884 = vrot.slane %v2883, 2
    %v2885 = vadd.f32 %v2883, %v2884
    %v2886 = vrot.slane %v2885, 1
    %v2887 = vadd.f32 %v2885, %v2886
    %v2888 = vrcp.pop 8.0
    %v2889 = vmul.f32 %v2880, %v2888
    %v2890 = vmul.f32 %v2887, %v2888
    %v2891 = vpack.c.bf16 %v2889, %v2889
    %v2892 = vpack.c.bf16 %v2890, %v2890
    %v2893 = vld [vmem:[#allocation23] sm:$0xf]
    %v2894 = vld [vmem:[#allocation23 + $0x4] sm:$0xf]
    %v2895 = vld [vmem:[#allocation23 + $0x8] sm:$0xf]
    %v2896 = vld [vmem:[#allocation23 + $0xc] sm:$0xf]
    %v2897 = vld [vmem:[#allocation25] sm:$0x1]
    %v2899 = vlaneseq
    %v2900 = vshrl.u32 %v2899, 7
    %v2901 = vsub.s32 0, %v2900
    %v2902 = vrot.slane %v2897, %v2901
    %v2906 = vunpack.c.l.b16 %v2891
    %v2907 = vunpack.c.l.b16 %v2892
    %vm2908 = vcmask 1041409
    %v2909 = vsel %vm2908, %v2907, %v2906
    %v2910 = vpack.c.b16 %v2909, %v2909
    %v2915 = vunpack.c.l.b16 %v2893
    %v2916 = vunpack.c.l.b16 %v2894
    %v2917 = vunpack.c.l.b16 %v2895
    %v2918 = vunpack.c.l.b16 %v2896
    %v2919 = vpack.c.b16 %v2916, %v2915
    %v2920 = vpack.c.b16 %v2918, %v2917
    %v2924 = vsel %vm279, %v2910, 0
    %2926 = vmatprep.subr.bf16.mxu0 0
    %2927 = vmatpush1.bf16.msra.mxu0 %v2919
    %2928 = vmatprep.subr.bf16.mxu0 0
    %2929 = vmatpush1.bf16.msra.mxu0 %v2920
    %2930 = vmatprep.subr.bf16.mxu0 0
    %2931 = vmatpush1.bf16.msra.mxu0 0
    %2932 = vmatprep.subr.bf16.mxu0 0
    %2933 = vmatpush1.bf16.msra.mxu0 0
    %2934 = vmatprep.subr.bf16.mxu0 0
    %2935 = vmatpush1.bf16.msra.mxu0 0
    %2936 = vmatprep.subr.bf16.mxu0 0
    %2937 = vmatpush1.bf16.msra.mxu0 0
    %2938 = vmatprep.subr.bf16.mxu0 0
    %2939 = vmatpush1.bf16.msra.mxu0 0
    %2940 = vmatprep.subr.bf16.mxu0 0
    %2941 = vmatpush1.bf16.msra.mxu0 0
    %2942 = vmatprep.subr.bf16.mxu0 0
    %2943 = vmatpush1.bf16.msra.mxu0 0
    %2944 = vmatprep.subr.bf16.mxu0 0
    %2945 = vmatpush1.bf16.msra.mxu0 0
    %2946 = vmatprep.subr.bf16.mxu0 0
    %2947 = vmatpush1.bf16.msra.mxu0 0
    %2948 = vmatprep.subr.bf16.mxu0 0
    %2949 = vmatpush1.bf16.msra.mxu0 0
    %2950 = vmatprep.subr.bf16.mxu0 0
    %2951 = vmatpush1.bf16.msra.mxu0 0
    %2952 = vmatprep.subr.bf16.mxu0 0
    %2953 = vmatpush1.bf16.msra.mxu0 0
    %2954 = vmatprep.subr.bf16.mxu0 0
    %2955 = vmatpush1.bf16.msra.mxu0 0
    %2956 = vmatprep.subr.bf16.mxu0 0
    %2957 = vmatpush1.bf16.msra.mxu0 0
    %2958 = vmatprep.mubr.bf16.mxu0 0
    %2959 = vmatmul.mubr.bf16.gmra.mrb[0].mxu0 %v2924
    %v2960 = vpop.f32.mrb[0].mxu0
    %v2961 = vadd.f32 %v2902, %v2960
    %v2962 = vpop.f32.mrb[0].mxu0
    %v2963 = vpop.f32.mrb[0].mxu0
    %v2964 = vpop.f32.mrb[0].mxu0
    %2965 = vdwg.mxu0
    %2966 = vst [vmem:[#allocation26] sm:$0x3] %v2961
    // Predicated region
    $region122: #{tpu_custom_call.1} parent=1 // pred_check
      _
    $region123: #{tpu_custom_call.1} parent=1 // pred_check_branch
      %2968 = sbr.rel (0) target = $region125
    $region124: #{tpu_custom_call.1} parent=1 // pred_region
      %s2970 = ssub.s32 32, 32
      %2971 = vsyncadd [#allocation4], %s2970
      %s2973 = sshll.u32 [#allocation26], 4
      %s2974 = int_to_ptr.vmem [resolvable:$true] %s2973
      %2976 = dma.vmem_to_hbm [thread:$0]  %s2974, 32, %s15, [#allocation4]
    $region125: #{tpu_custom_call.1} parent=1 // pred_fallthru
      _
    // Predicated region
    $region126: #{tpu_custom_call.1} parent=1 // pred_check
      _
    $region127: #{tpu_custom_call.1} parent=1 // pred_check_branch
      %2978 = sbr.rel (0) target = $region129
    $region128: #{tpu_custom_call.1} parent=1 // pred_region
      %2979 = dma.done [#allocation4], 32
    $region129: #{tpu_custom_call.1} parent=1 // pred_fallthru
      _
    %2980 = vsyncpa [#allocation3], 1
    %2981 = vsyncpa [#allocation6], 1
    %2982 = vsyncpa [#allocation9], 1
    %2983 = vsyncpa [#allocation12], 1
    %2984 = vsyncpa [#allocation15], 1
    %2985 = vsyncpa [#allocation18], 1
    %2986 = vsyncpa [#allocation21], 1
    %2987 = vsyncpa [#allocation24], 1
    %2988 = vsyncpa [#allocation4], 1

</llo_original>
